<compile_context>
chip_gen: v6e
topology: v6e:2x2x1
jax: 0.10.0
libtpu: 0.0.40
codegen_flags: <defaults>
</compile_context>

<pallas_src>
import functools
import math

import jax
import jax.numpy as jnp
import numpy as np
from jax import lax
from jax.experimental import pallas as pl
from jax.experimental.pallas import tpu as pltpu


# ----------------------------------------------------------------------------
# Lane-dense cross product: 3-vectors stored as ROWS of (3, N) arrays.
# ----------------------------------------------------------------------------
def _cross_rows(a, b):
    ax, ay, az = a[0:1, :], a[1:2, :], a[2:3, :]
    bx, by, bz = b[0:1, :], b[1:2, :], b[2:3, :]
    return jnp.concatenate(
        [ay * bz - az * by, az * bx - ax * bz, ax * by - ay * bx], axis=0)


# ----------------------------------------------------------------------------
# Fused per-iteration kernel.  Grid axis 0 = forward iteration (sequential).
#   inputs : vT (3,Vp), m_all (3*F_pad,Vp), cf (C,F_pad),
#            allowed (Vp,Vp) f32, eye (Vp,Vp) bf16      [all loop-invariant]
#   outputs: contact-map slab (n_iter,Vp,Vp)  [one (Vp,Vp) block per step],
#            final vertices vT (3,Vp)  [constant index map -> VMEM-resident
#                                       state carrier, written back once]
# ----------------------------------------------------------------------------
def _fused_iteration_kernel(vT_ref, m_ref, cf_ref, allowed_ref, eye_ref,
                            cmap_ref, vout_ref,
                            *, thr2, gamma, target_vol, bulk, dt,
                            f_pad, n_closure):
    it = pl.program_id(0)

    @pl.when(it == 0)
    def _():
        vout_ref[...] = vT_ref[...]          # seed the resident state

    vT = vout_ref[...]                       # (3, V) current vertex state
    V = vT.shape[1]

    # ---- 1. contact detection: pairwise squared distances via a gram matmul.
    gram = lax.dot_general(vT, vT, (((0,), (0,)), ((), ())),
                           preferred_element_type=jnp.float32)          # (V,V)
    sq = vT * vT                                                        # (3,V)
    x2_row = jnp.sum(sq, axis=0, keepdims=True)                         # (1,V)
    ones3 = jnp.ones((3, 1), jnp.float32)
    x2_col = lax.dot_general(sq, ones3, (((0,), (0,)), ((), ())),
                             preferred_element_type=jnp.float32)        # (V,1)
    d2 = jnp.maximum(x2_col + x2_row - 2.0 * gram, 0.0)                 # clamp

    # allowed[i,j] = cell_contact_map[cell_i, cell_j] (zero diagonal, padded
    # vertex rows/cols are all zero) -> same-cell / padded pairs excluded.
    contact = jnp.where(d2 < thr2, allowed_ref[...], 0.0)               # (V,V)
    cmap_ref[...] = contact      # store early; writeback overlaps the closure

    # ---- 2. connected components via transitive closure (bf16 squarings).
    # The closure matrix IS the group-membership matrix and drives both
    # group-averages below (no explicit labels needed).
    same = contact.astype(jnp.bfloat16) + eye_ref[...]                  # 0/1
    for _ in range(n_closure):
        sqm = jnp.dot(same, same, preferred_element_type=jnp.float32)
        same = (sqm > 0.0).astype(jnp.bfloat16)
    same_f32 = same.astype(jnp.float32)
    inv_cnt = 1.0 / jnp.sum(same_f32, axis=0, keepdims=True)            # (1,V)

    # ---- 3. group-average the vertex positions (lane-dense, f32).
    vT_avg = jnp.dot(vT, same_f32, preferred_element_type=jnp.float32) * inv_cnt

    # ---- 4. vertex forces: 3 gather matmuls, per-face geometry, 3 scatters.
    m0 = m_ref[pl.ds(0, f_pad), :]
    m1 = m_ref[pl.ds(f_pad, f_pad), :]
    m2 = m_ref[pl.ds(2 * f_pad, f_pad), :]

    def gather(m):
        return lax.dot_general(vT_avg, m, (((1,), (1,)), ((), ())),
                               preferred_element_type=jnp.float32)      # (3,F)

    v0, v1, v2 = gather(m0), gather(m1), gather(m2)

    cr = _cross_rows(v1 - v0, v2 - v0)                                  # (3,F)
    nrm = jnp.sqrt(jnp.sum(cr * cr, axis=0, keepdims=True))             # (1,F)
    n_hat = cr / jnp.maximum(nrm, 1e-12)

    # surface-tension (area) gradients per corner
    dA0 = 0.5 * _cross_rows(n_hat, v2 - v1)
    dA1 = 0.5 * _cross_rows(n_hat, v0 - v2)
    dA2 = 0.5 * _cross_rows(n_hat, v1 - v0)

    # pressure: signed volumes per cell, p_c = K * log(V_target / V_c)
    c12 = _cross_rows(v1, v2)
    c20 = _cross_rows(v2, v0)
    c01 = _cross_rows(v0, v1)
    vol_f = jnp.sum(v0 * c12, axis=0, keepdims=True) / 6.0              # (1,F)
    cf = cf_ref[...]                                                    # (C,F)
    cell_vol = lax.dot_general(vol_f, cf, (((1,), (1,)), ((), ())),
                               preferred_element_type=jnp.float32)      # (1,C)
    # TODO(synk): the clamp on inverted (negative-volume) cells mirrors the
    # previous port; verify against the reference handling of inverted cells.
    p_cell = bulk * jnp.log(target_vol / jnp.maximum(cell_vol, 1e-6))   # (1,C)
    p_face = jnp.dot(p_cell, cf, preferred_element_type=jnp.float32)    # (1,F)

    g0 = p_face * (c12 / 6.0) - gamma * dA0
    g1 = p_face * (c20 / 6.0) - gamma * dA1
    g2 = p_face * (c01 / 6.0) - gamma * dA2

    # scatter to vertices (padded faces / vertices contribute 0)
    fT = (jnp.dot(g0, m0, preferred_element_type=jnp.float32)
          + jnp.dot(g1, m1, preferred_element_type=jnp.float32)
          + jnp.dot(g2, m2, preferred_element_type=jnp.float32))        # (3,V)
    # static_nodes_mask is all-False in the reference forward -> no masking.

    # ---- 5. group-average the forces (reusing `same`), Euler update.
    fT_avg = jnp.dot(fT, same_f32, preferred_element_type=jnp.float32) * inv_cnt
    vout_ref[...] = vT_avg + dt * fT_avg


# ----------------------------------------------------------------------------
# JAX glue
# ----------------------------------------------------------------------------
def find_intersecting_bounding_boxes(bounding_boxes):
    """Dense symmetric cell contact map from AABB overlap (zero diagonal)."""
    mins = bounding_boxes[:, 0:3]
    maxs = bounding_boxes[:, 3:6]
    overlap = jnp.all((mins[:, None, :] <= maxs[None, :, :]) &
                      (mins[None, :, :] <= maxs[:, None, :]), axis=-1)
    C = bounding_boxes.shape[0]
    return overlap.astype(jnp.float32) * (1.0 - jnp.eye(C, dtype=jnp.float32))


@functools.partial(jax.jit, static_argnames=(
    "n_iter", "thr", "gamma", "target_vol", "bulk", "dt", "closure_cap"))
def _soap_bubble_run(vertices, faces, face_cell_index, bounding_boxes, *,
                     n_iter, thr, gamma, target_vol, bulk, dt, closure_cap):
    V = vertices.shape[0]
    F = faces.shape[0]
    C = bounding_boxes.shape[0]
    V_pad = ((V + 127) // 128) * 128   # lane-dense (V,V) stores & slices
    F_pad = ((F + 127) // 128) * 128   # lane-align the per-corner face slabs

    # Constant across iterations -> hoisted out of the loop (computed once).
    cc = find_intersecting_bounding_boxes(bounding_boxes)               # (C,C)

    # Static mesh connectivity -> dense one-hot incidence matrices (built once;
    # padded rows/columns are all-zero so they are exact no-ops).
    m0 = jax.nn.one_hot(faces[:, 0], V_pad, dtype=jnp.float32)          # (F,Vp)
    m1 = jax.nn.one_hot(faces[:, 1], V_pad, dtype=jnp.float32)
    m2 = jax.nn.one_hot(faces[:, 2], V_pad, dtype=jnp.float32)
    pad_rows = ((0, F_pad - F), (0, 0))
    m_all = jnp.concatenate([jnp.pad(m0, pad_rows), jnp.pad(m1, pad_rows),
                             jnp.pad(m2, pad_rows)], axis=0)            # (3Fp,Vp)
    cf = jnp.pad(jax.nn.one_hot(face_cell_index, C, dtype=jnp.float32).T,
                 ((0, 0), (0, F_pad - F)))                              # (C,Fp)

    # Per-vertex cell id (-1 => padded / unreferenced -> zero one-hot row).
    vertex_cell = jnp.full((V_pad,), -1, jnp.int32).at[faces.reshape(-1)].set(
        jnp.repeat(face_cell_index.astype(jnp.int32), 3))
    oh = jax.nn.one_hot(vertex_cell, C, dtype=jnp.float32)              # (Vp,C)
    # Loop-invariant allowed-contact mask, hoisted out of the kernel.
    allowed = (oh @ cc) @ oh.T                                          # (Vp,Vp)
    eye = jnp.eye(V_pad, dtype=jnp.bfloat16)                            # (Vp,Vp)

    vT = jnp.pad(vertices.astype(jnp.float32),
                 ((0, V_pad - V), (0, 0))).T                            # (3,Vp)

    # Closure depth: capped bound on the contact-graph diameter.
    n_closure = max(1, min(int(closure_cap),
                           int(math.ceil(math.log2(max(V, 2))))))

    # Explicit VMEM budget (capped at 64 MiB so the same plan fits v7x).
    io_bytes = (3 * V_pad * 4 + 3 * F_pad * V_pad * 4 + C * F_pad * 4
                + V_pad * V_pad * 4 + V_pad * V_pad * 2      # inputs
                + V_pad * V_pad * 4 + 3 * V_pad * 4)          # outputs
    tmp_bytes = 8 * V_pad * V_pad * 4 + 16 * 3 * F_pad * 4
    vmem_limit = int(min(max(2 * io_bytes + tmp_bytes + (4 << 20), 32 << 20),
                         64 << 20))

    kernel = functools.partial(
        _fused_iteration_kernel, thr2=float(thr) ** 2, gamma=float(gamma),
        target_vol=float(target_vol), bulk=float(bulk), dt=float(dt),
        f_pad=F_pad, n_closure=n_closure)

    cmaps, vT_out = pl.pallas_call(
        kernel,
        out_shape=(jax.ShapeDtypeStruct((n_iter, V_pad, V_pad), jnp.float32),
                   jax.ShapeDtypeStruct((3, V_pad), jnp.float32)),
        grid=(n_iter,),
        in_specs=[pl.BlockSpec((3, V_pad), lambda i: (0, 0)),
                  pl.BlockSpec((3 * F_pad, V_pad), lambda i: (0, 0)),
                  pl.BlockSpec((C, F_pad), lambda i: (0, 0)),
                  pl.BlockSpec((V_pad, V_pad), lambda i: (0, 0)),
                  pl.BlockSpec((V_pad, V_pad), lambda i: (0, 0))],
        out_specs=(pl.BlockSpec((None, V_pad, V_pad), lambda i: (i, 0, 0)),
                   pl.BlockSpec((3, V_pad), lambda i: (0, 0))),
        compiler_params=pltpu.CompilerParams(
            dimension_semantics=("arbitrary",),   # sequential state carry
            vmem_limit_bytes=vmem_limit),
    )(vT, m_all, cf, allowed, eye)

    return vT_out.T[:V], cmaps[:, :V, :V]


# ----------------------------------------------------------------------------
# The module
# ----------------------------------------------------------------------------
class SoapBubble:
    def __init__(self, n_forward_iterations=10, time_step=30.0,
                 contact_distance_threshold=0.3, normalized_pressure=0.5,
                 normalized_surface_tension=0.5, pressure_range=(10.0, 200.0),
                 surface_tension_range=(0.002, 0.02), target_cell_volume=1.0,
                 bulk_modulus=2500.0, max_closure_squarings=4):
        self.n_forward_iterations = int(n_forward_iterations)
        self.time_step = float(time_step)
        self.bulk_modulus = float(bulk_modulus)
        self.contact_distance_threshold = float(contact_distance_threshold)
        self.target_cell_volume = float(target_cell_volume)
        self.pressure_range = pressure_range
        self.surface_tension_range = surface_tension_range
        # Bound on log2(contact-chain length); 4 covers chains of <= 16 merged
        # vertices, far beyond physical contact blobs.
        self.max_closure_squarings = int(max_closure_squarings)
        # deterministic "parameters" (same init values as the torch module);
        # kept as python floats so they bake into the kernel as constants.
        self.normalized_surface_tension = float(normalized_surface_tension)
        self.normalized_pressure = float(normalized_pressure)

    def forward(self, mesh_data):
        vertices = mesh_data["vertices"].astype(jnp.float32)
        faces = mesh_data["faces"]
        face_cell_index = mesh_data["face_cell_index"]
        bounding_boxes = mesh_data["bounding_boxes"]

        pressure = (self.normalized_pressure
                    * (self.pressure_range[1] - self.pressure_range[0])
                    + self.pressure_range[0])
        surface_tension = (self.normalized_surface_tension
                           * (self.surface_tension_range[1]
                              - self.surface_tension_range[0])
                           + self.surface_tension_range[0])
        scaled_target_volume = (self.target_cell_volume
                                * math.exp(pressure / self.bulk_modulus))

        vertices_out, cmaps = _soap_bubble_run(
            vertices, faces, face_cell_index, bounding_boxes,
            n_iter=self.n_forward_iterations,
            thr=self.contact_distance_threshold,
            gamma=surface_tension,
            target_vol=scaled_target_volume,
            bulk=self.bulk_modulus,
            dt=self.time_step,
            closure_cap=self.max_closure_squarings)

        return {"vertices": vertices_out, "faces": faces,
                "cell_face_list": mesh_data["cell_face_list"],
                "vertex_contact_map": [cmaps[i]
                                       for i in range(self.n_forward_iterations)]}


# ----------------------------------------------------------------------------
# Deterministic example input: two unit cubes with overlapping bounding boxes
# ----------------------------------------------------------------------------
def _unit_cube_mesh():
    verts = np.array([[0, 0, 0], [1, 0, 0], [1, 1, 0], [0, 1, 0],
                      [0, 0, 1], [1, 0, 1], [1, 1, 1], [0, 1, 1]], np.float32)
    faces = np.array([[0, 2, 1], [0, 3, 2],      # bottom
                      [4, 5, 6], [4, 6, 7],      # top
                      [0, 1, 5], [0, 5, 4],      # front
                      [2, 3, 7], [2, 7, 6],      # back
                      [0, 4, 7], [0, 7, 3],      # left
                      [1, 2, 6], [1, 6, 5]],     # right
                     np.int32)
    return verts, faces


def build_double_cube_mesh(key):
    v1, f1 = _unit_cube_mesh()
    v2 = v1 + np.array([0.95, 0.0, 0.0], np.float32)   # slight overlap -> contact
    verts = np.concatenate([v1, v2], axis=0)            # (16, 3)
    faces = np.concatenate([f1, f1 + 8], axis=0)        # (24, 3)
    face_cell_index = np.concatenate(
        [np.zeros(12, np.int32), np.ones(12, np.int32)])
    cell_face_list = [jnp.arange(12, dtype=jnp.int32),
                      jnp.arange(12, 24, dtype=jnp.int32)]

    verts = jnp.asarray(verts) + 1e-3 * jax.random.normal(key, verts.shape, jnp.float32)

    bbs = []
    for c in range(2):
        vc = verts[8 * c:8 * (c + 1)]
        bbs.append(jnp.concatenate([vc.min(axis=0), vc.max(axis=0)]))
    bounding_boxes = jnp.stack(bbs)                     # (2, 6)

    return {"vertices": verts,
            "faces": jnp.asarray(faces),
            "face_cell_index": jnp.asarray(face_cell_index),
            "cell_face_list": cell_face_list,
            "bounding_boxes": bounding_boxes}


if __name__ == "__main__":
    key = jax.random.PRNGKey(0)
    mesh_data = build_double_cube_mesh(key)
    # small iteration count / time step for a numerically tame demo run
    model = SoapBubble(n_forward_iterations=3, time_step=1e-3)
    out = model.forward(mesh_data)
    jax.block_until_ready(out["vertices"])
    for cmap in out["vertex_contact_map"]:
        jax.block_until_ready(cmap)
    print("KERNEL_OK")
</pallas_src>

<mosaic_0001>
module attributes {stable_mosaic.version = 11 : i64} {
  func.func @_fused_iteration_kernel(%arg0: i32, %arg1: memref<3x128xf32, #tpu.memory_space<vmem>>, %arg2: memref<384x128xf32, #tpu.memory_space<vmem>>, %arg3: memref<2x128xf32, #tpu.memory_space<vmem>>, %arg4: memref<128x128xf32, #tpu.memory_space<vmem>>, %arg5: memref<128x128xbf16, #tpu.memory_space<vmem>>, %arg6: memref<1x128x128xf32, #tpu.memory_space<vmem>>, %arg7: memref<3x128xf32, #tpu.memory_space<vmem>>) attributes {dimension_semantics = [#tpu.dimension_semantics<arbitrary>], iteration_bounds = array<i64: 3>, scalar_prefetch = 0 : i64, scratch_operands = 0 : i64, tpu.core_type = #tpu.core_type<tc>, window_params = [{pipeline_mode = #tpu.pipeline_mode<synchronous>, transform_indices = @transform_0, window_bounds = array<i64: 3, 128>}, {pipeline_mode = #tpu.pipeline_mode<synchronous>, transform_indices = @transform_1, window_bounds = array<i64: 384, 128>}, {pipeline_mode = #tpu.pipeline_mode<synchronous>, transform_indices = @transform_2, window_bounds = array<i64: 2, 128>}, {pipeline_mode = #tpu.pipeline_mode<synchronous>, transform_indices = @transform_3, window_bounds = array<i64: 128, 128>}, {pipeline_mode = #tpu.pipeline_mode<synchronous>, transform_indices = @transform_4, window_bounds = array<i64: 128, 128>}, {transform_indices = @transform_5, window_bounds = array<i64: 1, 128, 128>}, {pipeline_mode = #tpu.pipeline_mode<synchronous>, transform_indices = @transform_6, window_bounds = array<i64: 3, 128>}]} {
    %c0_i32 = arith.constant 0 : i32
    %0 = arith.cmpi eq, %arg0, %c0_i32 : i32
    %1 = arith.extui %0 : i1 to i32
    %c0_i32_0 = arith.constant 0 : i32
    %2 = arith.cmpi ne, %1, %c0_i32_0 : i32
    scf.if %2 {
      %c0_61 = arith.constant 0 : index
      %c0_62 = arith.constant 0 : index
      %246 = vector.load %arg1[%c0_61, %c0_62] : memref<3x128xf32, #tpu.memory_space<vmem>>, vector<3x128xf32>
      %c0_63 = arith.constant 0 : index
      %c0_64 = arith.constant 0 : index
      %247 = vector.load %arg7[%c0_63, %c0_64] : memref<3x128xf32, #tpu.memory_space<vmem>>, vector<3x128xf32>
      tpu.vector_store %arg7[%c0_63, %c0_64], %246 {strides = array<i32>} : memref<3x128xf32, #tpu.memory_space<vmem>>, vector<3x128xf32>,
    } else {
    }
    %c0 = arith.constant 0 : index
    %c0_1 = arith.constant 0 : index
    %3 = vector.load %arg7[%c0, %c0_1] : memref<3x128xf32, #tpu.memory_space<vmem>>, vector<3x128xf32>
    %cst = arith.constant dense<0.000000e+00> : vector<128x128xf32>
    %4 = tpu.matmul %3, %3, %cst {dimension_numbers = #tpu.dot_dimension_numbers<[0], [0], [1], [1], [0, 1, 1, 1], [], []>} : vector<3x128xf32>, vector<3x128xf32>, vector<128x128xf32> -> vector<128x128xf32>
    %5 = arith.mulf %3, %3 : vector<3x128xf32>
    %cst_2 = arith.constant dense<0.000000e+00> : vector<128xf32>
    %6 = vector.multi_reduction <add>, %5, %cst_2 [0] : vector<3x128xf32> to vector<128xf32>
    %7 = vector.shape_cast %6 : vector<128xf32> to vector<1x128xf32>
    %cst_3 = arith.constant 1.000000e+00 : f32
    %8 = vector.broadcast %cst_3 : f32 to vector<3x1xf32>
    %cst_4 = arith.constant dense<0.000000e+00> : vector<128x1xf32>
    %9 = tpu.matmul %5, %8, %cst_4 {dimension_numbers = #tpu.dot_dimension_numbers<[0], [0], [1], [1], [0, 1, 1, 1], [], []>} : vector<3x128xf32>, vector<3x1xf32>, vector<128x1xf32> -> vector<128x1xf32>
    %10 = vector.broadcast %9 : vector<128x1xf32> to vector<128x128xf32>
    %11 = vector.broadcast %7 : vector<1x128xf32> to vector<128x128xf32>
    %12 = arith.addf %10, %11 : vector<128x128xf32>
    %cst_5 = arith.constant 2.000000e+00 : f32
    %13 = vector.broadcast %cst_5 : f32 to vector<128x128xf32>
    %14 = arith.mulf %13, %4 : vector<128x128xf32>
    %15 = arith.subf %12, %14 : vector<128x128xf32>
    %cst_6 = arith.constant 0.000000e+00 : f32
    %16 = vector.broadcast %cst_6 : f32 to vector<128x128xf32>
    %17 = arith.maximumf %15, %16 : vector<128x128xf32>
    %cst_7 = arith.constant 9.000000e-02 : f32
    %18 = vector.broadcast %cst_7 : f32 to vector<128x128xf32>
    %19 = arith.cmpf olt, %17, %18 : vector<128x128xf32>
    %c0_8 = arith.constant 0 : index
    %c0_9 = arith.constant 0 : index
    %20 = vector.load %arg4[%c0_8, %c0_9] : memref<128x128xf32, #tpu.memory_space<vmem>>, vector<128x128xf32>
    %cst_10 = arith.constant 0.000000e+00 : f32
    %21 = vector.broadcast %cst_10 : f32 to vector<128x128xf32>
    %22 = arith.select %19, %20, %21 : vector<128x128xi1>, vector<128x128xf32>
    %c0_11 = arith.constant 0 : index
    %c0_12 = arith.constant 0 : index
    %c0_13 = arith.constant 0 : index
    %23 = vector.load %arg6[%c0_11, %c0_12, %c0_13] : memref<1x128x128xf32, #tpu.memory_space<vmem>>, vector<1x128x128xf32>
    %24 = vector.shape_cast %23 : vector<1x128x128xf32> to vector<128x128xf32>
    %25 = vector.shape_cast %22 : vector<128x128xf32> to vector<1x128x128xf32>
    tpu.vector_store %arg6[%c0_11, %c0_12, %c0_13], %25 {strides = array<i32>} : memref<1x128x128xf32, #tpu.memory_space<vmem>>, vector<1x128x128xf32>,
    %26 = arith.truncf %22 : vector<128x128xf32> to vector<128x128xbf16>
    %c0_14 = arith.constant 0 : index
    %c0_15 = arith.constant 0 : index
    %27 = vector.load %arg5[%c0_14, %c0_15] : memref<128x128xbf16, #tpu.memory_space<vmem>>, vector<128x128xbf16>
    %28 = arith.addf %26, %27 : vector<128x128xbf16>
    %cst_16 = arith.constant dense<0.000000e+00> : vector<128x128xf32>
    %29 = tpu.matmul %28, %28, %cst_16 {dimension_numbers = #tpu.dot_dimension_numbers<[1], [0], [0], [1], [0, 0, 1, 1], [], []>} : vector<128x128xbf16>, vector<128x128xbf16>, vector<128x128xf32> -> vector<128x128xf32>
    %cst_17 = arith.constant 0.000000e+00 : f32
    %30 = vector.broadcast %cst_17 : f32 to vector<128x128xf32>
    %31 = arith.cmpf ogt, %29, %30 : vector<128x128xf32>
    %32 = arith.extui %31 : vector<128x128xi1> to vector<128x128xi32>
    %33 = arith.sitofp %32 : vector<128x128xi32> to vector<128x128xf32>
    %34 = arith.truncf %33 : vector<128x128xf32> to vector<128x128xbf16>
    %cst_18 = arith.constant dense<0.000000e+00> : vector<128x128xf32>
    %35 = tpu.matmul %34, %34, %cst_18 {dimension_numbers = #tpu.dot_dimension_numbers<[1], [0], [0], [1], [0, 0, 1, 1], [], []>} : vector<128x128xbf16>, vector<128x128xbf16>, vector<128x128xf32> -> vector<128x128xf32>
    %cst_19 = arith.constant 0.000000e+00 : f32
    %36 = vector.broadcast %cst_19 : f32 to vector<128x128xf32>
    %37 = arith.cmpf ogt, %35, %36 : vector<128x128xf32>
    %38 = arith.extui %37 : vector<128x128xi1> to vector<128x128xi32>
    %39 = arith.sitofp %38 : vector<128x128xi32> to vector<128x128xf32>
    %40 = arith.truncf %39 : vector<128x128xf32> to vector<128x128xbf16>
    %cst_20 = arith.constant dense<0.000000e+00> : vector<128x128xf32>
    %41 = tpu.matmul %40, %40, %cst_20 {dimension_numbers = #tpu.dot_dimension_numbers<[1], [0], [0], [1], [0, 0, 1, 1], [], []>} : vector<128x128xbf16>, vector<128x128xbf16>, vector<128x128xf32> -> vector<128x128xf32>
    %cst_21 = arith.constant 0.000000e+00 : f32
    %42 = vector.broadcast %cst_21 : f32 to vector<128x128xf32>
    %43 = arith.cmpf ogt, %41, %42 : vector<128x128xf32>
    %44 = arith.extui %43 : vector<128x128xi1> to vector<128x128xi32>
    %45 = arith.sitofp %44 : vector<128x128xi32> to vector<128x128xf32>
    %46 = arith.truncf %45 : vector<128x128xf32> to vector<128x128xbf16>
    %cst_22 = arith.constant dense<0.000000e+00> : vector<128x128xf32>
    %47 = tpu.matmul %46, %46, %cst_22 {dimension_numbers = #tpu.dot_dimension_numbers<[1], [0], [0], [1], [0, 0, 1, 1], [], []>} : vector<128x128xbf16>, vector<128x128xbf16>, vector<128x128xf32> -> vector<128x128xf32>
    %cst_23 = arith.constant 0.000000e+00 : f32
    %48 = vector.broadcast %cst_23 : f32 to vector<128x128xf32>
    %49 = arith.cmpf ogt, %47, %48 : vector<128x128xf32>
    %50 = arith.extui %49 : vector<128x128xi1> to vector<128x128xi32>
    %51 = arith.sitofp %50 : vector<128x128xi32> to vector<128x128xf32>
    %52 = arith.truncf %51 : vector<128x128xf32> to vector<128x128xbf16>
    %53 = arith.extf %52 : vector<128x128xbf16> to vector<128x128xf32>
    %cst_24 = arith.constant dense<0.000000e+00> : vector<128xf32>
    %54 = vector.multi_reduction <add>, %53, %cst_24 [0] : vector<128x128xf32> to vector<128xf32>
    %55 = vector.shape_cast %54 : vector<128xf32> to vector<1x128xf32>
    %cst_25 = arith.constant 1.000000e+00 : f32
    %56 = vector.broadcast %cst_25 : f32 to vector<1x128xf32>
    %57 = arith.divf %56, %55 : vector<1x128xf32>
    %cst_26 = arith.constant dense<0.000000e+00> : vector<3x128xf32>
    %58 = tpu.matmul %3, %53, %cst_26 {dimension_numbers = #tpu.dot_dimension_numbers<[1], [0], [0], [1], [0, 0, 1, 1], [], []>} : vector<3x128xf32>, vector<128x128xf32>, vector<3x128xf32> -> vector<3x128xf32>
    %59 = vector.broadcast %57 : vector<1x128xf32> to vector<3x128xf32>
    %60 = arith.mulf %58, %59 : vector<3x128xf32>
    %c0_27 = arith.constant 0 : index
    %c0_28 = arith.constant 0 : index
    %61 = vector.load %arg2[%c0_27, %c0_28] : memref<384x128xf32, #tpu.memory_space<vmem>>, vector<128x128xf32>
    %c128 = arith.constant 128 : index
    %c0_29 = arith.constant 0 : index
    %62 = vector.load %arg2[%c128, %c0_29] : memref<384x128xf32, #tpu.memory_space<vmem>>, vector<128x128xf32>
    %c256 = arith.constant 256 : index
    %c0_30 = arith.constant 0 : index
    %63 = vector.load %arg2[%c256, %c0_30] : memref<384x128xf32, #tpu.memory_space<vmem>>, vector<128x128xf32>
    %cst_31 = arith.constant dense<0.000000e+00> : vector<3x128xf32>
    %64 = tpu.matmul %60, %61, %cst_31 {dimension_numbers = #tpu.dot_dimension_numbers<[1], [1], [0], [0], [0, 0, 1, 0], [], []>} : vector<3x128xf32>, vector<128x128xf32>, vector<3x128xf32> -> vector<3x128xf32>
    %cst_32 = arith.constant dense<0.000000e+00> : vector<3x128xf32>
    %65 = tpu.matmul %60, %62, %cst_32 {dimension_numbers = #tpu.dot_dimension_numbers<[1], [1], [0], [0], [0, 0, 1, 0], [], []>} : vector<3x128xf32>, vector<128x128xf32>, vector<3x128xf32> -> vector<3x128xf32>
    %cst_33 = arith.constant dense<0.000000e+00> : vector<3x128xf32>
    %66 = tpu.matmul %60, %63, %cst_33 {dimension_numbers = #tpu.dot_dimension_numbers<[1], [1], [0], [0], [0, 0, 1, 0], [], []>} : vector<3x128xf32>, vector<128x128xf32>, vector<3x128xf32> -> vector<3x128xf32>
    %67 = arith.subf %65, %64 : vector<3x128xf32>
    %68 = arith.subf %66, %64 : vector<3x128xf32>
    %69 = vector.extract_strided_slice %67 {offsets = [0, 0], sizes = [1, 128], strides = [1, 1]} : vector<3x128xf32> to vector<1x128xf32>
    %70 = vector.extract_strided_slice %67 {offsets = [1, 0], sizes = [1, 128], strides = [1, 1]} : vector<3x128xf32> to vector<1x128xf32>
    %71 = vector.extract_strided_slice %67 {offsets = [2, 0], sizes = [1, 128], strides = [1, 1]} : vector<3x128xf32> to vector<1x128xf32>
    %72 = vector.extract_strided_slice %68 {offsets = [0, 0], sizes = [1, 128], strides = [1, 1]} : vector<3x128xf32> to vector<1x128xf32>
    %73 = vector.extract_strided_slice %68 {offsets = [1, 0], sizes = [1, 128], strides = [1, 1]} : vector<3x128xf32> to vector<1x128xf32>
    %74 = vector.extract_strided_slice %68 {offsets = [2, 0], sizes = [1, 128], strides = [1, 1]} : vector<3x128xf32> to vector<1x128xf32>
    %75 = arith.mulf %70, %74 : vector<1x128xf32>
    %76 = arith.mulf %71, %73 : vector<1x128xf32>
    %77 = arith.subf %75, %76 : vector<1x128xf32>
    %78 = arith.mulf %71, %72 : vector<1x128xf32>
    %79 = arith.mulf %69, %74 : vector<1x128xf32>
    %80 = arith.subf %78, %79 : vector<1x128xf32>
    %81 = arith.mulf %69, %73 : vector<1x128xf32>
    %82 = arith.mulf %70, %72 : vector<1x128xf32>
    %83 = arith.subf %81, %82 : vector<1x128xf32>
    %84 = tpu.concatenate %77, %80, %83 in 0 : vector<1x128xf32>, vector<1x128xf32>, vector<1x128xf32> -> vector<3x128xf32>
    %85 = arith.mulf %84, %84 : vector<3x128xf32>
    %cst_34 = arith.constant dense<0.000000e+00> : vector<128xf32>
    %86 = vector.multi_reduction <add>, %85, %cst_34 [0] : vector<3x128xf32> to vector<128xf32>
    %87 = vector.shape_cast %86 : vector<128xf32> to vector<1x128xf32>
    %88 = math.sqrt %87 : vector<1x128xf32>
    %cst_35 = arith.constant 9.99999996E-13 : f32
    %89 = vector.broadcast %cst_35 : f32 to vector<1x128xf32>
    %90 = arith.maximumf %88, %89 : vector<1x128xf32>
    %91 = vector.broadcast %90 : vector<1x128xf32> to vector<3x128xf32>
    %92 = arith.divf %84, %91 : vector<3x128xf32>
    %93 = arith.subf %66, %65 : vector<3x128xf32>
    %94 = vector.extract_strided_slice %92 {offsets = [0, 0], sizes = [1, 128], strides = [1, 1]} : vector<3x128xf32> to vector<1x128xf32>
    %95 = vector.extract_strided_slice %92 {offsets = [1, 0], sizes = [1, 128], strides = [1, 1]} : vector<3x128xf32> to vector<1x128xf32>
    %96 = vector.extract_strided_slice %92 {offsets = [2, 0], sizes = [1, 128], strides = [1, 1]} : vector<3x128xf32> to vector<1x128xf32>
    %97 = vector.extract_strided_slice %93 {offsets = [0, 0], sizes = [1, 128], strides = [1, 1]} : vector<3x128xf32> to vector<1x128xf32>
    %98 = vector.extract_strided_slice %93 {offsets = [1, 0], sizes = [1, 128], strides = [1, 1]} : vector<3x128xf32> to vector<1x128xf32>
    %99 = vector.extract_strided_slice %93 {offsets = [2, 0], sizes = [1, 128], strides = [1, 1]} : vector<3x128xf32> to vector<1x128xf32>
    %100 = arith.mulf %95, %99 : vector<1x128xf32>
    %101 = arith.mulf %96, %98 : vector<1x128xf32>
    %102 = arith.subf %100, %101 : vector<1x128xf32>
    %103 = arith.mulf %96, %97 : vector<1x128xf32>
    %104 = arith.mulf %94, %99 : vector<1x128xf32>
    %105 = arith.subf %103, %104 : vector<1x128xf32>
    %106 = arith.mulf %94, %98 : vector<1x128xf32>
    %107 = arith.mulf %95, %97 : vector<1x128xf32>
    %108 = arith.subf %106, %107 : vector<1x128xf32>
    %109 = tpu.concatenate %102, %105, %108 in 0 : vector<1x128xf32>, vector<1x128xf32>, vector<1x128xf32> -> vector<3x128xf32>
    %cst_36 = arith.constant 5.000000e-01 : f32
    %110 = vector.broadcast %cst_36 : f32 to vector<3x128xf32>
    %111 = arith.mulf %110, %109 : vector<3x128xf32>
    %112 = arith.subf %64, %66 : vector<3x128xf32>
    %113 = vector.extract_strided_slice %92 {offsets = [0, 0], sizes = [1, 128], strides = [1, 1]} : vector<3x128xf32> to vector<1x128xf32>
    %114 = vector.extract_strided_slice %92 {offsets = [1, 0], sizes = [1, 128], strides = [1, 1]} : vector<3x128xf32> to vector<1x128xf32>
    %115 = vector.extract_strided_slice %92 {offsets = [2, 0], sizes = [1, 128], strides = [1, 1]} : vector<3x128xf32> to vector<1x128xf32>
    %116 = vector.extract_strided_slice %112 {offsets = [0, 0], sizes = [1, 128], strides = [1, 1]} : vector<3x128xf32> to vector<1x128xf32>
    %117 = vector.extract_strided_slice %112 {offsets = [1, 0], sizes = [1, 128], strides = [1, 1]} : vector<3x128xf32> to vector<1x128xf32>
    %118 = vector.extract_strided_slice %112 {offsets = [2, 0], sizes = [1, 128], strides = [1, 1]} : vector<3x128xf32> to vector<1x128xf32>
    %119 = arith.mulf %114, %118 : vector<1x128xf32>
    %120 = arith.mulf %115, %117 : vector<1x128xf32>
    %121 = arith.subf %119, %120 : vector<1x128xf32>
    %122 = arith.mulf %115, %116 : vector<1x128xf32>
    %123 = arith.mulf %113, %118 : vector<1x128xf32>
    %124 = arith.subf %122, %123 : vector<1x128xf32>
    %125 = arith.mulf %113, %117 : vector<1x128xf32>
    %126 = arith.mulf %114, %116 : vector<1x128xf32>
    %127 = arith.subf %125, %126 : vector<1x128xf32>
    %128 = tpu.concatenate %121, %124, %127 in 0 : vector<1x128xf32>, vector<1x128xf32>, vector<1x128xf32> -> vector<3x128xf32>
    %cst_37 = arith.constant 5.000000e-01 : f32
    %129 = vector.broadcast %cst_37 : f32 to vector<3x128xf32>
    %130 = arith.mulf %129, %128 : vector<3x128xf32>
    %131 = arith.subf %65, %64 : vector<3x128xf32>
    %132 = vector.extract_strided_slice %92 {offsets = [0, 0], sizes = [1, 128], strides = [1, 1]} : vector<3x128xf32> to vector<1x128xf32>
    %133 = vector.extract_strided_slice %92 {offsets = [1, 0], sizes = [1, 128], strides = [1, 1]} : vector<3x128xf32> to vector<1x128xf32>
    %134 = vector.extract_strided_slice %92 {offsets = [2, 0], sizes = [1, 128], strides = [1, 1]} : vector<3x128xf32> to vector<1x128xf32>
    %135 = vector.extract_strided_slice %131 {offsets = [0, 0], sizes = [1, 128], strides = [1, 1]} : vector<3x128xf32> to vector<1x128xf32>
    %136 = vector.extract_strided_slice %131 {offsets = [1, 0], sizes = [1, 128], strides = [1, 1]} : vector<3x128xf32> to vector<1x128xf32>
    %137 = vector.extract_strided_slice %131 {offsets = [2, 0], sizes = [1, 128], strides = [1, 1]} : vector<3x128xf32> to vector<1x128xf32>
    %138 = arith.mulf %133, %137 : vector<1x128xf32>
    %139 = arith.mulf %134, %136 : vector<1x128xf32>
    %140 = arith.subf %138, %139 : vector<1x128xf32>
    %141 = arith.mulf %134, %135 : vector<1x128xf32>
    %142 = arith.mulf %132, %137 : vector<1x128xf32>
    %143 = arith.subf %141, %142 : vector<1x128xf32>
    %144 = arith.mulf %132, %136 : vector<1x128xf32>
    %145 = arith.mulf %133, %135 : vector<1x128xf32>
    %146 = arith.subf %144, %145 : vector<1x128xf32>
    %147 = tpu.concatenate %140, %143, %146 in 0 : vector<1x128xf32>, vector<1x128xf32>, vector<1x128xf32> -> vector<3x128xf32>
    %cst_38 = arith.constant 5.000000e-01 : f32
    %148 = vector.broadcast %cst_38 : f32 to vector<3x128xf32>
    %149 = arith.mulf %148, %147 : vector<3x128xf32>
    %150 = vector.extract_strided_slice %65 {offsets = [0, 0], sizes = [1, 128], strides = [1, 1]} : vector<3x128xf32> to vector<1x128xf32>
    %151 = vector.extract_strided_slice %65 {offsets = [1, 0], sizes = [1, 128], strides = [1, 1]} : vector<3x128xf32> to vector<1x128xf32>
    %152 = vector.extract_strided_slice %65 {offsets = [2, 0], sizes = [1, 128], strides = [1, 1]} : vector<3x128xf32> to vector<1x128xf32>
    %153 = vector.extract_strided_slice %66 {offsets = [0, 0], sizes = [1, 128], strides = [1, 1]} : vector<3x128xf32> to vector<1x128xf32>
    %154 = vector.extract_strided_slice %66 {offsets = [1, 0], sizes = [1, 128], strides = [1, 1]} : vector<3x128xf32> to vector<1x128xf32>
    %155 = vector.extract_strided_slice %66 {offsets = [2, 0], sizes = [1, 128], strides = [1, 1]} : vector<3x128xf32> to vector<1x128xf32>
    %156 = arith.mulf %151, %155 : vector<1x128xf32>
    %157 = arith.mulf %152, %154 : vector<1x128xf32>
    %158 = arith.subf %156, %157 : vector<1x128xf32>
    %159 = arith.mulf %152, %153 : vector<1x128xf32>
    %160 = arith.mulf %150, %155 : vector<1x128xf32>
    %161 = arith.subf %159, %160 : vector<1x128xf32>
    %162 = arith.mulf %150, %154 : vector<1x128xf32>
    %163 = arith.mulf %151, %153 : vector<1x128xf32>
    %164 = arith.subf %162, %163 : vector<1x128xf32>
    %165 = tpu.concatenate %158, %161, %164 in 0 : vector<1x128xf32>, vector<1x128xf32>, vector<1x128xf32> -> vector<3x128xf32>
    %166 = vector.extract_strided_slice %66 {offsets = [0, 0], sizes = [1, 128], strides = [1, 1]} : vector<3x128xf32> to vector<1x128xf32>
    %167 = vector.extract_strided_slice %66 {offsets = [1, 0], sizes = [1, 128], strides = [1, 1]} : vector<3x128xf32> to vector<1x128xf32>
    %168 = vector.extract_strided_slice %66 {offsets = [2, 0], sizes = [1, 128], strides = [1, 1]} : vector<3x128xf32> to vector<1x128xf32>
    %169 = vector.extract_strided_slice %64 {offsets = [0, 0], sizes = [1, 128], strides = [1, 1]} : vector<3x128xf32> to vector<1x128xf32>
    %170 = vector.extract_strided_slice %64 {offsets = [1, 0], sizes = [1, 128], strides = [1, 1]} : vector<3x128xf32> to vector<1x128xf32>
    %171 = vector.extract_strided_slice %64 {offsets = [2, 0], sizes = [1, 128], strides = [1, 1]} : vector<3x128xf32> to vector<1x128xf32>
    %172 = arith.mulf %167, %171 : vector<1x128xf32>
    %173 = arith.mulf %168, %170 : vector<1x128xf32>
    %174 = arith.subf %172, %173 : vector<1x128xf32>
    %175 = arith.mulf %168, %169 : vector<1x128xf32>
    %176 = arith.mulf %166, %171 : vector<1x128xf32>
    %177 = arith.subf %175, %176 : vector<1x128xf32>
    %178 = arith.mulf %166, %170 : vector<1x128xf32>
    %179 = arith.mulf %167, %169 : vector<1x128xf32>
    %180 = arith.subf %178, %179 : vector<1x128xf32>
    %181 = tpu.concatenate %174, %177, %180 in 0 : vector<1x128xf32>, vector<1x128xf32>, vector<1x128xf32> -> vector<3x128xf32>
    %182 = vector.extract_strided_slice %64 {offsets = [0, 0], sizes = [1, 128], strides = [1, 1]} : vector<3x128xf32> to vector<1x128xf32>
    %183 = vector.extract_strided_slice %64 {offsets = [1, 0], sizes = [1, 128], strides = [1, 1]} : vector<3x128xf32> to vector<1x128xf32>
    %184 = vector.extract_strided_slice %64 {offsets = [2, 0], sizes = [1, 128], strides = [1, 1]} : vector<3x128xf32> to vector<1x128xf32>
    %185 = vector.extract_strided_slice %65 {offsets = [0, 0], sizes = [1, 128], strides = [1, 1]} : vector<3x128xf32> to vector<1x128xf32>
    %186 = vector.extract_strided_slice %65 {offsets = [1, 0], sizes = [1, 128], strides = [1, 1]} : vector<3x128xf32> to vector<1x128xf32>
    %187 = vector.extract_strided_slice %65 {offsets = [2, 0], sizes = [1, 128], strides = [1, 1]} : vector<3x128xf32> to vector<1x128xf32>
    %188 = arith.mulf %183, %187 : vector<1x128xf32>
    %189 = arith.mulf %184, %186 : vector<1x128xf32>
    %190 = arith.subf %188, %189 : vector<1x128xf32>
    %191 = arith.mulf %184, %185 : vector<1x128xf32>
    %192 = arith.mulf %182, %187 : vector<1x128xf32>
    %193 = arith.subf %191, %192 : vector<1x128xf32>
    %194 = arith.mulf %182, %186 : vector<1x128xf32>
    %195 = arith.mulf %183, %185 : vector<1x128xf32>
    %196 = arith.subf %194, %195 : vector<1x128xf32>
    %197 = tpu.concatenate %190, %193, %196 in 0 : vector<1x128xf32>, vector<1x128xf32>, vector<1x128xf32> -> vector<3x128xf32>
    %198 = arith.mulf %64, %165 : vector<3x128xf32>
    %cst_39 = arith.constant dense<0.000000e+00> : vector<128xf32>
    %199 = vector.multi_reduction <add>, %198, %cst_39 [0] : vector<3x128xf32> to vector<128xf32>
    %200 = vector.shape_cast %199 : vector<128xf32> to vector<1x128xf32>
    %cst_40 = arith.constant 6.000000e+00 : f32
    %201 = vector.broadcast %cst_40 : f32 to vector<1x128xf32>
    %202 = arith.divf %200, %201 : vector<1x128xf32>
    %c0_41 = arith.constant 0 : index
    %c0_42 = arith.constant 0 : index
    %203 = vector.load %arg3[%c0_41, %c0_42] : memref<2x128xf32, #tpu.memory_space<vmem>>, vector<2x128xf32>
    %cst_43 = arith.constant dense<0.000000e+00> : vector<1x2xf32>
    %204 = tpu.matmul %202, %203, %cst_43 {dimension_numbers = #tpu.dot_dimension_numbers<[1], [1], [0], [0], [0, 0, 1, 0], [], []>} : vector<1x128xf32>, vector<2x128xf32>, vector<1x2xf32> -> vector<1x2xf32>
    %cst_44 = arith.constant 9.99999997E-7 : f32
    %205 = vector.broadcast %cst_44 : f32 to vector<1x2xf32>
    %206 = arith.maximumf %204, %205 : vector<1x2xf32>
    %cst_45 = arith.constant 1.04289448 : f32
    %207 = vector.broadcast %cst_45 : f32 to vector<1x2xf32>
    %208 = arith.divf %207, %206 : vector<1x2xf32>
    %209 = math.log %208 : vector<1x2xf32>
    %cst_46 = arith.constant 2.500000e+03 : f32
    %210 = vector.broadcast %cst_46 : f32 to vector<1x2xf32>
    %211 = arith.mulf %210, %209 : vector<1x2xf32>
    %cst_47 = arith.constant dense<0.000000e+00> : vector<1x128xf32>
    %212 = tpu.matmul %211, %203, %cst_47 {dimension_numbers = #tpu.dot_dimension_numbers<[1], [0], [0], [1], [0, 0, 1, 1], [], []>} : vector<1x2xf32>, vector<2x128xf32>, vector<1x128xf32> -> vector<1x128xf32>
    %cst_48 = arith.constant 6.000000e+00 : f32
    %213 = vector.broadcast %cst_48 : f32 to vector<3x128xf32>
    %214 = arith.divf %165, %213 : vector<3x128xf32>
    %215 = vector.broadcast %212 : vector<1x128xf32> to vector<3x128xf32>
    %216 = arith.mulf %215, %214 : vector<3x128xf32>
    %cst_49 = arith.constant 1.100000e-02 : f32
    %217 = vector.broadcast %cst_49 : f32 to vector<3x128xf32>
    %218 = arith.mulf %217, %111 : vector<3x128xf32>
    %219 = arith.subf %216, %218 : vector<3x128xf32>
    %cst_50 = arith.constant 6.000000e+00 : f32
    %220 = vector.broadcast %cst_50 : f32 to vector<3x128xf32>
    %221 = arith.divf %181, %220 : vector<3x128xf32>
    %222 = vector.broadcast %212 : vector<1x128xf32> to vector<3x128xf32>
    %223 = arith.mulf %222, %221 : vector<3x128xf32>
    %cst_51 = arith.constant 1.100000e-02 : f32
    %224 = vector.broadcast %cst_51 : f32 to vector<3x128xf32>
    %225 = arith.mulf %224, %130 : vector<3x128xf32>
    %226 = arith.subf %223, %225 : vector<3x128xf32>
    %cst_52 = arith.constant 6.000000e+00 : f32
    %227 = vector.broadcast %cst_52 : f32 to vector<3x128xf32>
    %228 = arith.divf %197, %227 : vector<3x128xf32>
    %229 = vector.broadcast %212 : vector<1x128xf32> to vector<3x128xf32>
    %230 = arith.mulf %229, %228 : vector<3x128xf32>
    %cst_53 = arith.constant 1.100000e-02 : f32
    %231 = vector.broadcast %cst_53 : f32 to vector<3x128xf32>
    %232 = arith.mulf %231, %149 : vector<3x128xf32>
    %233 = arith.subf %230, %232 : vector<3x128xf32>
    %cst_54 = arith.constant dense<0.000000e+00> : vector<3x128xf32>
    %234 = tpu.matmul %219, %61, %cst_54 {dimension_numbers = #tpu.dot_dimension_numbers<[1], [0], [0], [1], [0, 0, 1, 1], [], []>} : vector<3x128xf32>, vector<128x128xf32>, vector<3x128xf32> -> vector<3x128xf32>
    %cst_55 = arith.constant dense<0.000000e+00> : vector<3x128xf32>
    %235 = tpu.matmul %226, %62, %cst_55 {dimension_numbers = #tpu.dot_dimension_numbers<[1], [0], [0], [1], [0, 0, 1, 1], [], []>} : vector<3x128xf32>, vector<128x128xf32>, vector<3x128xf32> -> vector<3x128xf32>
    %236 = arith.addf %234, %235 : vector<3x128xf32>
    %cst_56 = arith.constant dense<0.000000e+00> : vector<3x128xf32>
    %237 = tpu.matmul %233, %63, %cst_56 {dimension_numbers = #tpu.dot_dimension_numbers<[1], [0], [0], [1], [0, 0, 1, 1], [], []>} : vector<3x128xf32>, vector<128x128xf32>, vector<3x128xf32> -> vector<3x128xf32>
    %238 = arith.addf %236, %237 : vector<3x128xf32>
    %cst_57 = arith.constant dense<0.000000e+00> : vector<3x128xf32>
    %239 = tpu.matmul %238, %53, %cst_57 {dimension_numbers = #tpu.dot_dimension_numbers<[1], [0], [0], [1], [0, 0, 1, 1], [], []>} : vector<3x128xf32>, vector<128x128xf32>, vector<3x128xf32> -> vector<3x128xf32>
    %240 = vector.broadcast %57 : vector<1x128xf32> to vector<3x128xf32>
    %241 = arith.mulf %239, %240 : vector<3x128xf32>
    %cst_58 = arith.constant 1.000000e-03 : f32
    %242 = vector.broadcast %cst_58 : f32 to vector<3x128xf32>
    %243 = arith.mulf %242, %241 : vector<3x128xf32>
    %244 = arith.addf %60, %243 : vector<3x128xf32>
    %c0_59 = arith.constant 0 : index
    %c0_60 = arith.constant 0 : index
    %245 = vector.load %arg7[%c0_59, %c0_60] : memref<3x128xf32, #tpu.memory_space<vmem>>, vector<3x128xf32>
    tpu.vector_store %arg7[%c0_59, %c0_60], %244 {strides = array<i32>} : memref<3x128xf32, #tpu.memory_space<vmem>>, vector<3x128xf32>,
    return
  }
  func.func @transform_0(%arg0: i32) -> (i32, i32) {
    %c0_i32 = arith.constant 0 : i32
    %c0_i32_0 = arith.constant 0 : i32
    %c0_i32_1 = arith.constant 0 : i32
    return %c0_i32, %c0_i32_0 : i32, i32
  }
  func.func @transform_1(%arg0: i32) -> (i32, i32) {
    %c0_i32 = arith.constant 0 : i32
    %c0_i32_0 = arith.constant 0 : i32
    %c0_i32_1 = arith.constant 0 : i32
    return %c0_i32, %c0_i32_0 : i32, i32
  }
  func.func @transform_2(%arg0: i32) -> (i32, i32) {
    %c0_i32 = arith.constant 0 : i32
    %c0_i32_0 = arith.constant 0 : i32
    %c0_i32_1 = arith.constant 0 : i32
    return %c0_i32, %c0_i32_0 : i32, i32
  }
  func.func @transform_3(%arg0: i32) -> (i32, i32) {
    %c0_i32 = arith.constant 0 : i32
    %c0_i32_0 = arith.constant 0 : i32
    %c0_i32_1 = arith.constant 0 : i32
    return %c0_i32, %c0_i32_0 : i32, i32
  }
  func.func @transform_4(%arg0: i32) -> (i32, i32) {
    %c0_i32 = arith.constant 0 : i32
    %c0_i32_0 = arith.constant 0 : i32
    %c0_i32_1 = arith.constant 0 : i32
    return %c0_i32, %c0_i32_0 : i32, i32
  }
  func.func @transform_5(%arg0: i32) -> (i32, i32, i32) {
    %c0_i32 = arith.constant 0 : i32
    %c0_i32_0 = arith.constant 0 : i32
    %c0_i32_1 = arith.constant 0 : i32
    return %arg0, %c0_i32, %c0_i32_0 : i32, i32, i32
  }
  func.func @transform_6(%arg0: i32) -> (i32, i32) {
    %c0_i32 = arith.constant 0 : i32
    %c0_i32_0 = arith.constant 0 : i32
    %c0_i32_1 = arith.constant 0 : i32
    return %c0_i32, %c0_i32_0 : i32, i32
  }
}

</mosaic_0001>

<llo_original>
// kernel: _soap_bubble_run.1
$region0: #{_soap_bubble_run.1}
  #allocation0 [shape = 'u32[]', space=smem, size = 0x4, offset = 0x4, fixed_abs, tag = 'smem constant byte address 0x4 - core index']
  #allocation1 [shape = 'u32[144,128]{1,0:T(1,128)}', space=vmem, size = 0x12000, scoped, tag = 'internal scratch']
  %s0 = inlined_call_operand.vmem [shape: f32[3,128], index: 0, kind: input, shape index: {}]
  %s1 = inlined_call_operand.vmem [shape: f32[384,128], index: 1, kind: input, shape index: {}]
  %s2 = inlined_call_operand.vmem [shape: f32[2,128], index: 2, kind: input, shape index: {}]
  %s3 = inlined_call_operand.vmem [shape: f32[128,128], index: 3, kind: input, shape index: {}]
  %s4 = inlined_call_operand.vmem [shape: bf16[128,128], index: 4, kind: input, shape index: {}]
  %s5 = inlined_call_operand.vmem [shape: f32[3,128,128], index: 5, kind: output, shape index: {0}]
  %s6 = inlined_call_operand.hbm [shape: f32[3,128], index: 6, kind: output, shape index: {1}]
  %7 = xla_tuple %s5, %s6
  %s8 = sld [smem:[#allocation0]]
  $region65: #{_soap_bubble_run.1} parent=0
    _
  %s10 = ssub.s32 1, %s8
  %s11 = scalar_select 0, %s10, %s8
  $region1: #{_soap_bubble_run.1} parent=0
    #allocation2 [shape = 'u8[2048]{0}', space=vmem, size = 0x800, scoped, tag = 'output window, operand 1, single buffered']
    #allocation3 [shape = 's32[2]{0}', space=sflag, size = 0x8, scoped, tag = 'scoped memory for _soap_bubble_run.1']
    %12 = vsyncpa [#allocation3], 0
    loop: start=0, step=1, limit=5
    $region2: #{_soap_bubble_run.1} parent=1 // loop_pre_header
      _
    $region3: #{_soap_bubble_run.1} parent=1 // loop_header
      %s14 = sphi 0, %s18
      %p15 = scmp.ge.s32.totalorder %s14, 5
      %s22 = sphi 0, %s22
      %s24 = sphi 0, %s22
      %s25 = sphi 0, %s24
      %s39 = sphi 0, %s25
      %s43 = sphi 0, %s43
      %s45 = sphi 0, %s43
      %s46 = sphi 0, %s45
      %s60 = sphi 0, %s46
      %s64 = sphi 0, %s64
      %s66 = sphi 0, %s64
      %s67 = sphi 0, %s66
      %s81 = sphi 0, %s67
      %s85 = sphi 0, %s85
      %s87 = sphi 0, %s85
      %s88 = sphi 0, %s87
      %s102 = sphi 0, %s88
      %s106 = sphi 0, %s106
      %s108 = sphi 0, %s106
      %s109 = sphi 0, %s108
      %s123 = sphi 0, %s109
      %s129 = sphi 0, %s131
      %s132 = sphi 0, %s129
      %s133 = sphi 0, %s132
      %s149 = sphi 0, %s133
      %s153 = sphi 0, %s153
      %s155 = sphi 0, %s153
      %s156 = sphi 0, %s155
      %s170 = sphi 0, %s156
    $region4: #{_soap_bubble_run.1} parent=1 // loop_header_branch
      %17 = sbr.rel (%p15) target = $region8
    $region5: #{_soap_bubble_run.1} parent=1 // loop_body
      %s19 = ssub.s32 %s14, 1
      %s20 = ssub.s32 %s14, 2
      %s21 = sadd.s32 %s14, 1
      %s23 = sadd.s32 %s22, 1
      %p26 = scmp.eq.s32.totalorder %s14, 2
      %p27 = scmp.ne.s32.totalorder %s22, %s24
      %p28 = scmp.eq.s32.totalorder %s14, 0
      %p29 = por %p27, %p28
      %p30 = scmp.ne.s32.totalorder %s22, %s24
      %p31 = scmp.eq.s32.totalorder %s19, 2
      %p32 = por %p30, %p31
      %p33 = scmp.ne.s32.totalorder %s24, %s25
      %p34 = scmp.eq.s32.totalorder %s19, 0
      %p35 = por %p33, %p34
      %p36 = scmp.ne.s32.totalorder %s24, %s25
      %p37 = scmp.eq.s32.totalorder %s20, 2
      %p38 = por %p36, %p37
      %p40 = scmp.ne.s32.totalorder %s25, %s39
      %p41 = scmp.eq.s32.totalorder %s20, 0
      %p42 = por %p40, %p41
      %s44 = sadd.s32 %s43, 1
      %p47 = scmp.eq.s32.totalorder %s14, 2
      %p48 = scmp.ne.s32.totalorder %s43, %s45
      %p49 = scmp.eq.s32.totalorder %s14, 0
      %p50 = por %p48, %p49
      %p51 = scmp.ne.s32.totalorder %s43, %s45
      %p52 = scmp.eq.s32.totalorder %s19, 2
      %p53 = por %p51, %p52
      %p54 = scmp.ne.s32.totalorder %s45, %s46
      %p55 = scmp.eq.s32.totalorder %s19, 0
      %p56 = por %p54, %p55
      %p57 = scmp.ne.s32.totalorder %s45, %s46
      %p58 = scmp.eq.s32.totalorder %s20, 2
      %p59 = por %p57, %p58
      %p61 = scmp.ne.s32.totalorder %s46, %s60
      %p62 = scmp.eq.s32.totalorder %s20, 0
      %p63 = por %p61, %p62
      %s65 = sadd.s32 %s64, 1
      %p68 = scmp.eq.s32.totalorder %s14, 2
      %p69 = scmp.ne.s32.totalorder %s64, %s66
      %p70 = scmp.eq.s32.totalorder %s14, 0
      %p71 = por %p69, %p70
      %p72 = scmp.ne.s32.totalorder %s64, %s66
      %p73 = scmp.eq.s32.totalorder %s19, 2
      %p74 = por %p72, %p73
      %p75 = scmp.ne.s32.totalorder %s66, %s67
      %p76 = scmp.eq.s32.totalorder %s19, 0
      %p77 = por %p75, %p76
      %p78 = scmp.ne.s32.totalorder %s66, %s67
      %p79 = scmp.eq.s32.totalorder %s20, 2
      %p80 = por %p78, %p79
      %p82 = scmp.ne.s32.totalorder %s67, %s81
      %p83 = scmp.eq.s32.totalorder %s20, 0
      %p84 = por %p82, %p83
      %s86 = sadd.s32 %s85, 1
      %p89 = scmp.eq.s32.totalorder %s14, 2
      %p90 = scmp.ne.s32.totalorder %s85, %s87
      %p91 = scmp.eq.s32.totalorder %s14, 0
      %p92 = por %p90, %p91
      %p93 = scmp.ne.s32.totalorder %s85, %s87
      %p94 = scmp.eq.s32.totalorder %s19, 2
      %p95 = por %p93, %p94
      %p96 = scmp.ne.s32.totalorder %s87, %s88
      %p97 = scmp.eq.s32.totalorder %s19, 0
      %p98 = por %p96, %p97
      %p99 = scmp.ne.s32.totalorder %s87, %s88
      %p100 = scmp.eq.s32.totalorder %s20, 2
      %p101 = por %p99, %p100
      %p103 = scmp.ne.s32.totalorder %s88, %s102
      %p104 = scmp.eq.s32.totalorder %s20, 0
      %p105 = por %p103, %p104
      %s107 = sadd.s32 %s106, 1
      %p110 = scmp.eq.s32.totalorder %s14, 2
      %p111 = scmp.ne.s32.totalorder %s106, %s108
      %p112 = scmp.eq.s32.totalorder %s14, 0
      %p113 = por %p111, %p112
      %p114 = scmp.ne.s32.totalorder %s106, %s108
      %p115 = scmp.eq.s32.totalorder %s19, 2
      %p116 = por %p114, %p115
      %p117 = scmp.ne.s32.totalorder %s108, %s109
      %p118 = scmp.eq.s32.totalorder %s19, 0
      %p119 = por %p117, %p118
      %p120 = scmp.ne.s32.totalorder %s108, %s109
      %p121 = scmp.eq.s32.totalorder %s20, 2
      %p122 = por %p120, %p121
      %p124 = scmp.ne.s32.totalorder %s109, %s123
      %p125 = scmp.eq.s32.totalorder %s20, 0
      %p126 = por %p124, %p125
      %s127 = ssub.s32 %s14, %s21
      %p128 = scmp.eq.s32.totalorder %s127, 0
      %s130 = sadd.s32 %s129, 1
      %s131 = scalar_select %p128, %s129, %s130
      %p134 = pneg %p128
      %p135 = scmp.eq.s32.totalorder %s14, 2
      %p136 = por %p134, %p135
      %p137 = scmp.ne.s32.totalorder %s129, %s132
      %p138 = scmp.eq.s32.totalorder %s14, 0
      %p139 = por %p137, %p138
      %p140 = scmp.ne.s32.totalorder %s129, %s132
      %p141 = scmp.eq.s32.totalorder %s19, 2
      %p142 = por %p140, %p141
      %p143 = scmp.ne.s32.totalorder %s132, %s133
      %p144 = scmp.eq.s32.totalorder %s19, 0
      %p145 = por %p143, %p144
      %p146 = scmp.ne.s32.totalorder %s132, %s133
      %p147 = scmp.eq.s32.totalorder %s20, 2
      %p148 = por %p146, %p147
      %p150 = scmp.ne.s32.totalorder %s133, %s149
      %p151 = scmp.eq.s32.totalorder %s20, 0
      %p152 = por %p150, %p151
      %s154 = sadd.s32 %s153, 1
      %p157 = scmp.eq.s32.totalorder %s14, 2
      %p158 = scmp.ne.s32.totalorder %s153, %s155
      %p159 = scmp.eq.s32.totalorder %s14, 0
      %p160 = por %p158, %p159
      %p161 = scmp.ne.s32.totalorder %s153, %s155
      %p162 = scmp.eq.s32.totalorder %s19, 2
      %p163 = por %p161, %p162
      %p164 = scmp.ne.s32.totalorder %s155, %s156
      %p165 = scmp.eq.s32.totalorder %s19, 0
      %p166 = por %p164, %p165
      %p167 = scmp.ne.s32.totalorder %s155, %s156
      %p168 = scmp.eq.s32.totalorder %s20, 2
      %p169 = por %p167, %p168
      %p171 = scmp.ne.s32.totalorder %s156, %s170
      %p172 = scmp.eq.s32.totalorder %s20, 0
      %p173 = por %p171, %p172
      %p174 = scmp.le.s32.totalorder 1, %s14
      %p175 = scmp.lt.s32.totalorder %s14, 4
      %p176 = pnand %p174, %p175
      %p177 = pneg %p176
      // Predicated region
      $region9: #{_soap_bubble_run.1} parent=5 // pred_check
        _
      $region10: #{_soap_bubble_run.1} parent=5 // pred_check_branch
        %179 = sbr.rel (%p176) target = $region12
      $region11: #{_soap_bubble_run.1} parent=5 // pred_region
        %s180 = ssub.s32 %s14, 1
        // Predicated region
        $region13: #{_soap_bubble_run.1} parent=11 // pred_check
          %p181 = pneg %p35
        $region14: #{_soap_bubble_run.1} parent=11 // pred_check_branch
          %183 = sbr.rel (%p181) target = $region16
        $region15: #{_soap_bubble_run.1} parent=11 // pred_region
          _
        $region16: #{_soap_bubble_run.1} parent=11 // pred_fallthru
          _
        // Predicated region
        $region17: #{_soap_bubble_run.1} parent=11 // pred_check
          %p184 = pneg %p56
        $region18: #{_soap_bubble_run.1} parent=11 // pred_check_branch
          %186 = sbr.rel (%p184) target = $region20
        $region19: #{_soap_bubble_run.1} parent=11 // pred_region
          _
        $region20: #{_soap_bubble_run.1} parent=11 // pred_fallthru
          _
        // Predicated region
        $region21: #{_soap_bubble_run.1} parent=11 // pred_check
          %p187 = pneg %p77
        $region22: #{_soap_bubble_run.1} parent=11 // pred_check_branch
          %189 = sbr.rel (%p187) target = $region24
        $region23: #{_soap_bubble_run.1} parent=11 // pred_region
          _
        $region24: #{_soap_bubble_run.1} parent=11 // pred_fallthru
          _
        // Predicated region
        $region25: #{_soap_bubble_run.1} parent=11 // pred_check
          %p190 = pneg %p98
        $region26: #{_soap_bubble_run.1} parent=11 // pred_check_branch
          %192 = sbr.rel (%p190) target = $region28
        $region27: #{_soap_bubble_run.1} parent=11 // pred_region
          _
        $region28: #{_soap_bubble_run.1} parent=11 // pred_fallthru
          _
        // Predicated region
        $region29: #{_soap_bubble_run.1} parent=11 // pred_check
          %p193 = pneg %p119
        $region30: #{_soap_bubble_run.1} parent=11 // pred_check_branch
          %195 = sbr.rel (%p193) target = $region32
        $region31: #{_soap_bubble_run.1} parent=11 // pred_region
          _
        $region32: #{_soap_bubble_run.1} parent=11 // pred_fallthru
          _
      $region12: #{_soap_bubble_run.1} parent=5 // pred_fallthru
        _
      %p196 = scmp.lt.s32.totalorder %s14, 3
      // Predicated region
      $region33: #{_soap_bubble_run.1} parent=5 // pred_check
        %p197 = pneg %p196
      $region34: #{_soap_bubble_run.1} parent=5 // pred_check_branch
        %199 = sbr.rel (%p197) target = $region36
      $region35: #{_soap_bubble_run.1} parent=5 // pred_region
        _
      $region36: #{_soap_bubble_run.1} parent=5 // pred_fallthru
        _
      %p200 = scmp.le.s32.totalorder 1, %s14
      %p201 = scmp.lt.s32.totalorder %s14, 4
      %p202 = pnand %p200, %p201
      %p203 = pneg %p202
      // Predicated region
      $region37: #{_soap_bubble_run.1} parent=5 // pred_check
        _
      $region38: #{_soap_bubble_run.1} parent=5 // pred_check_branch
        %205 = sbr.rel (%p202) target = $region40
      $region39: #{_soap_bubble_run.1} parent=5 // pred_region
        %s206 = ssub.s32 %s14, 1
        %p207 = pneg %p35
        %p208 = pneg %p32
        %p209 = pneg %p56
        %p210 = pneg %p53
        %p211 = pneg %p77
        %p212 = pneg %p74
        %p213 = pneg %p98
        %p214 = pneg %p95
        %p215 = pneg %p119
        %p216 = pneg %p116
        %p217 = pneg %p145
        %p218 = pneg %p142
        %p219 = scmp.lt.s32.totalorder %s19, 2
        %s220 = scalar_select %p219, %s19, 2
        %s221 = smul.addr %s220, 16
        %s222 = smul.addr %s221, 8
        %s223 = scalar_lea.vmem %s5, %s222
        %p224 = pneg %p166
        %p225 = pneg %p163
        %p226 = scmp.lt.s32.totalorder %s19, 2
        %s227 = scalar_select %p226, %s19, 2
        %s228 = smul.addr %s227, 16
        %s229 = smul.addr %s228, 8
        %s230 = scalar_lea.vmem %s5, %s229
        %p232 = scmp.eq.s32.totalorder %s19, 0
        // Predicated region
        $region41: #{_soap_bubble_run.1} parent=39 // pred_check
          %p233 = pneg %p232
        $region42: #{_soap_bubble_run.1} parent=39 // pred_check_branch
          %235 = sbr.rel (%p233) target = $region44
        $region43: #{_soap_bubble_run.1} parent=39 // pred_region
          %v236 = vld [vmem:[%s0] sm:$0x7]
          %237 = vst [vmem:[#allocation2] sm:$0x7] %v236
        $region44: #{_soap_bubble_run.1} parent=39 // pred_fallthru
          _
        %v238 = vld [vmem:[#allocation2] sm:$0x7]
        %239 = vxpose.xlu0.b32.start [1/16] %v238, 128
        %240 = vxpose.xlu0.b32.cont [2/16] 0.0, 128
        %241 = vxpose.xlu0.b32.cont [3/16] 0.0, 128
        %242 = vxpose.xlu0.b32.cont [4/16] 0.0, 128
        %243 = vxpose.xlu0.b32.cont [5/16] 0.0, 128
        %244 = vxpose.xlu0.b32.cont [6/16] 0.0, 128
        %245 = vxpose.xlu0.b32.cont [7/16] 0.0, 128
        %246 = vxpose.xlu0.b32.cont [8/16] 0.0, 128
        %247 = vxpose.xlu0.b32.cont [9/16] 0.0, 128
        %248 = vxpose.xlu0.b32.cont [10/16] 0.0, 128
        %249 = vxpose.xlu0.b32.cont [11/16] 0.0, 128
        %250 = vxpose.xlu0.b32.cont [12/16] 0.0, 128
        %251 = vxpose.xlu0.b32.cont [13/16] 0.0, 128
        %252 = vxpose.xlu0.b32.cont [14/16] 0.0, 128
        %253 = vxpose.xlu0.b32.cont [15/16] 0.0, 128
        %254 = vxpose.xlu0.b32.end [16/16] 0.0, 128
        %v255 = vpop.trf.xlu0
        %v256 = vpop.trf.xlu0
        %v257 = vpop.trf.xlu0
        %v258 = vpop.trf.xlu0
        %v259 = vpop.trf.xlu0
        %v260 = vpop.trf.xlu0
        %v261 = vpop.trf.xlu0
        %v262 = vpop.trf.xlu0
        %v263 = vpop.trf.xlu0
        %v264 = vpop.trf.xlu0
        %v265 = vpop.trf.xlu0
        %v266 = vpop.trf.xlu0
        %v267 = vpop.trf.xlu0
        %v268 = vpop.trf.xlu0
        %v269 = vpop.trf.xlu0
        %v270 = vpop.trf.xlu0
        %vm271 = vcmask 23552
        %v273 = vsel %vm271, %v255, 0
        %v276 = vsel %vm271, %v256, 0
        %v279 = vsel %vm271, %v257, 0
        %v282 = vsel %vm271, %v258, 0
        %v285 = vsel %vm271, %v259, 0
        %v288 = vsel %vm271, %v260, 0
        %v291 = vsel %vm271, %v261, 0
        %v294 = vsel %vm271, %v262, 0
        %v297 = vsel %vm271, %v263, 0
        %v300 = vsel %vm271, %v264, 0
        %v303 = vsel %vm271, %v265, 0
        %v306 = vsel %vm271, %v266, 0
        %v309 = vsel %vm271, %v267, 0
        %v312 = vsel %vm271, %v268, 0
        %v315 = vsel %vm271, %v269, 0
        %v318 = vsel %vm271, %v270, 0
        %vm320 = vcmask 1042432
        %v322 = vsel %vm320, %v238, 0
        %324 = vmatprep.subr.mxu0 0.0
        %325 = vmatpush1.msra.mxu0 0.0
        %326 = vmatprep.subr.mxu0 0.0
        %327 = vmatpush1.msra.mxu0 0.0
        %328 = vmatprep.subr.mxu0 0.0
        %329 = vmatpush1.msra.mxu0 0.0
        %330 = vmatprep.subr.mxu0 0.0
        %331 = vmatpush1.msra.mxu0 0.0
        %332 = vmatprep.subr.mxu0 0.0
        %333 = vmatpush1.msra.mxu0 0.0
        %334 = vmatprep.subr.mxu0 0.0
        %335 = vmatpush1.msra.mxu0 0.0
        %336 = vmatprep.subr.mxu0 0.0
        %337 = vmatpush1.msra.mxu0 0.0
        %338 = vmatprep.subr.mxu0 0.0
        %339 = vmatpush1.msra.mxu0 0.0
        %340 = vmatprep.subr.mxu0 0.0
        %341 = vmatpush1.msra.mxu0 0.0
        %342 = vmatprep.subr.mxu0 0.0
        %343 = vmatpush1.msra.mxu0 0.0
        %344 = vmatprep.subr.mxu0 0.0
        %345 = vmatpush1.msra.mxu0 0.0
        %346 = vmatprep.subr.mxu0 0.0
        %347 = vmatpush1.msra.mxu0 0.0
        %348 = vmatprep.subr.mxu0 0.0
        %349 = vmatpush1.msra.mxu0 0.0
        %350 = vmatprep.subr.mxu0 0.0
        %351 = vmatpush1.msra.mxu0 0.0
        %352 = vmatprep.subr.mxu0 0.0
        %353 = vmatpush1.msra.mxu0 0.0
        %354 = vmatprep.subr.mxu0 0.0
        %355 = vmatpush1.msra.mxu0 %v322
        %356 = vmatprep.subr.mxu0 0.0
        %357 = vmatpush2.msra.mxu0 0.0
        %358 = vmatprep.subr.mxu0 0.0
        %359 = vmatpush2.msra.mxu0 0.0
        %360 = vmatprep.subr.mxu0 0.0
        %361 = vmatpush2.msra.mxu0 0.0
        %362 = vmatprep.subr.mxu0 0.0
        %363 = vmatpush2.msra.mxu0 0.0
        %364 = vmatprep.subr.mxu0 0.0
        %365 = vmatpush2.msra.mxu0 0.0
        %366 = vmatprep.subr.mxu0 0.0
        %367 = vmatpush2.msra.mxu0 0.0
        %368 = vmatprep.subr.mxu0 0.0
        %369 = vmatpush2.msra.mxu0 0.0
        %370 = vmatprep.subr.mxu0 0.0
        %371 = vmatpush2.msra.mxu0 0.0
        %372 = vmatprep.subr.mxu0 0.0
        %373 = vmatpush2.msra.mxu0 0.0
        %374 = vmatprep.subr.mxu0 0.0
        %375 = vmatpush2.msra.mxu0 0.0
        %376 = vmatprep.subr.mxu0 0.0
        %377 = vmatpush2.msra.mxu0 0.0
        %378 = vmatprep.subr.mxu0 0.0
        %379 = vmatpush2.msra.mxu0 0.0
        %380 = vmatprep.subr.mxu0 0.0
        %381 = vmatpush2.msra.mxu0 0.0
        %382 = vmatprep.subr.mxu0 0.0
        %383 = vmatpush2.msra.mxu0 0.0
        %384 = vmatprep.subr.mxu0 0.0
        %385 = vmatpush2.msra.mxu0 0.0
        %386 = vmatprep.subr.mxu0 0.0
        %387 = vmatpush2.msra.mxu0 0.0
        %388 = vmatprep.mubr.f32.mxu0 0.0
        %389 = vmatmul.mubr.f32.gmra.mxu0 %v273
        %v390 = vpop.f32.mrf.mxu0
        %v391 = vadd.f32 0.0, %v390
        %v392 = vpop.f32.mrf.mxu0
        %393 = vmatprep.mubr.f32.mxu0 0.0
        %394 = vmatmul.mubr.f32.gmra.mxu0 %v276
        %v395 = vpop.f32.mrf.mxu0
        %v396 = vadd.f32 0.0, %v395
        %v397 = vpop.f32.mrf.mxu0
        %398 = vmatprep.mubr.f32.mxu0 0.0
        %399 = vmatmul.mubr.f32.gmra.mxu0 %v279
        %v400 = vpop.f32.mrf.mxu0
        %v401 = vadd.f32 0.0, %v400
        %v402 = vpop.f32.mrf.mxu0
        %403 = vmatprep.mubr.f32.mxu0 0.0
        %404 = vmatmul.mubr.f32.gmra.mxu0 %v282
        %v405 = vpop.f32.mrf.mxu0
        %v406 = vadd.f32 0.0, %v405
        %v407 = vpop.f32.mrf.mxu0
        %408 = vmatprep.mubr.f32.mxu0 0.0
        %409 = vmatmul.mubr.f32.gmra.mxu0 %v285
        %v410 = vpop.f32.mrf.mxu0
        %v411 = vadd.f32 0.0, %v410
        %v412 = vpop.f32.mrf.mxu0
        %413 = vmatprep.mubr.f32.mxu0 0.0
        %414 = vmatmul.mubr.f32.gmra.mxu0 %v288
        %v415 = vpop.f32.mrf.mxu0
        %v416 = vadd.f32 0.0, %v415
        %v417 = vpop.f32.mrf.mxu0
        %418 = vmatprep.mubr.f32.mxu0 0.0
        %419 = vmatmul.mubr.f32.gmra.mxu0 %v291
        %v420 = vpop.f32.mrf.mxu0
        %v421 = vadd.f32 0.0, %v420
        %v422 = vpop.f32.mrf.mxu0
        %423 = vmatprep.mubr.f32.mxu0 0.0
        %424 = vmatmul.mubr.f32.gmra.mxu0 %v294
        %v425 = vpop.f32.mrf.mxu0
        %v426 = vadd.f32 0.0, %v425
        %v427 = vpop.f32.mrf.mxu0
        %428 = vmatprep.mubr.f32.mxu0 0.0
        %429 = vmatmul.mubr.f32.gmra.mxu0 %v297
        %v430 = vpop.f32.mrf.mxu0
        %v431 = vadd.f32 0.0, %v430
        %v432 = vpop.f32.mrf.mxu0
        %433 = vmatprep.mubr.f32.mxu0 0.0
        %434 = vmatmul.mubr.f32.gmra.mxu0 %v300
        %v435 = vpop.f32.mrf.mxu0
        %v436 = vadd.f32 0.0, %v435
        %v437 = vpop.f32.mrf.mxu0
        %438 = vmatprep.mubr.f32.mxu0 0.0
        %439 = vmatmul.mubr.f32.gmra.mxu0 %v303
        %v440 = vpop.f32.mrf.mxu0
        %v441 = vadd.f32 0.0, %v440
        %v442 = vpop.f32.mrf.mxu0
        %443 = vmatprep.mubr.f32.mxu0 0.0
        %444 = vmatmul.mubr.f32.gmra.mxu0 %v306
        %v445 = vpop.f32.mrf.mxu0
        %v446 = vadd.f32 0.0, %v445
        %v447 = vpop.f32.mrf.mxu0
        %448 = vmatprep.mubr.f32.mxu0 0.0
        %449 = vmatmul.mubr.f32.gmra.mxu0 %v309
        %v450 = vpop.f32.mrf.mxu0
        %v451 = vadd.f32 0.0, %v450
        %v452 = vpop.f32.mrf.mxu0
        %453 = vmatprep.mubr.f32.mxu0 0.0
        %454 = vmatmul.mubr.f32.gmra.mxu0 %v312
        %v455 = vpop.f32.mrf.mxu0
        %v456 = vadd.f32 0.0, %v455
        %v457 = vpop.f32.mrf.mxu0
        %458 = vmatprep.mubr.f32.mxu0 0.0
        %459 = vmatmul.mubr.f32.gmra.mxu0 %v315
        %v460 = vpop.f32.mrf.mxu0
        %v461 = vadd.f32 0.0, %v460
        %v462 = vpop.f32.mrf.mxu0
        %463 = vmatprep.mubr.f32.mxu0 0.0
        %464 = vmatmul.mubr.f32.gmra.mxu0 %v318
        %v465 = vpop.f32.mrf.mxu0
        %v466 = vadd.f32 0.0, %v465
        %v467 = vpop.f32.mrf.mxu0
        %468 = vdwg.mxu0
        %v469 = vmul.f32 %v238, %v238
        %v470 = vsel %vm320, %v469, 0.0
        %v471 = vrot.slane %v470, 4
        %v472 = vadd.f32 %v470, %v471
        %v473 = vrot.slane %v472, 2
        %v474 = vadd.f32 %v472, %v473
        %v475 = vrot.slane %v474, 1
        %v476 = vadd.f32 %v474, %v475
        %477 = vxpose.xlu0.b32.start [1/16] %v469, 128
        %478 = vxpose.xlu0.b32.cont [2/16] 0.0, 128
        %479 = vxpose.xlu0.b32.cont [3/16] 0.0, 128
        %480 = vxpose.xlu0.b32.cont [4/16] 0.0, 128
        %481 = vxpose.xlu0.b32.cont [5/16] 0.0, 128
        %482 = vxpose.xlu0.b32.cont [6/16] 0.0, 128
        %483 = vxpose.xlu0.b32.cont [7/16] 0.0, 128
        %484 = vxpose.xlu0.b32.cont [8/16] 0.0, 128
        %485 = vxpose.xlu0.b32.cont [9/16] 0.0, 128
        %486 = vxpose.xlu0.b32.cont [10/16] 0.0, 128
        %487 = vxpose.xlu0.b32.cont [11/16] 0.0, 128
        %488 = vxpose.xlu0.b32.cont [12/16] 0.0, 128
        %489 = vxpose.xlu0.b32.cont [13/16] 0.0, 128
        %490 = vxpose.xlu0.b32.cont [14/16] 0.0, 128
        %491 = vxpose.xlu0.b32.cont [15/16] 0.0, 128
        %492 = vxpose.xlu0.b32.end [16/16] 0.0, 128
        %v493 = vpop.trf.xlu0
        %v494 = vpop.trf.xlu0
        %v495 = vpop.trf.xlu0
        %v496 = vpop.trf.xlu0
        %v497 = vpop.trf.xlu0
        %v498 = vpop.trf.xlu0
        %v499 = vpop.trf.xlu0
        %v500 = vpop.trf.xlu0
        %v501 = vpop.trf.xlu0
        %v502 = vpop.trf.xlu0
        %v503 = vpop.trf.xlu0
        %v504 = vpop.trf.xlu0
        %v505 = vpop.trf.xlu0
        %v506 = vpop.trf.xlu0
        %v507 = vpop.trf.xlu0
        %v508 = vpop.trf.xlu0
        %v510 = vsel %vm271, %v493, 0
        %v513 = vsel %vm271, %v494, 0
        %v516 = vsel %vm271, %v495, 0
        %v519 = vsel %vm271, %v496, 0
        %v522 = vsel %vm271, %v497, 0
        %v525 = vsel %vm271, %v498, 0
        %v528 = vsel %vm271, %v499, 0
        %v531 = vsel %vm271, %v500, 0
        %v534 = vsel %vm271, %v501, 0
        %v537 = vsel %vm271, %v502, 0
        %v540 = vsel %vm271, %v503, 0
        %v543 = vsel %vm271, %v504, 0
        %v546 = vsel %vm271, %v505, 0
        %v549 = vsel %vm271, %v506, 0
        %v552 = vsel %vm271, %v507, 0
        %v555 = vsel %vm271, %v508, 0
        %v558 = vsel %vm320, 1.0, 0
        %560 = vmatprep.subr.mxu0 0.0
        %561 = vmatpush1.msra.mxu0 0.0
        %562 = vmatprep.subr.mxu0 0.0
        %563 = vmatpush1.msra.mxu0 0.0
        %564 = vmatprep.subr.mxu0 0.0
        %565 = vmatpush1.msra.mxu0 0.0
        %566 = vmatprep.subr.mxu0 0.0
        %567 = vmatpush1.msra.mxu0 0.0
        %568 = vmatprep.subr.mxu0 0.0
        %569 = vmatpush1.msra.mxu0 0.0
        %570 = vmatprep.subr.mxu0 0.0
        %571 = vmatpush1.msra.mxu0 0.0
        %572 = vmatprep.subr.mxu0 0.0
        %573 = vmatpush1.msra.mxu0 0.0
        %574 = vmatprep.subr.mxu0 0.0
        %575 = vmatpush1.msra.mxu0 0.0
        %576 = vmatprep.subr.mxu0 0.0
        %577 = vmatpush1.msra.mxu0 0.0
        %578 = vmatprep.subr.mxu0 0.0
        %579 = vmatpush1.msra.mxu0 0.0
        %580 = vmatprep.subr.mxu0 0.0
        %581 = vmatpush1.msra.mxu0 0.0
        %582 = vmatprep.subr.mxu0 0.0
        %583 = vmatpush1.msra.mxu0 0.0
        %584 = vmatprep.subr.mxu0 0.0
        %585 = vmatpush1.msra.mxu0 0.0
        %586 = vmatprep.subr.mxu0 0.0
        %587 = vmatpush1.msra.mxu0 0.0
        %588 = vmatprep.subr.mxu0 0.0
        %589 = vmatpush1.msra.mxu0 0.0
        %590 = vmatprep.subr.mxu0 0.0
        %591 = vmatpush1.msra.mxu0 %v558
        %592 = vmatprep.subr.mxu0 0.0
        %593 = vmatpush2.msra.mxu0 0.0
        %594 = vmatprep.subr.mxu0 0.0
        %595 = vmatpush2.msra.mxu0 0.0
        %596 = vmatprep.subr.mxu0 0.0
        %597 = vmatpush2.msra.mxu0 0.0
        %598 = vmatprep.subr.mxu0 0.0
        %599 = vmatpush2.msra.mxu0 0.0
        %600 = vmatprep.subr.mxu0 0.0
        %601 = vmatpush2.msra.mxu0 0.0
        %602 = vmatprep.subr.mxu0 0.0
        %603 = vmatpush2.msra.mxu0 0.0
        %604 = vmatprep.subr.mxu0 0.0
        %605 = vmatpush2.msra.mxu0 0.0
        %606 = vmatprep.subr.mxu0 0.0
        %607 = vmatpush2.msra.mxu0 0.0
        %608 = vmatprep.subr.mxu0 0.0
        %609 = vmatpush2.msra.mxu0 0.0
        %610 = vmatprep.subr.mxu0 0.0
        %611 = vmatpush2.msra.mxu0 0.0
        %612 = vmatprep.subr.mxu0 0.0
        %613 = vmatpush2.msra.mxu0 0.0
        %614 = vmatprep.subr.mxu0 0.0
        %615 = vmatpush2.msra.mxu0 0.0
        %616 = vmatprep.subr.mxu0 0.0
        %617 = vmatpush2.msra.mxu0 0.0
        %618 = vmatprep.subr.mxu0 0.0
        %619 = vmatpush2.msra.mxu0 0.0
        %620 = vmatprep.subr.mxu0 0.0
        %621 = vmatpush2.msra.mxu0 0.0
        %622 = vmatprep.subr.mxu0 0.0
        %623 = vmatpush2.msra.mxu0 0.0
        %624 = vmatprep.mubr.f32.mxu0 0.0
        %625 = vmatmul.mubr.f32.gmra.mxu0 %v510
        %v626 = vpop.f32.mrf.mxu0
        %v627 = vadd.f32 0.0, %v626
        %v628 = vpop.f32.mrf.mxu0
        %629 = vmatprep.mubr.f32.mxu0 0.0
        %630 = vmatmul.mubr.f32.gmra.mxu0 %v513
        %v631 = vpop.f32.mrf.mxu0
        %v632 = vadd.f32 0.0, %v631
        %v633 = vpop.f32.mrf.mxu0
        %634 = vmatprep.mubr.f32.mxu0 0.0
        %635 = vmatmul.mubr.f32.gmra.mxu0 %v516
        %v636 = vpop.f32.mrf.mxu0
        %v637 = vadd.f32 0.0, %v636
        %v638 = vpop.f32.mrf.mxu0
        %639 = vmatprep.mubr.f32.mxu0 0.0
        %640 = vmatmul.mubr.f32.gmra.mxu0 %v519
        %v641 = vpop.f32.mrf.mxu0
        %v642 = vadd.f32 0.0, %v641
        %v643 = vpop.f32.mrf.mxu0
        %644 = vmatprep.mubr.f32.mxu0 0.0
        %645 = vmatmul.mubr.f32.gmra.mxu0 %v522
        %v646 = vpop.f32.mrf.mxu0
        %v647 = vadd.f32 0.0, %v646
        %v648 = vpop.f32.mrf.mxu0
        %649 = vmatprep.mubr.f32.mxu0 0.0
        %650 = vmatmul.mubr.f32.gmra.mxu0 %v525
        %v651 = vpop.f32.mrf.mxu0
        %v652 = vadd.f32 0.0, %v651
        %v653 = vpop.f32.mrf.mxu0
        %654 = vmatprep.mubr.f32.mxu0 0.0
        %655 = vmatmul.mubr.f32.gmra.mxu0 %v528
        %v656 = vpop.f32.mrf.mxu0
        %v657 = vadd.f32 0.0, %v656
        %v658 = vpop.f32.mrf.mxu0
        %659 = vmatprep.mubr.f32.mxu0 0.0
        %660 = vmatmul.mubr.f32.gmra.mxu0 %v531
        %v661 = vpop.f32.mrf.mxu0
        %v662 = vadd.f32 0.0, %v661
        %v663 = vpop.f32.mrf.mxu0
        %664 = vmatprep.mubr.f32.mxu0 0.0
        %665 = vmatmul.mubr.f32.gmra.mxu0 %v534
        %v666 = vpop.f32.mrf.mxu0
        %v667 = vadd.f32 0.0, %v666
        %v668 = vpop.f32.mrf.mxu0
        %669 = vmatprep.mubr.f32.mxu0 0.0
        %670 = vmatmul.mubr.f32.gmra.mxu0 %v537
        %v671 = vpop.f32.mrf.mxu0
        %v672 = vadd.f32 0.0, %v671
        %v673 = vpop.f32.mrf.mxu0
        %674 = vmatprep.mubr.f32.mxu0 0.0
        %675 = vmatmul.mubr.f32.gmra.mxu0 %v540
        %v676 = vpop.f32.mrf.mxu0
        %v677 = vadd.f32 0.0, %v676
        %v678 = vpop.f32.mrf.mxu0
        %679 = vmatprep.mubr.f32.mxu0 0.0
        %680 = vmatmul.mubr.f32.gmra.mxu0 %v543
        %v681 = vpop.f32.mrf.mxu0
        %v682 = vadd.f32 0.0, %v681
        %v683 = vpop.f32.mrf.mxu0
        %684 = vmatprep.mubr.f32.mxu0 0.0
        %685 = vmatmul.mubr.f32.gmra.mxu0 %v546
        %v686 = vpop.f32.mrf.mxu0
        %v687 = vadd.f32 0.0, %v686
        %v688 = vpop.f32.mrf.mxu0
        %689 = vmatprep.mubr.f32.mxu0 0.0
        %690 = vmatmul.mubr.f32.gmra.mxu0 %v549
        %v691 = vpop.f32.mrf.mxu0
        %v692 = vadd.f32 0.0, %v691
        %v693 = vpop.f32.mrf.mxu0
        %694 = vmatprep.mubr.f32.mxu0 0.0
        %695 = vmatmul.mubr.f32.gmra.mxu0 %v552
        %v696 = vpop.f32.mrf.mxu0
        %v697 = vadd.f32 0.0, %v696
        %v698 = vpop.f32.mrf.mxu0
        %699 = vmatprep.mubr.f32.mxu0 0.0
        %700 = vmatmul.mubr.f32.gmra.mxu0 %v555
        %v701 = vpop.f32.mrf.mxu0
        %v702 = vadd.f32 0.0, %v701
        %v703 = vpop.f32.mrf.mxu0
        %704 = vdwg.mxu0
        %706 = vset.pattern.permute.xlu0 0
        %707 = vperm.xlu0 %706, %v627
        %v708 = vpop.permute.xlu0 %707
        %711 = vset.pattern.permute.xlu0 0
        %712 = vperm.xlu0 %711, %v632
        %v713 = vpop.permute.xlu0 %712
        %716 = vset.pattern.permute.xlu0 0
        %717 = vperm.xlu0 %716, %v637
        %v718 = vpop.permute.xlu0 %717
        %721 = vset.pattern.permute.xlu0 0
        %722 = vperm.xlu0 %721, %v642
        %v723 = vpop.permute.xlu0 %722
        %726 = vset.pattern.permute.xlu0 0
        %727 = vperm.xlu0 %726, %v647
        %v728 = vpop.permute.xlu0 %727
        %731 = vset.pattern.permute.xlu0 0
        %732 = vperm.xlu0 %731, %v652
        %v733 = vpop.permute.xlu0 %732
        %736 = vset.pattern.permute.xlu0 0
        %737 = vperm.xlu0 %736, %v657
        %v738 = vpop.permute.xlu0 %737
        %741 = vset.pattern.permute.xlu0 0
        %742 = vperm.xlu0 %741, %v662
        %v743 = vpop.permute.xlu0 %742
        %746 = vset.pattern.permute.xlu0 0
        %747 = vperm.xlu0 %746, %v667
        %v748 = vpop.permute.xlu0 %747
        %751 = vset.pattern.permute.xlu0 0
        %752 = vperm.xlu0 %751, %v672
        %v753 = vpop.permute.xlu0 %752
        %756 = vset.pattern.permute.xlu0 0
        %757 = vperm.xlu0 %756, %v677
        %v758 = vpop.permute.xlu0 %757
        %761 = vset.pattern.permute.xlu0 0
        %762 = vperm.xlu0 %761, %v682
        %v763 = vpop.permute.xlu0 %762
        %766 = vset.pattern.permute.xlu0 0
        %767 = vperm.xlu0 %766, %v687
        %v768 = vpop.permute.xlu0 %767
        %771 = vset.pattern.permute.xlu0 0
        %772 = vperm.xlu0 %771, %v692
        %v773 = vpop.permute.xlu0 %772
        %776 = vset.pattern.permute.xlu0 0
        %777 = vperm.xlu0 %776, %v697
        %v778 = vpop.permute.xlu0 %777
        %781 = vset.pattern.permute.xlu0 0
        %782 = vperm.xlu0 %781, %v702
        %v783 = vpop.permute.xlu0 %782
        %v785 = vadd.f32 %v708, %v476
        %v786 = vadd.f32 %v713, %v476
        %v787 = vadd.f32 %v718, %v476
        %v788 = vadd.f32 %v723, %v476
        %v789 = vadd.f32 %v728, %v476
        %v790 = vadd.f32 %v733, %v476
        %v791 = vadd.f32 %v738, %v476
        %v792 = vadd.f32 %v743, %v476
        %v793 = vadd.f32 %v748, %v476
        %v794 = vadd.f32 %v753, %v476
        %v795 = vadd.f32 %v758, %v476
        %v796 = vadd.f32 %v763, %v476
        %v797 = vadd.f32 %v768, %v476
        %v798 = vadd.f32 %v773, %v476
        %v799 = vadd.f32 %v778, %v476
        %v800 = vadd.f32 %v783, %v476
        %v801 = vmul.f32 %v391, 2.0
        %v802 = vmul.f32 %v396, 2.0
        %v803 = vmul.f32 %v401, 2.0
        %v804 = vmul.f32 %v406, 2.0
        %v805 = vmul.f32 %v411, 2.0
        %v806 = vmul.f32 %v416, 2.0
        %v807 = vmul.f32 %v421, 2.0
        %v808 = vmul.f32 %v426, 2.0
        %v809 = vmul.f32 %v431, 2.0
        %v810 = vmul.f32 %v436, 2.0
        %v811 = vmul.f32 %v441, 2.0
        %v812 = vmul.f32 %v446, 2.0
        %v813 = vmul.f32 %v451, 2.0
        %v814 = vmul.f32 %v456, 2.0
        %v815 = vmul.f32 %v461, 2.0
        %v816 = vmul.f32 %v466, 2.0
        %v817 = vsub.f32 %v785, %v801
        %v818 = vsub.f32 %v786, %v802
        %v819 = vsub.f32 %v787, %v803
        %v820 = vsub.f32 %v788, %v804
        %v821 = vsub.f32 %v789, %v805
        %v822 = vsub.f32 %v790, %v806
        %v823 = vsub.f32 %v791, %v807
        %v824 = vsub.f32 %v792, %v808
        %v825 = vsub.f32 %v793, %v809
        %v826 = vsub.f32 %v794, %v810
        %v827 = vsub.f32 %v795, %v811
        %v828 = vsub.f32 %v796, %v812
        %v829 = vsub.f32 %v797, %v813
        %v830 = vsub.f32 %v798, %v814
        %v831 = vsub.f32 %v799, %v815
        %v832 = vsub.f32 %v800, %v816
        %v833 = vmax.f32 %v817, 0.0
        %v834 = vmax.f32 %v818, 0.0
        %v835 = vmax.f32 %v819, 0.0
        %v836 = vmax.f32 %v820, 0.0
        %v837 = vmax.f32 %v821, 0.0
        %v838 = vmax.f32 %v822, 0.0
        %v839 = vmax.f32 %v823, 0.0
        %v840 = vmax.f32 %v824, 0.0
        %v841 = vmax.f32 %v825, 0.0
        %v842 = vmax.f32 %v826, 0.0
        %v843 = vmax.f32 %v827, 0.0
        %v844 = vmax.f32 %v828, 0.0
        %v845 = vmax.f32 %v829, 0.0
        %v846 = vmax.f32 %v830, 0.0
        %v847 = vmax.f32 %v831, 0.0
        %v848 = vmax.f32 %v832, 0.0
        %vm849 = vcmp.lt.f32.partialorder %v833, 0.09
        %vm850 = vcmp.lt.f32.partialorder %v834, 0.09
        %vm851 = vcmp.lt.f32.partialorder %v835, 0.09
        %vm852 = vcmp.lt.f32.partialorder %v836, 0.09
        %vm853 = vcmp.lt.f32.partialorder %v837, 0.09
        %vm854 = vcmp.lt.f32.partialorder %v838, 0.09
        %vm855 = vcmp.lt.f32.partialorder %v839, 0.09
        %vm856 = vcmp.lt.f32.partialorder %v840, 0.09
        %vm857 = vcmp.lt.f32.partialorder %v841, 0.09
        %vm858 = vcmp.lt.f32.partialorder %v842, 0.09
        %vm859 = vcmp.lt.f32.partialorder %v843, 0.09
        %vm860 = vcmp.lt.f32.partialorder %v844, 0.09
        %vm861 = vcmp.lt.f32.partialorder %v845, 0.09
        %vm862 = vcmp.lt.f32.partialorder %v846, 0.09
        %vm863 = vcmp.lt.f32.partialorder %v847, 0.09
        %vm864 = vcmp.lt.f32.partialorder %v848, 0.09
        %v865 = vld [vmem:[%s3] sm:$0xff]
        %v866 = vld [vmem:[%s3 + $0x8] sm:$0xff]
        %v867 = vld [vmem:[%s3 + $0x10] sm:$0xff]
        %v868 = vld [vmem:[%s3 + $0x18] sm:$0xff]
        %v869 = vld [vmem:[%s3 + $0x20] sm:$0xff]
        %v870 = vld [vmem:[%s3 + $0x28] sm:$0xff]
        %v871 = vld [vmem:[%s3 + $0x30] sm:$0xff]
        %v872 = vld [vmem:[%s3 + $0x38] sm:$0xff]
        %v873 = vld [vmem:[%s3 + $0x40] sm:$0xff]
        %v874 = vld [vmem:[%s3 + $0x48] sm:$0xff]
        %v875 = vld [vmem:[%s3 + $0x50] sm:$0xff]
        %v876 = vld [vmem:[%s3 + $0x58] sm:$0xff]
        %v877 = vld [vmem:[%s3 + $0x60] sm:$0xff]
        %v878 = vld [vmem:[%s3 + $0x68] sm:$0xff]
        %v879 = vld [vmem:[%s3 + $0x70] sm:$0xff]
        %v880 = vld [vmem:[%s3 + $0x78] sm:$0xff]
        %v881 = vsel %vm849, %v865, 0.0
        %v882 = vsel %vm850, %v866, 0.0
        %v883 = vsel %vm851, %v867, 0.0
        %v884 = vsel %vm852, %v868, 0.0
        %v885 = vsel %vm853, %v869, 0.0
        %v886 = vsel %vm854, %v870, 0.0
        %v887 = vsel %vm855, %v871, 0.0
        %v888 = vsel %vm856, %v872, 0.0
        %v889 = vsel %vm857, %v873, 0.0
        %v890 = vsel %vm858, %v874, 0.0
        %v891 = vsel %vm859, %v875, 0.0
        %v892 = vsel %vm860, %v876, 0.0
        %v893 = vsel %vm861, %v877, 0.0
        %v894 = vsel %vm862, %v878, 0.0
        %v895 = vsel %vm863, %v879, 0.0
        %v896 = vsel %vm864, %v880, 0.0
        %897 = vst [vmem:[%s230] sm:$0xff] %v881
        %898 = vst [vmem:[%s230 + $0x8] sm:$0xff] %v882
        %899 = vst [vmem:[%s230 + $0x10] sm:$0xff] %v883
        %900 = vst [vmem:[%s230 + $0x18] sm:$0xff] %v884
        %901 = vst [vmem:[%s230 + $0x20] sm:$0xff] %v885
        %902 = vst [vmem:[%s230 + $0x28] sm:$0xff] %v886
        %903 = vst [vmem:[%s230 + $0x30] sm:$0xff] %v887
        %904 = vst [vmem:[%s230 + $0x38] sm:$0xff] %v888
        %905 = vst [vmem:[%s230 + $0x40] sm:$0xff] %v889
        %906 = vst [vmem:[%s230 + $0x48] sm:$0xff] %v890
        %907 = vst [vmem:[%s230 + $0x50] sm:$0xff] %v891
        %908 = vst [vmem:[%s230 + $0x58] sm:$0xff] %v892
        %909 = vst [vmem:[%s230 + $0x60] sm:$0xff] %v893
        %910 = vst [vmem:[%s230 + $0x68] sm:$0xff] %v894
        %911 = vst [vmem:[%s230 + $0x70] sm:$0xff] %v895
        %912 = vst [vmem:[%s230 + $0x78] sm:$0xff] %v896
        %v913 = vpack.c.bf16 %v882, %v881
        %v914 = vpack.c.bf16 %v884, %v883
        %v915 = vpack.c.bf16 %v886, %v885
        %v916 = vpack.c.bf16 %v888, %v887
        %v917 = vpack.c.bf16 %v890, %v889
        %v918 = vpack.c.bf16 %v892, %v891
        %v919 = vpack.c.bf16 %v894, %v893
        %v920 = vpack.c.bf16 %v896, %v895
        %v921 = vld [vmem:[%s4] sm:$0xf]
        %v922 = vld [vmem:[%s4 + $0x4] sm:$0xf]
        %v923 = vld [vmem:[%s4 + $0x8] sm:$0xf]
        %v924 = vld [vmem:[%s4 + $0xc] sm:$0xf]
        %v925 = vld [vmem:[%s4 + $0x10] sm:$0xf]
        %v926 = vld [vmem:[%s4 + $0x14] sm:$0xf]
        %v927 = vld [vmem:[%s4 + $0x18] sm:$0xf]
        %v928 = vld [vmem:[%s4 + $0x1c] sm:$0xf]
        %v929 = vld [vmem:[%s4 + $0x20] sm:$0xf]
        %v930 = vld [vmem:[%s4 + $0x24] sm:$0xf]
        %v931 = vld [vmem:[%s4 + $0x28] sm:$0xf]
        %v932 = vld [vmem:[%s4 + $0x2c] sm:$0xf]
        %v933 = vld [vmem:[%s4 + $0x30] sm:$0xf]
        %v934 = vld [vmem:[%s4 + $0x34] sm:$0xf]
        %v935 = vld [vmem:[%s4 + $0x38] sm:$0xf]
        %v936 = vld [vmem:[%s4 + $0x3c] sm:$0xf]
        %v953 = vunpack.c.l.b16 %v921
        %v954 = vunpack.c.l.b16 %v922
        %v955 = vunpack.c.l.b16 %v923
        %v956 = vunpack.c.l.b16 %v924
        %v957 = vunpack.c.l.b16 %v925
        %v958 = vunpack.c.l.b16 %v926
        %v959 = vunpack.c.l.b16 %v927
        %v960 = vunpack.c.l.b16 %v928
        %v961 = vunpack.c.l.b16 %v929
        %v962 = vunpack.c.l.b16 %v930
        %v963 = vunpack.c.l.b16 %v931
        %v964 = vunpack.c.l.b16 %v932
        %v965 = vunpack.c.l.b16 %v933
        %v966 = vunpack.c.l.b16 %v934
        %v967 = vunpack.c.l.b16 %v935
        %v968 = vunpack.c.l.b16 %v936
        %v969 = vpack.c.b16 %v954, %v953
        %v970 = vpack.c.b16 %v956, %v955
        %v971 = vpack.c.b16 %v958, %v957
        %v972 = vpack.c.b16 %v960, %v959
        %v973 = vpack.c.b16 %v962, %v961
        %v974 = vpack.c.b16 %v964, %v963
        %v975 = vpack.c.b16 %v966, %v965
        %v976 = vpack.c.b16 %v968, %v967
        %v985 = vadd.bf16 %v913, %v969
        %v986 = vadd.bf16 %v914, %v970
        %v987 = vadd.bf16 %v915, %v971
        %v988 = vadd.bf16 %v916, %v972
        %v989 = vadd.bf16 %v917, %v973
        %v990 = vadd.bf16 %v918, %v974
        %v991 = vadd.bf16 %v919, %v975
        %v992 = vadd.bf16 %v920, %v976
        %993 = vmatprep.subr.bf16.mxu0 0
        %994 = vmatpush1.bf16.msra.mxu0 %v992
        %995 = vmatprep.subr.bf16.mxu0 0
        %996 = vmatpush1.bf16.msra.mxu0 %v991
        %997 = vmatprep.subr.bf16.mxu0 0
        %998 = vmatpush1.bf16.msra.mxu0 %v990
        %999 = vmatprep.subr.bf16.mxu0 0
        %1000 = vmatpush1.bf16.msra.mxu0 %v989
        %1001 = vmatprep.subr.bf16.mxu0 0
        %1002 = vmatpush1.bf16.msra.mxu0 %v988
        %1003 = vmatprep.subr.bf16.mxu0 0
        %1004 = vmatpush1.bf16.msra.mxu0 %v987
        %1005 = vmatprep.subr.bf16.mxu0 0
        %1006 = vmatpush1.bf16.msra.mxu0 %v986
        %1007 = vmatprep.subr.bf16.mxu0 0
        %1008 = vmatpush1.bf16.msra.mxu0 %v985
        %1009 = vmatprep.subr.bf16.mxu0 0
        %1010 = vmatpush2.bf16.msra.mxu0 0
        %1011 = vmatprep.subr.bf16.mxu0 0
        %1012 = vmatpush2.bf16.msra.mxu0 0
        %1013 = vmatprep.subr.bf16.mxu0 0
        %1014 = vmatpush2.bf16.msra.mxu0 0
        %1015 = vmatprep.subr.bf16.mxu0 0
        %1016 = vmatpush2.bf16.msra.mxu0 0
        %1017 = vmatprep.subr.bf16.mxu0 0
        %1018 = vmatpush2.bf16.msra.mxu0 0
        %1019 = vmatprep.subr.bf16.mxu0 0
        %1020 = vmatpush2.bf16.msra.mxu0 0
        %1021 = vmatprep.subr.bf16.mxu0 0
        %1022 = vmatpush2.bf16.msra.mxu0 0
        %1023 = vmatprep.subr.bf16.mxu0 0
        %1024 = vmatpush2.bf16.msra.mxu0 0
        %1025 = vmatprep.mubr.bf16.mxu0 0
        %1026 = vmatmul.mubr.bf16.gmra.mxu0 %v985
        %v1027 = vpop.f32.mrf.mxu0
        %v1028 = vadd.f32 0.0, %v1027
        %v1029 = vpop.f32.mrf.mxu0
        %v1030 = vpop.f32.mrf.mxu0
        %v1031 = vadd.f32 0.0, %v1030
        %v1032 = vpop.f32.mrf.mxu0
        %1033 = vmatprep.mubr.bf16.mxu0 0
        %1034 = vmatmul.mubr.bf16.gmra.mxu0 %v986
        %v1035 = vpop.f32.mrf.mxu0
        %v1036 = vadd.f32 0.0, %v1035
        %v1037 = vpop.f32.mrf.mxu0
        %v1038 = vpop.f32.mrf.mxu0
        %v1039 = vadd.f32 0.0, %v1038
        %v1040 = vpop.f32.mrf.mxu0
        %1041 = vmatprep.mubr.bf16.mxu0 0
        %1042 = vmatmul.mubr.bf16.gmra.mxu0 %v987
        %v1043 = vpop.f32.mrf.mxu0
        %v1044 = vadd.f32 0.0, %v1043
        %v1045 = vpop.f32.mrf.mxu0
        %v1046 = vpop.f32.mrf.mxu0
        %v1047 = vadd.f32 0.0, %v1046
        %v1048 = vpop.f32.mrf.mxu0
        %1049 = vmatprep.mubr.bf16.mxu0 0
        %1050 = vmatmul.mubr.bf16.gmra.mxu0 %v988
        %v1051 = vpop.f32.mrf.mxu0
        %v1052 = vadd.f32 0.0, %v1051
        %v1053 = vpop.f32.mrf.mxu0
        %v1054 = vpop.f32.mrf.mxu0
        %v1055 = vadd.f32 0.0, %v1054
        %v1056 = vpop.f32.mrf.mxu0
        %1057 = vmatprep.mubr.bf16.mxu0 0
        %1058 = vmatmul.mubr.bf16.gmra.mxu0 %v989
        %v1059 = vpop.f32.mrf.mxu0
        %v1060 = vadd.f32 0.0, %v1059
        %v1061 = vpop.f32.mrf.mxu0
        %v1062 = vpop.f32.mrf.mxu0
        %v1063 = vadd.f32 0.0, %v1062
        %v1064 = vpop.f32.mrf.mxu0
        %1065 = vmatprep.mubr.bf16.mxu0 0
        %1066 = vmatmul.mubr.bf16.gmra.mxu0 %v990
        %v1067 = vpop.f32.mrf.mxu0
        %v1068 = vadd.f32 0.0, %v1067
        %v1069 = vpop.f32.mrf.mxu0
        %v1070 = vpop.f32.mrf.mxu0
        %v1071 = vadd.f32 0.0, %v1070
        %v1072 = vpop.f32.mrf.mxu0
        %1073 = vmatprep.mubr.bf16.mxu0 0
        %1074 = vmatmul.mubr.bf16.gmra.mxu0 %v991
        %v1075 = vpop.f32.mrf.mxu0
        %v1076 = vadd.f32 0.0, %v1075
        %v1077 = vpop.f32.mrf.mxu0
        %v1078 = vpop.f32.mrf.mxu0
        %v1079 = vadd.f32 0.0, %v1078
        %v1080 = vpop.f32.mrf.mxu0
        %1081 = vmatprep.mubr.bf16.mxu0 0
        %1082 = vmatmul.mubr.bf16.gmra.mxu0 %v992
        %v1083 = vpop.f32.mrf.mxu0
        %v1084 = vadd.f32 0.0, %v1083
        %v1085 = vpop.f32.mrf.mxu0
        %v1086 = vpop.f32.mrf.mxu0
        %v1087 = vadd.f32 0.0, %v1086
        %v1088 = vpop.f32.mrf.mxu0
        %1089 = vdwg.mxu0
        %vm1090 = vcmp.gt.f32.partialorder %v1028, 0.0
        %vm1091 = vcmp.gt.f32.partialorder %v1031, 0.0
        %vm1092 = vcmp.gt.f32.partialorder %v1036, 0.0
        %vm1093 = vcmp.gt.f32.partialorder %v1039, 0.0
        %vm1094 = vcmp.gt.f32.partialorder %v1044, 0.0
        %vm1095 = vcmp.gt.f32.partialorder %v1047, 0.0
        %vm1096 = vcmp.gt.f32.partialorder %v1052, 0.0
        %vm1097 = vcmp.gt.f32.partialorder %v1055, 0.0
        %vm1098 = vcmp.gt.f32.partialorder %v1060, 0.0
        %vm1099 = vcmp.gt.f32.partialorder %v1063, 0.0
        %vm1100 = vcmp.gt.f32.partialorder %v1068, 0.0
        %vm1101 = vcmp.gt.f32.partialorder %v1071, 0.0
        %vm1102 = vcmp.gt.f32.partialorder %v1076, 0.0
        %vm1103 = vcmp.gt.f32.partialorder %v1079, 0.0
        %vm1104 = vcmp.gt.f32.partialorder %v1084, 0.0
        %vm1105 = vcmp.gt.f32.partialorder %v1087, 0.0
        %v1106 = vsel %vm1090, 1, 0
        %v1107 = vsel %vm1091, 1, 0
        %v1108 = vsel %vm1092, 1, 0
        %v1109 = vsel %vm1093, 1, 0
        %v1110 = vsel %vm1094, 1, 0
        %v1111 = vsel %vm1095, 1, 0
        %v1112 = vsel %vm1096, 1, 0
        %v1113 = vsel %vm1097, 1, 0
        %v1114 = vsel %vm1098, 1, 0
        %v1115 = vsel %vm1099, 1, 0
        %v1116 = vsel %vm1100, 1, 0
        %v1117 = vsel %vm1101, 1, 0
        %v1118 = vsel %vm1102, 1, 0
        %v1119 = vsel %vm1103, 1, 0
        %v1120 = vsel %vm1104, 1, 0
        %v1121 = vsel %vm1105, 1, 0
        %v1122 = vcvt.s32.f32 %v1106
        %v1123 = vcvt.s32.f32 %v1107
        %v1124 = vcvt.s32.f32 %v1108
        %v1125 = vcvt.s32.f32 %v1109
        %v1126 = vcvt.s32.f32 %v1110
        %v1127 = vcvt.s32.f32 %v1111
        %v1128 = vcvt.s32.f32 %v1112
        %v1129 = vcvt.s32.f32 %v1113
        %v1130 = vcvt.s32.f32 %v1114
        %v1131 = vcvt.s32.f32 %v1115
        %v1132 = vcvt.s32.f32 %v1116
        %v1133 = vcvt.s32.f32 %v1117
        %v1134 = vcvt.s32.f32 %v1118
        %v1135 = vcvt.s32.f32 %v1119
        %v1136 = vcvt.s32.f32 %v1120
        %v1137 = vcvt.s32.f32 %v1121
        %v1138 = vpack.c.bf16 %v1123, %v1122
        %v1139 = vpack.c.bf16 %v1125, %v1124
        %v1140 = vpack.c.bf16 %v1127, %v1126
        %v1141 = vpack.c.bf16 %v1129, %v1128
        %v1142 = vpack.c.bf16 %v1131, %v1130
        %v1143 = vpack.c.bf16 %v1133, %v1132
        %v1144 = vpack.c.bf16 %v1135, %v1134
        %v1145 = vpack.c.bf16 %v1137, %v1136
        %1146 = vmatprep.subr.bf16.mxu0 0
        %1147 = vmatpush1.bf16.msra.mxu0 %v1145
        %1148 = vmatprep.subr.bf16.mxu0 0
        %1149 = vmatpush1.bf16.msra.mxu0 %v1144
        %1150 = vmatprep.subr.bf16.mxu0 0
        %1151 = vmatpush1.bf16.msra.mxu0 %v1143
        %1152 = vmatprep.subr.bf16.mxu0 0
        %1153 = vmatpush1.bf16.msra.mxu0 %v1142
        %1154 = vmatprep.subr.bf16.mxu0 0
        %1155 = vmatpush1.bf16.msra.mxu0 %v1141
        %1156 = vmatprep.subr.bf16.mxu0 0
        %1157 = vmatpush1.bf16.msra.mxu0 %v1140
        %1158 = vmatprep.subr.bf16.mxu0 0
        %1159 = vmatpush1.bf16.msra.mxu0 %v1139
        %1160 = vmatprep.subr.bf16.mxu0 0
        %1161 = vmatpush1.bf16.msra.mxu0 %v1138
        %1162 = vmatprep.subr.bf16.mxu0 0
        %1163 = vmatpush2.bf16.msra.mxu0 0
        %1164 = vmatprep.subr.bf16.mxu0 0
        %1165 = vmatpush2.bf16.msra.mxu0 0
        %1166 = vmatprep.subr.bf16.mxu0 0
        %1167 = vmatpush2.bf16.msra.mxu0 0
        %1168 = vmatprep.subr.bf16.mxu0 0
        %1169 = vmatpush2.bf16.msra.mxu0 0
        %1170 = vmatprep.subr.bf16.mxu0 0
        %1171 = vmatpush2.bf16.msra.mxu0 0
        %1172 = vmatprep.subr.bf16.mxu0 0
        %1173 = vmatpush2.bf16.msra.mxu0 0
        %1174 = vmatprep.subr.bf16.mxu0 0
        %1175 = vmatpush2.bf16.msra.mxu0 0
        %1176 = vmatprep.subr.bf16.mxu0 0
        %1177 = vmatpush2.bf16.msra.mxu0 0
        %1178 = vmatprep.mubr.bf16.mxu0 0
        %1179 = vmatmul.mubr.bf16.gmra.mxu0 %v1138
        %v1180 = vpop.f32.mrf.mxu0
        %v1181 = vadd.f32 0.0, %v1180
        %v1182 = vpop.f32.mrf.mxu0
        %v1183 = vpop.f32.mrf.mxu0
        %v1184 = vadd.f32 0.0, %v1183
        %v1185 = vpop.f32.mrf.mxu0
        %1186 = vmatprep.mubr.bf16.mxu0 0
        %1187 = vmatmul.mubr.bf16.gmra.mxu0 %v1139
        %v1188 = vpop.f32.mrf.mxu0
        %v1189 = vadd.f32 0.0, %v1188
        %v1190 = vpop.f32.mrf.mxu0
        %v1191 = vpop.f32.mrf.mxu0
        %v1192 = vadd.f32 0.0, %v1191
        %v1193 = vpop.f32.mrf.mxu0
        %1194 = vmatprep.mubr.bf16.mxu0 0
        %1195 = vmatmul.mubr.bf16.gmra.mxu0 %v1140
        %v1196 = vpop.f32.mrf.mxu0
        %v1197 = vadd.f32 0.0, %v1196
        %v1198 = vpop.f32.mrf.mxu0
        %v1199 = vpop.f32.mrf.mxu0
        %v1200 = vadd.f32 0.0, %v1199
        %v1201 = vpop.f32.mrf.mxu0
        %1202 = vmatprep.mubr.bf16.mxu0 0
        %1203 = vmatmul.mubr.bf16.gmra.mxu0 %v1141
        %v1204 = vpop.f32.mrf.mxu0
        %v1205 = vadd.f32 0.0, %v1204
        %v1206 = vpop.f32.mrf.mxu0
        %v1207 = vpop.f32.mrf.mxu0
        %v1208 = vadd.f32 0.0, %v1207
        %v1209 = vpop.f32.mrf.mxu0
        %1210 = vmatprep.mubr.bf16.mxu0 0
        %1211 = vmatmul.mubr.bf16.gmra.mxu0 %v1142
        %v1212 = vpop.f32.mrf.mxu0
        %v1213 = vadd.f32 0.0, %v1212
        %v1214 = vpop.f32.mrf.mxu0
        %v1215 = vpop.f32.mrf.mxu0
        %v1216 = vadd.f32 0.0, %v1215
        %v1217 = vpop.f32.mrf.mxu0
        %1218 = vmatprep.mubr.bf16.mxu0 0
        %1219 = vmatmul.mubr.bf16.gmra.mxu0 %v1143
        %v1220 = vpop.f32.mrf.mxu0
        %v1221 = vadd.f32 0.0, %v1220
        %v1222 = vpop.f32.mrf.mxu0
        %v1223 = vpop.f32.mrf.mxu0
        %v1224 = vadd.f32 0.0, %v1223
        %v1225 = vpop.f32.mrf.mxu0
        %1226 = vmatprep.mubr.bf16.mxu0 0
        %1227 = vmatmul.mubr.bf16.gmra.mxu0 %v1144
        %v1228 = vpop.f32.mrf.mxu0
        %v1229 = vadd.f32 0.0, %v1228
        %v1230 = vpop.f32.mrf.mxu0
        %v1231 = vpop.f32.mrf.mxu0
        %v1232 = vadd.f32 0.0, %v1231
        %v1233 = vpop.f32.mrf.mxu0
        %1234 = vmatprep.mubr.bf16.mxu0 0
        %1235 = vmatmul.mubr.bf16.gmra.mxu0 %v1145
        %v1236 = vpop.f32.mrf.mxu0
        %v1237 = vadd.f32 0.0, %v1236
        %v1238 = vpop.f32.mrf.mxu0
        %v1239 = vpop.f32.mrf.mxu0
        %v1240 = vadd.f32 0.0, %v1239
        %v1241 = vpop.f32.mrf.mxu0
        %1242 = vdwg.mxu0
        %vm1243 = vcmp.gt.f32.partialorder %v1181, 0.0
        %vm1244 = vcmp.gt.f32.partialorder %v1184, 0.0
        %vm1245 = vcmp.gt.f32.partialorder %v1189, 0.0
        %vm1246 = vcmp.gt.f32.partialorder %v1192, 0.0
        %vm1247 = vcmp.gt.f32.partialorder %v1197, 0.0
        %vm1248 = vcmp.gt.f32.partialorder %v1200, 0.0
        %vm1249 = vcmp.gt.f32.partialorder %v1205, 0.0
        %vm1250 = vcmp.gt.f32.partialorder %v1208, 0.0
        %vm1251 = vcmp.gt.f32.partialorder %v1213, 0.0
        %vm1252 = vcmp.gt.f32.partialorder %v1216, 0.0
        %vm1253 = vcmp.gt.f32.partialorder %v1221, 0.0
        %vm1254 = vcmp.gt.f32.partialorder %v1224, 0.0
        %vm1255 = vcmp.gt.f32.partialorder %v1229, 0.0
        %vm1256 = vcmp.gt.f32.partialorder %v1232, 0.0
        %vm1257 = vcmp.gt.f32.partialorder %v1237, 0.0
        %vm1258 = vcmp.gt.f32.partialorder %v1240, 0.0
        %v1259 = vsel %vm1243, 1, 0
        %v1260 = vsel %vm1244, 1, 0
        %v1261 = vsel %vm1245, 1, 0
        %v1262 = vsel %vm1246, 1, 0
        %v1263 = vsel %vm1247, 1, 0
        %v1264 = vsel %vm1248, 1, 0
        %v1265 = vsel %vm1249, 1, 0
        %v1266 = vsel %vm1250, 1, 0
        %v1267 = vsel %vm1251, 1, 0
        %v1268 = vsel %vm1252, 1, 0
        %v1269 = vsel %vm1253, 1, 0
        %v1270 = vsel %vm1254, 1, 0
        %v1271 = vsel %vm1255, 1, 0
        %v1272 = vsel %vm1256, 1, 0
        %v1273 = vsel %vm1257, 1, 0
        %v1274 = vsel %vm1258, 1, 0
        %v1275 = vcvt.s32.f32 %v1259
        %v1276 = vcvt.s32.f32 %v1260
        %v1277 = vcvt.s32.f32 %v1261
        %v1278 = vcvt.s32.f32 %v1262
        %v1279 = vcvt.s32.f32 %v1263
        %v1280 = vcvt.s32.f32 %v1264
        %v1281 = vcvt.s32.f32 %v1265
        %v1282 = vcvt.s32.f32 %v1266
        %v1283 = vcvt.s32.f32 %v1267
        %v1284 = vcvt.s32.f32 %v1268
        %v1285 = vcvt.s32.f32 %v1269
        %v1286 = vcvt.s32.f32 %v1270
        %v1287 = vcvt.s32.f32 %v1271
        %v1288 = vcvt.s32.f32 %v1272
        %v1289 = vcvt.s32.f32 %v1273
        %v1290 = vcvt.s32.f32 %v1274
        %v1291 = vpack.c.bf16 %v1276, %v1275
        %v1292 = vpack.c.bf16 %v1278, %v1277
        %v1293 = vpack.c.bf16 %v1280, %v1279
        %v1294 = vpack.c.bf16 %v1282, %v1281
        %v1295 = vpack.c.bf16 %v1284, %v1283
        %v1296 = vpack.c.bf16 %v1286, %v1285
        %v1297 = vpack.c.bf16 %v1288, %v1287
        %v1298 = vpack.c.bf16 %v1290, %v1289
        %1299 = vmatprep.subr.bf16.mxu0 0
        %1300 = vmatpush1.bf16.msra.mxu0 %v1298
        %1301 = vmatprep.subr.bf16.mxu0 0
        %1302 = vmatpush1.bf16.msra.mxu0 %v1297
        %1303 = vmatprep.subr.bf16.mxu0 0
        %1304 = vmatpush1.bf16.msra.mxu0 %v1296
        %1305 = vmatprep.subr.bf16.mxu0 0
        %1306 = vmatpush1.bf16.msra.mxu0 %v1295
        %1307 = vmatprep.subr.bf16.mxu0 0
        %1308 = vmatpush1.bf16.msra.mxu0 %v1294
        %1309 = vmatprep.subr.bf16.mxu0 0
        %1310 = vmatpush1.bf16.msra.mxu0 %v1293
        %1311 = vmatprep.subr.bf16.mxu0 0
        %1312 = vmatpush1.bf16.msra.mxu0 %v1292
        %1313 = vmatprep.subr.bf16.mxu0 0
        %1314 = vmatpush1.bf16.msra.mxu0 %v1291
        %1315 = vmatprep.subr.bf16.mxu0 0
        %1316 = vmatpush2.bf16.msra.mxu0 0
        %1317 = vmatprep.subr.bf16.mxu0 0
        %1318 = vmatpush2.bf16.msra.mxu0 0
        %1319 = vmatprep.subr.bf16.mxu0 0
        %1320 = vmatpush2.bf16.msra.mxu0 0
        %1321 = vmatprep.subr.bf16.mxu0 0
        %1322 = vmatpush2.bf16.msra.mxu0 0
        %1323 = vmatprep.subr.bf16.mxu0 0
        %1324 = vmatpush2.bf16.msra.mxu0 0
        %1325 = vmatprep.subr.bf16.mxu0 0
        %1326 = vmatpush2.bf16.msra.mxu0 0
        %1327 = vmatprep.subr.bf16.mxu0 0
        %1328 = vmatpush2.bf16.msra.mxu0 0
        %1329 = vmatprep.subr.bf16.mxu0 0
        %1330 = vmatpush2.bf16.msra.mxu0 0
        %1331 = vmatprep.mubr.bf16.mxu0 0
        %1332 = vmatmul.mubr.bf16.gmra.mxu0 %v1291
        %v1333 = vpop.f32.mrf.mxu0
        %v1334 = vadd.f32 0.0, %v1333
        %v1335 = vpop.f32.mrf.mxu0
        %v1336 = vpop.f32.mrf.mxu0
        %v1337 = vadd.f32 0.0, %v1336
        %v1338 = vpop.f32.mrf.mxu0
        %1339 = vmatprep.mubr.bf16.mxu0 0
        %1340 = vmatmul.mubr.bf16.gmra.mxu0 %v1292
        %v1341 = vpop.f32.mrf.mxu0
        %v1342 = vadd.f32 0.0, %v1341
        %v1343 = vpop.f32.mrf.mxu0
        %v1344 = vpop.f32.mrf.mxu0
        %v1345 = vadd.f32 0.0, %v1344
        %v1346 = vpop.f32.mrf.mxu0
        %1347 = vmatprep.mubr.bf16.mxu0 0
        %1348 = vmatmul.mubr.bf16.gmra.mxu0 %v1293
        %v1349 = vpop.f32.mrf.mxu0
        %v1350 = vadd.f32 0.0, %v1349
        %v1351 = vpop.f32.mrf.mxu0
        %v1352 = vpop.f32.mrf.mxu0
        %v1353 = vadd.f32 0.0, %v1352
        %v1354 = vpop.f32.mrf.mxu0
        %1355 = vmatprep.mubr.bf16.mxu0 0
        %1356 = vmatmul.mubr.bf16.gmra.mxu0 %v1294
        %v1357 = vpop.f32.mrf.mxu0
        %v1358 = vadd.f32 0.0, %v1357
        %v1359 = vpop.f32.mrf.mxu0
        %v1360 = vpop.f32.mrf.mxu0
        %v1361 = vadd.f32 0.0, %v1360
        %v1362 = vpop.f32.mrf.mxu0
        %1363 = vmatprep.mubr.bf16.mxu0 0
        %1364 = vmatmul.mubr.bf16.gmra.mxu0 %v1295
        %v1365 = vpop.f32.mrf.mxu0
        %v1366 = vadd.f32 0.0, %v1365
        %v1367 = vpop.f32.mrf.mxu0
        %v1368 = vpop.f32.mrf.mxu0
        %v1369 = vadd.f32 0.0, %v1368
        %v1370 = vpop.f32.mrf.mxu0
        %1371 = vmatprep.mubr.bf16.mxu0 0
        %1372 = vmatmul.mubr.bf16.gmra.mxu0 %v1296
        %v1373 = vpop.f32.mrf.mxu0
        %v1374 = vadd.f32 0.0, %v1373
        %v1375 = vpop.f32.mrf.mxu0
        %v1376 = vpop.f32.mrf.mxu0
        %v1377 = vadd.f32 0.0, %v1376
        %v1378 = vpop.f32.mrf.mxu0
        %1379 = vmatprep.mubr.bf16.mxu0 0
        %1380 = vmatmul.mubr.bf16.gmra.mxu0 %v1297
        %v1381 = vpop.f32.mrf.mxu0
        %v1382 = vadd.f32 0.0, %v1381
        %v1383 = vpop.f32.mrf.mxu0
        %v1384 = vpop.f32.mrf.mxu0
        %v1385 = vadd.f32 0.0, %v1384
        %v1386 = vpop.f32.mrf.mxu0
        %1387 = vmatprep.mubr.bf16.mxu0 0
        %1388 = vmatmul.mubr.bf16.gmra.mxu0 %v1298
        %v1389 = vpop.f32.mrf.mxu0
        %v1390 = vadd.f32 0.0, %v1389
        %v1391 = vpop.f32.mrf.mxu0
        %v1392 = vpop.f32.mrf.mxu0
        %v1393 = vadd.f32 0.0, %v1392
        %v1394 = vpop.f32.mrf.mxu0
        %1395 = vdwg.mxu0
        %vm1396 = vcmp.gt.f32.partialorder %v1334, 0.0
        %vm1397 = vcmp.gt.f32.partialorder %v1337, 0.0
        %vm1398 = vcmp.gt.f32.partialorder %v1342, 0.0
        %vm1399 = vcmp.gt.f32.partialorder %v1345, 0.0
        %vm1400 = vcmp.gt.f32.partialorder %v1350, 0.0
        %vm1401 = vcmp.gt.f32.partialorder %v1353, 0.0
        %vm1402 = vcmp.gt.f32.partialorder %v1358, 0.0
        %vm1403 = vcmp.gt.f32.partialorder %v1361, 0.0
        %vm1404 = vcmp.gt.f32.partialorder %v1366, 0.0
        %vm1405 = vcmp.gt.f32.partialorder %v1369, 0.0
        %vm1406 = vcmp.gt.f32.partialorder %v1374, 0.0
        %vm1407 = vcmp.gt.f32.partialorder %v1377, 0.0
        %vm1408 = vcmp.gt.f32.partialorder %v1382, 0.0
        %vm1409 = vcmp.gt.f32.partialorder %v1385, 0.0
        %vm1410 = vcmp.gt.f32.partialorder %v1390, 0.0
        %vm1411 = vcmp.gt.f32.partialorder %v1393, 0.0
        %v1412 = vsel %vm1396, 1, 0
        %v1413 = vsel %vm1397, 1, 0
        %v1414 = vsel %vm1398, 1, 0
        %v1415 = vsel %vm1399, 1, 0
        %v1416 = vsel %vm1400, 1, 0
        %v1417 = vsel %vm1401, 1, 0
        %v1418 = vsel %vm1402, 1, 0
        %v1419 = vsel %vm1403, 1, 0
        %v1420 = vsel %vm1404, 1, 0
        %v1421 = vsel %vm1405, 1, 0
        %v1422 = vsel %vm1406, 1, 0
        %v1423 = vsel %vm1407, 1, 0
        %v1424 = vsel %vm1408, 1, 0
        %v1425 = vsel %vm1409, 1, 0
        %v1426 = vsel %vm1410, 1, 0
        %v1427 = vsel %vm1411, 1, 0
        %v1428 = vcvt.s32.f32 %v1412
        %v1429 = vcvt.s32.f32 %v1413
        %v1430 = vcvt.s32.f32 %v1414
        %v1431 = vcvt.s32.f32 %v1415
        %v1432 = vcvt.s32.f32 %v1416
        %v1433 = vcvt.s32.f32 %v1417
        %v1434 = vcvt.s32.f32 %v1418
        %v1435 = vcvt.s32.f32 %v1419
        %v1436 = vcvt.s32.f32 %v1420
        %v1437 = vcvt.s32.f32 %v1421
        %v1438 = vcvt.s32.f32 %v1422
        %v1439 = vcvt.s32.f32 %v1423
        %v1440 = vcvt.s32.f32 %v1424
        %v1441 = vcvt.s32.f32 %v1425
        %v1442 = vcvt.s32.f32 %v1426
        %v1443 = vcvt.s32.f32 %v1427
        %v1444 = vpack.c.bf16 %v1429, %v1428
        %v1445 = vpack.c.bf16 %v1431, %v1430
        %v1446 = vpack.c.bf16 %v1433, %v1432
        %v1447 = vpack.c.bf16 %v1435, %v1434
        %v1448 = vpack.c.bf16 %v1437, %v1436
        %v1449 = vpack.c.bf16 %v1439, %v1438
        %v1450 = vpack.c.bf16 %v1441, %v1440
        %v1451 = vpack.c.bf16 %v1443, %v1442
        %1452 = vmatprep.subr.bf16.mxu0 0
        %1453 = vmatpush1.bf16.msra.mxu0 %v1451
        %1454 = vmatprep.subr.bf16.mxu0 0
        %1455 = vmatpush1.bf16.msra.mxu0 %v1450
        %1456 = vmatprep.subr.bf16.mxu0 0
        %1457 = vmatpush1.bf16.msra.mxu0 %v1449
        %1458 = vmatprep.subr.bf16.mxu0 0
        %1459 = vmatpush1.bf16.msra.mxu0 %v1448
        %1460 = vmatprep.subr.bf16.mxu0 0
        %1461 = vmatpush1.bf16.msra.mxu0 %v1447
        %1462 = vmatprep.subr.bf16.mxu0 0
        %1463 = vmatpush1.bf16.msra.mxu0 %v1446
        %1464 = vmatprep.subr.bf16.mxu0 0
        %1465 = vmatpush1.bf16.msra.mxu0 %v1445
        %1466 = vmatprep.subr.bf16.mxu0 0
        %1467 = vmatpush1.bf16.msra.mxu0 %v1444
        %1468 = vmatprep.subr.bf16.mxu0 0
        %1469 = vmatpush2.bf16.msra.mxu0 0
        %1470 = vmatprep.subr.bf16.mxu0 0
        %1471 = vmatpush2.bf16.msra.mxu0 0
        %1472 = vmatprep.subr.bf16.mxu0 0
        %1473 = vmatpush2.bf16.msra.mxu0 0
        %1474 = vmatprep.subr.bf16.mxu0 0
        %1475 = vmatpush2.bf16.msra.mxu0 0
        %1476 = vmatprep.subr.bf16.mxu0 0
        %1477 = vmatpush2.bf16.msra.mxu0 0
        %1478 = vmatprep.subr.bf16.mxu0 0
        %1479 = vmatpush2.bf16.msra.mxu0 0
        %1480 = vmatprep.subr.bf16.mxu0 0
        %1481 = vmatpush2.bf16.msra.mxu0 0
        %1482 = vmatprep.subr.bf16.mxu0 0
        %1483 = vmatpush2.bf16.msra.mxu0 0
        %1484 = vmatprep.mubr.bf16.mxu0 0
        %1485 = vmatmul.mubr.bf16.gmra.mxu0 %v1444
        %v1486 = vpop.f32.mrf.mxu0
        %v1487 = vadd.f32 0.0, %v1486
        %v1488 = vpop.f32.mrf.mxu0
        %v1489 = vpop.f32.mrf.mxu0
        %v1490 = vadd.f32 0.0, %v1489
        %v1491 = vpop.f32.mrf.mxu0
        %1492 = vmatprep.mubr.bf16.mxu0 0
        %1493 = vmatmul.mubr.bf16.gmra.mxu0 %v1445
        %v1494 = vpop.f32.mrf.mxu0
        %v1495 = vadd.f32 0.0, %v1494
        %v1496 = vpop.f32.mrf.mxu0
        %v1497 = vpop.f32.mrf.mxu0
        %v1498 = vadd.f32 0.0, %v1497
        %v1499 = vpop.f32.mrf.mxu0
        %1500 = vmatprep.mubr.bf16.mxu0 0
        %1501 = vmatmul.mubr.bf16.gmra.mxu0 %v1446
        %v1502 = vpop.f32.mrf.mxu0
        %v1503 = vadd.f32 0.0, %v1502
        %v1504 = vpop.f32.mrf.mxu0
        %v1505 = vpop.f32.mrf.mxu0
        %v1506 = vadd.f32 0.0, %v1505
        %v1507 = vpop.f32.mrf.mxu0
        %1508 = vmatprep.mubr.bf16.mxu0 0
        %1509 = vmatmul.mubr.bf16.gmra.mxu0 %v1447
        %v1510 = vpop.f32.mrf.mxu0
        %v1511 = vadd.f32 0.0, %v1510
        %v1512 = vpop.f32.mrf.mxu0
        %v1513 = vpop.f32.mrf.mxu0
        %v1514 = vadd.f32 0.0, %v1513
        %v1515 = vpop.f32.mrf.mxu0
        %1516 = vmatprep.mubr.bf16.mxu0 0
        %1517 = vmatmul.mubr.bf16.gmra.mxu0 %v1448
        %v1518 = vpop.f32.mrf.mxu0
        %v1519 = vadd.f32 0.0, %v1518
        %v1520 = vpop.f32.mrf.mxu0
        %v1521 = vpop.f32.mrf.mxu0
        %v1522 = vadd.f32 0.0, %v1521
        %v1523 = vpop.f32.mrf.mxu0
        %1524 = vmatprep.mubr.bf16.mxu0 0
        %1525 = vmatmul.mubr.bf16.gmra.mxu0 %v1449
        %v1526 = vpop.f32.mrf.mxu0
        %v1527 = vadd.f32 0.0, %v1526
        %v1528 = vpop.f32.mrf.mxu0
        %v1529 = vpop.f32.mrf.mxu0
        %v1530 = vadd.f32 0.0, %v1529
        %v1531 = vpop.f32.mrf.mxu0
        %1532 = vmatprep.mubr.bf16.mxu0 0
        %1533 = vmatmul.mubr.bf16.gmra.mxu0 %v1450
        %v1534 = vpop.f32.mrf.mxu0
        %v1535 = vadd.f32 0.0, %v1534
        %v1536 = vpop.f32.mrf.mxu0
        %v1537 = vpop.f32.mrf.mxu0
        %v1538 = vadd.f32 0.0, %v1537
        %v1539 = vpop.f32.mrf.mxu0
        %1540 = vmatprep.mubr.bf16.mxu0 0
        %1541 = vmatmul.mubr.bf16.gmra.mxu0 %v1451
        %v1542 = vpop.f32.mrf.mxu0
        %v1543 = vadd.f32 0.0, %v1542
        %v1544 = vpop.f32.mrf.mxu0
        %v1545 = vpop.f32.mrf.mxu0
        %v1546 = vadd.f32 0.0, %v1545
        %v1547 = vpop.f32.mrf.mxu0
        %1548 = vdwg.mxu0
        %vm1549 = vcmp.gt.f32.partialorder %v1487, 0.0
        %vm1550 = vcmp.gt.f32.partialorder %v1490, 0.0
        %vm1551 = vcmp.gt.f32.partialorder %v1495, 0.0
        %vm1552 = vcmp.gt.f32.partialorder %v1498, 0.0
        %vm1553 = vcmp.gt.f32.partialorder %v1503, 0.0
        %vm1554 = vcmp.gt.f32.partialorder %v1506, 0.0
        %vm1555 = vcmp.gt.f32.partialorder %v1511, 0.0
        %vm1556 = vcmp.gt.f32.partialorder %v1514, 0.0
        %vm1557 = vcmp.gt.f32.partialorder %v1519, 0.0
        %vm1558 = vcmp.gt.f32.partialorder %v1522, 0.0
        %vm1559 = vcmp.gt.f32.partialorder %v1527, 0.0
        %vm1560 = vcmp.gt.f32.partialorder %v1530, 0.0
        %vm1561 = vcmp.gt.f32.partialorder %v1535, 0.0
        %vm1562 = vcmp.gt.f32.partialorder %v1538, 0.0
        %vm1563 = vcmp.gt.f32.partialorder %v1543, 0.0
        %vm1564 = vcmp.gt.f32.partialorder %v1546, 0.0
        %v1565 = vsel %vm1549, 1, 0
        %v1566 = vsel %vm1550, 1, 0
        %v1567 = vsel %vm1551, 1, 0
        %v1568 = vsel %vm1552, 1, 0
        %v1569 = vsel %vm1553, 1, 0
        %v1570 = vsel %vm1554, 1, 0
        %v1571 = vsel %vm1555, 1, 0
        %v1572 = vsel %vm1556, 1, 0
        %v1573 = vsel %vm1557, 1, 0
        %v1574 = vsel %vm1558, 1, 0
        %v1575 = vsel %vm1559, 1, 0
        %v1576 = vsel %vm1560, 1, 0
        %v1577 = vsel %vm1561, 1, 0
        %v1578 = vsel %vm1562, 1, 0
        %v1579 = vsel %vm1563, 1, 0
        %v1580 = vsel %vm1564, 1, 0
        %v1581 = vcvt.s32.f32 %v1565
        %v1582 = vcvt.s32.f32 %v1566
        %v1583 = vcvt.s32.f32 %v1567
        %v1584 = vcvt.s32.f32 %v1568
        %v1585 = vcvt.s32.f32 %v1569
        %v1586 = vcvt.s32.f32 %v1570
        %v1587 = vcvt.s32.f32 %v1571
        %v1588 = vcvt.s32.f32 %v1572
        %v1589 = vcvt.s32.f32 %v1573
        %v1590 = vcvt.s32.f32 %v1574
        %v1591 = vcvt.s32.f32 %v1575
        %v1592 = vcvt.s32.f32 %v1576
        %v1593 = vcvt.s32.f32 %v1577
        %v1594 = vcvt.s32.f32 %v1578
        %v1595 = vcvt.s32.f32 %v1579
        %v1596 = vcvt.s32.f32 %v1580
        %v1597 = vpack.c.bf16 %v1582, %v1581
        %v1598 = vpack.c.bf16 %v1584, %v1583
        %v1599 = vpack.c.bf16 %v1586, %v1585
        %v1600 = vpack.c.bf16 %v1588, %v1587
        %v1601 = vpack.c.bf16 %v1590, %v1589
        %v1602 = vpack.c.bf16 %v1592, %v1591
        %v1603 = vpack.c.bf16 %v1594, %v1593
        %v1604 = vpack.c.bf16 %v1596, %v1595
        %v1605 = vunpack.c.l.bf16 %v1597
        %v1606 = vunpack.c.h.bf16 %v1597
        %v1607 = vunpack.c.l.bf16 %v1598
        %v1608 = vunpack.c.h.bf16 %v1598
        %v1609 = vunpack.c.l.bf16 %v1599
        %v1610 = vunpack.c.h.bf16 %v1599
        %v1611 = vunpack.c.l.bf16 %v1600
        %v1612 = vunpack.c.h.bf16 %v1600
        %v1613 = vunpack.c.l.bf16 %v1601
        %v1614 = vunpack.c.h.bf16 %v1601
        %v1615 = vunpack.c.l.bf16 %v1602
        %v1616 = vunpack.c.h.bf16 %v1602
        %v1617 = vunpack.c.l.bf16 %v1603
        %v1618 = vunpack.c.h.bf16 %v1603
        %v1619 = vunpack.c.l.bf16 %v1604
        %v1620 = vunpack.c.h.bf16 %v1604
        %v1621 = vadd.f32 %v1605, %v1606
        %v1622 = vadd.f32 %v1621, %v1607
        %v1623 = vadd.f32 %v1622, %v1608
        %v1624 = vadd.f32 %v1623, %v1609
        %v1625 = vadd.f32 %v1624, %v1610
        %v1626 = vadd.f32 %v1625, %v1611
        %v1627 = vadd.f32 %v1626, %v1612
        %v1628 = vadd.f32 %v1627, %v1613
        %v1629 = vadd.f32 %v1628, %v1614
        %v1630 = vadd.f32 %v1629, %v1615
        %v1631 = vadd.f32 %v1630, %v1616
        %v1632 = vadd.f32 %v1631, %v1617
        %v1633 = vadd.f32 %v1632, %v1618
        %v1634 = vadd.f32 %v1633, %v1619
        %v1635 = vadd.f32 %v1634, %v1620
        %v1636 = vrot.slane %v1635, 4
        %v1637 = vadd.f32 %v1635, %v1636
        %v1638 = vrot.slane %v1637, 2
        %v1639 = vadd.f32 %v1637, %v1638
        %v1640 = vrot.slane %v1639, 1
        %v1641 = vadd.f32 %v1639, %v1640
        %v1642 = vrcp.pop %v1641
        %v1643 = vmul.f32 1.0, %v1642
        %1644 = vmatprep.subr.mxu0 0.0
        %1645 = vmatpush1.msra.mxu0 %v1620
        %1646 = vmatprep.subr.mxu0 0.0
        %1647 = vmatpush1.msra.mxu0 %v1619
        %1648 = vmatprep.subr.mxu0 0.0
        %1649 = vmatpush1.msra.mxu0 %v1618
        %1650 = vmatprep.subr.mxu0 0.0
        %1651 = vmatpush1.msra.mxu0 %v1617
        %1652 = vmatprep.subr.mxu0 0.0
        %1653 = vmatpush1.msra.mxu0 %v1616
        %1654 = vmatprep.subr.mxu0 0.0
        %1655 = vmatpush1.msra.mxu0 %v1615
        %1656 = vmatprep.subr.mxu0 0.0
        %1657 = vmatpush1.msra.mxu0 %v1614
        %1658 = vmatprep.subr.mxu0 0.0
        %1659 = vmatpush1.msra.mxu0 %v1613
        %1660 = vmatprep.subr.mxu0 0.0
        %1661 = vmatpush1.msra.mxu0 %v1612
        %1662 = vmatprep.subr.mxu0 0.0
        %1663 = vmatpush1.msra.mxu0 %v1611
        %1664 = vmatprep.subr.mxu0 0.0
        %1665 = vmatpush1.msra.mxu0 %v1610
        %1666 = vmatprep.subr.mxu0 0.0
        %1667 = vmatpush1.msra.mxu0 %v1609
        %1668 = vmatprep.subr.mxu0 0.0
        %1669 = vmatpush1.msra.mxu0 %v1608
        %1670 = vmatprep.subr.mxu0 0.0
        %1671 = vmatpush1.msra.mxu0 %v1607
        %1672 = vmatprep.subr.mxu0 0.0
        %1673 = vmatpush1.msra.mxu0 %v1606
        %1674 = vmatprep.subr.mxu0 0.0
        %1675 = vmatpush1.msra.mxu0 %v1605
        %1676 = vmatprep.subr.mxu0 0.0
        %1677 = vmatpush2.msra.mxu0 0.0
        %1678 = vmatprep.subr.mxu0 0.0
        %1679 = vmatpush2.msra.mxu0 0.0
        %1680 = vmatprep.subr.mxu0 0.0
        %1681 = vmatpush2.msra.mxu0 0.0
        %1682 = vmatprep.subr.mxu0 0.0
        %1683 = vmatpush2.msra.mxu0 0.0
        %1684 = vmatprep.subr.mxu0 0.0
        %1685 = vmatpush2.msra.mxu0 0.0
        %1686 = vmatprep.subr.mxu0 0.0
        %1687 = vmatpush2.msra.mxu0 0.0
        %1688 = vmatprep.subr.mxu0 0.0
        %1689 = vmatpush2.msra.mxu0 0.0
        %1690 = vmatprep.subr.mxu0 0.0
        %1691 = vmatpush2.msra.mxu0 0.0
        %1692 = vmatprep.subr.mxu0 0.0
        %1693 = vmatpush2.msra.mxu0 0.0
        %1694 = vmatprep.subr.mxu0 0.0
        %1695 = vmatpush2.msra.mxu0 0.0
        %1696 = vmatprep.subr.mxu0 0.0
        %1697 = vmatpush2.msra.mxu0 0.0
        %1698 = vmatprep.subr.mxu0 0.0
        %1699 = vmatpush2.msra.mxu0 0.0
        %1700 = vmatprep.subr.mxu0 0.0
        %1701 = vmatpush2.msra.mxu0 0.0
        %1702 = vmatprep.subr.mxu0 0.0
        %1703 = vmatpush2.msra.mxu0 0.0
        %1704 = vmatprep.subr.mxu0 0.0
        %1705 = vmatpush2.msra.mxu0 0.0
        %1706 = vmatprep.subr.mxu0 0.0
        %1707 = vmatpush2.msra.mxu0 0.0
        %1708 = vmatprep.mubr.f32.mxu0 0.0
        %1709 = vmatmul.mubr.f32.gmra.mxu0 %v238
        %v1710 = vpop.f32.mrf.mxu0
        %v1711 = vadd.f32 0.0, %v1710
        %v1712 = vpop.f32.mrf.mxu0
        %1713 = vdwg.mxu0
        %v1714 = vmul.f32 %v1711, %v1643
        %v1715 = vld [vmem:[%s1] sm:$0xff]
        %v1716 = vld [vmem:[%s1 + $0x8] sm:$0xff]
        %v1717 = vld [vmem:[%s1 + $0x10] sm:$0xff]
        %v1718 = vld [vmem:[%s1 + $0x18] sm:$0xff]
        %v1719 = vld [vmem:[%s1 + $0x20] sm:$0xff]
        %v1720 = vld [vmem:[%s1 + $0x28] sm:$0xff]
        %v1721 = vld [vmem:[%s1 + $0x30] sm:$0xff]
        %v1722 = vld [vmem:[%s1 + $0x38] sm:$0xff]
        %v1723 = vld [vmem:[%s1 + $0x40] sm:$0xff]
        %v1724 = vld [vmem:[%s1 + $0x48] sm:$0xff]
        %v1725 = vld [vmem:[%s1 + $0x50] sm:$0xff]
        %v1726 = vld [vmem:[%s1 + $0x58] sm:$0xff]
        %v1727 = vld [vmem:[%s1 + $0x60] sm:$0xff]
        %v1728 = vld [vmem:[%s1 + $0x68] sm:$0xff]
        %v1729 = vld [vmem:[%s1 + $0x70] sm:$0xff]
        %v1730 = vld [vmem:[%s1 + $0x78] sm:$0xff]
        %v1731 = vld [vmem:[%s1 + $0x80] sm:$0xff]
        %v1732 = vld [vmem:[%s1 + $0x88] sm:$0xff]
        %v1733 = vld [vmem:[%s1 + $0x90] sm:$0xff]
        %v1734 = vld [vmem:[%s1 + $0x98] sm:$0xff]
        %v1735 = vld [vmem:[%s1 + $0xa0] sm:$0xff]
        %v1736 = vld [vmem:[%s1 + $0xa8] sm:$0xff]
        %v1737 = vld [vmem:[%s1 + $0xb0] sm:$0xff]
        %v1738 = vld [vmem:[%s1 + $0xb8] sm:$0xff]
        %v1739 = vld [vmem:[%s1 + $0xc0] sm:$0xff]
        %v1740 = vld [vmem:[%s1 + $0xc8] sm:$0xff]
        %v1741 = vld [vmem:[%s1 + $0xd0] sm:$0xff]
        %v1742 = vld [vmem:[%s1 + $0xd8] sm:$0xff]
        %v1743 = vld [vmem:[%s1 + $0xe0] sm:$0xff]
        %v1744 = vld [vmem:[%s1 + $0xe8] sm:$0xff]
        %v1745 = vld [vmem:[%s1 + $0xf0] sm:$0xff]
        %v1746 = vld [vmem:[%s1 + $0xf8] sm:$0xff]
        %v1747 = vld [vmem:[%s1 + $0x100] sm:$0xff]
        %v1748 = vld [vmem:[%s1 + $0x108] sm:$0xff]
        %v1749 = vld [vmem:[%s1 + $0x110] sm:$0xff]
        %v1750 = vld [vmem:[%s1 + $0x118] sm:$0xff]
        %v1751 = vld [vmem:[%s1 + $0x120] sm:$0xff]
        %v1752 = vld [vmem:[%s1 + $0x128] sm:$0xff]
        %v1753 = vld [vmem:[%s1 + $0x130] sm:$0xff]
        %v1754 = vld [vmem:[%s1 + $0x138] sm:$0xff]
        %v1755 = vld [vmem:[%s1 + $0x140] sm:$0xff]
        %v1756 = vld [vmem:[%s1 + $0x148] sm:$0xff]
        %v1757 = vld [vmem:[%s1 + $0x150] sm:$0xff]
        %v1758 = vld [vmem:[%s1 + $0x158] sm:$0xff]
        %v1759 = vld [vmem:[%s1 + $0x160] sm:$0xff]
        %v1760 = vld [vmem:[%s1 + $0x168] sm:$0xff]
        %v1761 = vld [vmem:[%s1 + $0x170] sm:$0xff]
        %v1762 = vld [vmem:[%s1 + $0x178] sm:$0xff]
        %1763 = vmatprep.subr.mxu0 0.0
        %1764 = vmatpush1.xpose.msra.mxu0 %v1730
        %1765 = vmatprep.subr.mxu0 0.0
        %1766 = vmatpush1.xpose.msra.mxu0 %v1729
        %1767 = vmatprep.subr.mxu0 0.0
        %1768 = vmatpush1.xpose.msra.mxu0 %v1728
        %1769 = vmatprep.subr.mxu0 0.0
        %1770 = vmatpush1.xpose.msra.mxu0 %v1727
        %1771 = vmatprep.subr.mxu0 0.0
        %1772 = vmatpush1.xpose.msra.mxu0 %v1726
        %1773 = vmatprep.subr.mxu0 0.0
        %1774 = vmatpush1.xpose.msra.mxu0 %v1725
        %1775 = vmatprep.subr.mxu0 0.0
        %1776 = vmatpush1.xpose.msra.mxu0 %v1724
        %1777 = vmatprep.subr.mxu0 0.0
        %1778 = vmatpush1.xpose.msra.mxu0 %v1723
        %1779 = vmatprep.subr.mxu0 0.0
        %1780 = vmatpush1.xpose.msra.mxu0 %v1722
        %1781 = vmatprep.subr.mxu0 0.0
        %1782 = vmatpush1.xpose.msra.mxu0 %v1721
        %1783 = vmatprep.subr.mxu0 0.0
        %1784 = vmatpush1.xpose.msra.mxu0 %v1720
        %1785 = vmatprep.subr.mxu0 0.0
        %1786 = vmatpush1.xpose.msra.mxu0 %v1719
        %1787 = vmatprep.subr.mxu0 0.0
        %1788 = vmatpush1.xpose.msra.mxu0 %v1718
        %1789 = vmatprep.subr.mxu0 0.0
        %1790 = vmatpush1.xpose.msra.mxu0 %v1717
        %1791 = vmatprep.subr.mxu0 0.0
        %1792 = vmatpush1.xpose.msra.mxu0 %v1716
        %1793 = vmatprep.subr.mxu0 0.0
        %1794 = vmatpush1.xpose.msra.mxu0 %v1715
        %1795 = vmatprep.subr.mxu0 0.0
        %1796 = vmatpush2.xpose.msra.mxu0 0.0
        %1797 = vmatprep.subr.mxu0 0.0
        %1798 = vmatpush2.xpose.msra.mxu0 0.0
        %1799 = vmatprep.subr.mxu0 0.0
        %1800 = vmatpush2.xpose.msra.mxu0 0.0
        %1801 = vmatprep.subr.mxu0 0.0
        %1802 = vmatpush2.xpose.msra.mxu0 0.0
        %1803 = vmatprep.subr.mxu0 0.0
        %1804 = vmatpush2.xpose.msra.mxu0 0.0
        %1805 = vmatprep.subr.mxu0 0.0
        %1806 = vmatpush2.xpose.msra.mxu0 0.0
        %1807 = vmatprep.subr.mxu0 0.0
        %1808 = vmatpush2.xpose.msra.mxu0 0.0
        %1809 = vmatprep.subr.mxu0 0.0
        %1810 = vmatpush2.xpose.msra.mxu0 0.0
        %1811 = vmatprep.subr.mxu0 0.0
        %1812 = vmatpush2.xpose.msra.mxu0 0.0
        %1813 = vmatprep.subr.mxu0 0.0
        %1814 = vmatpush2.xpose.msra.mxu0 0.0
        %1815 = vmatprep.subr.mxu0 0.0
        %1816 = vmatpush2.xpose.msra.mxu0 0.0
        %1817 = vmatprep.subr.mxu0 0.0
        %1818 = vmatpush2.xpose.msra.mxu0 0.0
        %1819 = vmatprep.subr.mxu0 0.0
        %1820 = vmatpush2.xpose.msra.mxu0 0.0
        %1821 = vmatprep.subr.mxu0 0.0
        %1822 = vmatpush2.xpose.msra.mxu0 0.0
        %1823 = vmatprep.subr.mxu0 0.0
        %1824 = vmatpush2.xpose.msra.mxu0 0.0
        %1825 = vmatprep.subr.mxu0 0.0
        %1826 = vmatpush2.xpose.msra.mxu0 0.0
        %1827 = vmatprep.mubr.f32.mxu0 0.0
        %1828 = vmatmul.mubr.f32.gmra.mxu0 %v1714
        %v1829 = vpop.f32.mrf.mxu0
        %v1830 = vadd.f32 0.0, %v1829
        %v1831 = vpop.f32.mrf.mxu0
        %1832 = vdwg.mxu0
        %1833 = vmatprep.subr.mxu0 0.0
        %1834 = vmatpush1.xpose.msra.mxu0 %v1746
        %1835 = vmatprep.subr.mxu0 0.0
        %1836 = vmatpush1.xpose.msra.mxu0 %v1745
        %1837 = vmatprep.subr.mxu0 0.0
        %1838 = vmatpush1.xpose.msra.mxu0 %v1744
        %1839 = vmatprep.subr.mxu0 0.0
        %1840 = vmatpush1.xpose.msra.mxu0 %v1743
        %1841 = vmatprep.subr.mxu0 0.0
        %1842 = vmatpush1.xpose.msra.mxu0 %v1742
        %1843 = vmatprep.subr.mxu0 0.0
        %1844 = vmatpush1.xpose.msra.mxu0 %v1741
        %1845 = vmatprep.subr.mxu0 0.0
        %1846 = vmatpush1.xpose.msra.mxu0 %v1740
        %1847 = vmatprep.subr.mxu0 0.0
        %1848 = vmatpush1.xpose.msra.mxu0 %v1739
        %1849 = vmatprep.subr.mxu0 0.0
        %1850 = vmatpush1.xpose.msra.mxu0 %v1738
        %1851 = vmatprep.subr.mxu0 0.0
        %1852 = vmatpush1.xpose.msra.mxu0 %v1737
        %1853 = vmatprep.subr.mxu0 0.0
        %1854 = vmatpush1.xpose.msra.mxu0 %v1736
        %1855 = vmatprep.subr.mxu0 0.0
        %1856 = vmatpush1.xpose.msra.mxu0 %v1735
        %1857 = vmatprep.subr.mxu0 0.0
        %1858 = vmatpush1.xpose.msra.mxu0 %v1734
        %1859 = vmatprep.subr.mxu0 0.0
        %1860 = vmatpush1.xpose.msra.mxu0 %v1733
        %1861 = vmatprep.subr.mxu0 0.0
        %1862 = vmatpush1.xpose.msra.mxu0 %v1732
        %1863 = vmatprep.subr.mxu0 0.0
        %1864 = vmatpush1.xpose.msra.mxu0 %v1731
        %1865 = vmatprep.subr.mxu0 0.0
        %1866 = vmatpush2.xpose.msra.mxu0 0.0
        %1867 = vmatprep.subr.mxu0 0.0
        %1868 = vmatpush2.xpose.msra.mxu0 0.0
        %1869 = vmatprep.subr.mxu0 0.0
        %1870 = vmatpush2.xpose.msra.mxu0 0.0
        %1871 = vmatprep.subr.mxu0 0.0
        %1872 = vmatpush2.xpose.msra.mxu0 0.0
        %1873 = vmatprep.subr.mxu0 0.0
        %1874 = vmatpush2.xpose.msra.mxu0 0.0
        %1875 = vmatprep.subr.mxu0 0.0
        %1876 = vmatpush2.xpose.msra.mxu0 0.0
        %1877 = vmatprep.subr.mxu0 0.0
        %1878 = vmatpush2.xpose.msra.mxu0 0.0
        %1879 = vmatprep.subr.mxu0 0.0
        %1880 = vmatpush2.xpose.msra.mxu0 0.0
        %1881 = vmatprep.subr.mxu0 0.0
        %1882 = vmatpush2.xpose.msra.mxu0 0.0
        %1883 = vmatprep.subr.mxu0 0.0
        %1884 = vmatpush2.xpose.msra.mxu0 0.0
        %1885 = vmatprep.subr.mxu0 0.0
        %1886 = vmatpush2.xpose.msra.mxu0 0.0
        %1887 = vmatprep.subr.mxu0 0.0
        %1888 = vmatpush2.xpose.msra.mxu0 0.0
        %1889 = vmatprep.subr.mxu0 0.0
        %1890 = vmatpush2.xpose.msra.mxu0 0.0
        %1891 = vmatprep.subr.mxu0 0.0
        %1892 = vmatpush2.xpose.msra.mxu0 0.0
        %1893 = vmatprep.subr.mxu0 0.0
        %1894 = vmatpush2.xpose.msra.mxu0 0.0
        %1895 = vmatprep.subr.mxu0 0.0
        %1896 = vmatpush2.xpose.msra.mxu0 0.0
        %1897 = vmatprep.mubr.f32.mxu0 0.0
        %1898 = vmatmul.mubr.f32.gmra.mxu0 %v1714
        %v1899 = vpop.f32.mrf.mxu0
        %v1900 = vadd.f32 0.0, %v1899
        %v1901 = vpop.f32.mrf.mxu0
        %1902 = vdwg.mxu0
        %1903 = vmatprep.subr.mxu0 0.0
        %1904 = vmatpush1.xpose.msra.mxu0 %v1762
        %1905 = vmatprep.subr.mxu0 0.0
        %1906 = vmatpush1.xpose.msra.mxu0 %v1761
        %1907 = vmatprep.subr.mxu0 0.0
        %1908 = vmatpush1.xpose.msra.mxu0 %v1760
        %1909 = vmatprep.subr.mxu0 0.0
        %1910 = vmatpush1.xpose.msra.mxu0 %v1759
        %1911 = vmatprep.subr.mxu0 0.0
        %1912 = vmatpush1.xpose.msra.mxu0 %v1758
        %1913 = vmatprep.subr.mxu0 0.0
        %1914 = vmatpush1.xpose.msra.mxu0 %v1757
        %1915 = vmatprep.subr.mxu0 0.0
        %1916 = vmatpush1.xpose.msra.mxu0 %v1756
        %1917 = vmatprep.subr.mxu0 0.0
        %1918 = vmatpush1.xpose.msra.mxu0 %v1755
        %1919 = vmatprep.subr.mxu0 0.0
        %1920 = vmatpush1.xpose.msra.mxu0 %v1754
        %1921 = vmatprep.subr.mxu0 0.0
        %1922 = vmatpush1.xpose.msra.mxu0 %v1753
        %1923 = vmatprep.subr.mxu0 0.0
        %1924 = vmatpush1.xpose.msra.mxu0 %v1752
        %1925 = vmatprep.subr.mxu0 0.0
        %1926 = vmatpush1.xpose.msra.mxu0 %v1751
        %1927 = vmatprep.subr.mxu0 0.0
        %1928 = vmatpush1.xpose.msra.mxu0 %v1750
        %1929 = vmatprep.subr.mxu0 0.0
        %1930 = vmatpush1.xpose.msra.mxu0 %v1749
        %1931 = vmatprep.subr.mxu0 0.0
        %1932 = vmatpush1.xpose.msra.mxu0 %v1748
        %1933 = vmatprep.subr.mxu0 0.0
        %1934 = vmatpush1.xpose.msra.mxu0 %v1747
        %1935 = vmatprep.subr.mxu0 0.0
        %1936 = vmatpush2.xpose.msra.mxu0 0.0
        %1937 = vmatprep.subr.mxu0 0.0
        %1938 = vmatpush2.xpose.msra.mxu0 0.0
        %1939 = vmatprep.subr.mxu0 0.0
        %1940 = vmatpush2.xpose.msra.mxu0 0.0
        %1941 = vmatprep.subr.mxu0 0.0
        %1942 = vmatpush2.xpose.msra.mxu0 0.0
        %1943 = vmatprep.subr.mxu0 0.0
        %1944 = vmatpush2.xpose.msra.mxu0 0.0
        %1945 = vmatprep.subr.mxu0 0.0
        %1946 = vmatpush2.xpose.msra.mxu0 0.0
        %1947 = vmatprep.subr.mxu0 0.0
        %1948 = vmatpush2.xpose.msra.mxu0 0.0
        %1949 = vmatprep.subr.mxu0 0.0
        %1950 = vmatpush2.xpose.msra.mxu0 0.0
        %1951 = vmatprep.subr.mxu0 0.0
        %1952 = vmatpush2.xpose.msra.mxu0 0.0
        %1953 = vmatprep.subr.mxu0 0.0
        %1954 = vmatpush2.xpose.msra.mxu0 0.0
        %1955 = vmatprep.subr.mxu0 0.0
        %1956 = vmatpush2.xpose.msra.mxu0 0.0
        %1957 = vmatprep.subr.mxu0 0.0
        %1958 = vmatpush2.xpose.msra.mxu0 0.0
        %1959 = vmatprep.subr.mxu0 0.0
        %1960 = vmatpush2.xpose.msra.mxu0 0.0
        %1961 = vmatprep.subr.mxu0 0.0
        %1962 = vmatpush2.xpose.msra.mxu0 0.0
        %1963 = vmatprep.subr.mxu0 0.0
        %1964 = vmatpush2.xpose.msra.mxu0 0.0
        %1965 = vmatprep.subr.mxu0 0.0
        %1966 = vmatpush2.xpose.msra.mxu0 0.0
        %1967 = vmatprep.mubr.f32.mxu0 0.0
        %1968 = vmatmul.mubr.f32.gmra.mxu0 %v1714
        %v1969 = vpop.f32.mrf.mxu0
        %v1970 = vadd.f32 0.0, %v1969
        %v1971 = vpop.f32.mrf.mxu0
        %1972 = vdwg.mxu0
        %v1973 = vsub.f32 %v1900, %v1830
        %v1974 = vsub.f32 %v1970, %v1830
        %v1976 = vrot.slane %v1974, 1
        %v1978 = vmul.f32 %v1973, %v1976
        %v1979 = vrot.slane %v1974, 7
        %v1981 = vmul.f32 %v1973, %v1979
        %v1983 = vrot.slane %v1981, 1
        %v1985 = vsub.f32 %v1978, %v1983
        %v1986 = vrot.slane %v1974, 6
        %v1988 = vmul.f32 %v1973, %v1986
        %v1989 = vrot.slane %v1974, 2
        %v1991 = vmul.f32 %v1973, %v1989
        %v1993 = vrot.slane %v1991, 6
        %v1995 = vsub.f32 %v1988, %v1993
        %v1997 = vrot.slane %v1985, 1
        %v2000 = vrot.slane %v1995, 1
        %v2002 = vrot.slane %v1985, 6
        %vm2004 = vcmask 1040384
        %v2005 = vsel %vm2004, %v1997, %v2000
        %vm2006 = vcmask 1041408
        %v2007 = vsel %vm2006, %v2005, %v2002
        %v2008 = vmul.f32 %v2007, %v2007
        %v2009 = vsel %vm320, %v2008, 0.0
        %v2010 = vrot.slane %v2009, 4
        %v2011 = vadd.f32 %v2009, %v2010
        %v2012 = vrot.slane %v2011, 2
        %v2013 = vadd.f32 %v2011, %v2012
        %v2014 = vrot.slane %v2013, 1
        %v2015 = vadd.f32 %v2013, %v2014
        %v2016 = vrsqrt.pop %v2015
        %v2017 = vmul.f32 %v2015, %v2016
        %vm2018 = vcmp.eq.f32.partialorder %v2015, inf
        %v2019 = vsel %vm2018, %v2015, %v2017
        %vm2020 = vcmp.eq.f32.partialorder %v2015, 0.0
        %v2021 = vand.u32 %v2015, 2147483648
        %v2022 = vsel %vm2020, %v2021, %v2019
        %v2023 = vmax.f32 %v2022, 1e-12
        %v2024 = vrcp.pop %v2023
        %v2025 = vmul.f32 %v2007, %v2024
        %v2026 = vsub.f32 %v1970, %v1900
        %v2028 = vrot.slane %v2026, 1
        %v2030 = vmul.f32 %v2025, %v2028
        %v2031 = vrot.slane %v2026, 7
        %v2033 = vmul.f32 %v2025, %v2031
        %v2035 = vrot.slane %v2033, 1
        %v2037 = vsub.f32 %v2030, %v2035
        %v2038 = vrot.slane %v2026, 6
        %v2040 = vmul.f32 %v2025, %v2038
        %v2041 = vrot.slane %v2026, 2
        %v2043 = vmul.f32 %v2025, %v2041
        %v2045 = vrot.slane %v2043, 6
        %v2047 = vsub.f32 %v2040, %v2045
        %v2049 = vrot.slane %v2037, 1
        %v2052 = vrot.slane %v2047, 1
        %v2054 = vrot.slane %v2037, 6
        %v2056 = vsel %vm2004, %v2049, %v2052
        %v2057 = vsel %vm2006, %v2056, %v2054
        %v2058 = vmul.f32 %v2057, 0.5
        %v2059 = vsub.f32 %v1830, %v1970
        %v2061 = vrot.slane %v2059, 1
        %v2063 = vmul.f32 %v2025, %v2061
        %v2064 = vrot.slane %v2059, 7
        %v2066 = vmul.f32 %v2025, %v2064
        %v2068 = vrot.slane %v2066, 1
        %v2070 = vsub.f32 %v2063, %v2068
        %v2071 = vrot.slane %v2059, 6
        %v2073 = vmul.f32 %v2025, %v2071
        %v2074 = vrot.slane %v2059, 2
        %v2076 = vmul.f32 %v2025, %v2074
        %v2078 = vrot.slane %v2076, 6
        %v2080 = vsub.f32 %v2073, %v2078
        %v2082 = vrot.slane %v2070, 1
        %v2085 = vrot.slane %v2080, 1
        %v2087 = vrot.slane %v2070, 6
        %v2089 = vsel %vm2004, %v2082, %v2085
        %v2090 = vsel %vm2006, %v2089, %v2087
        %v2091 = vmul.f32 %v2090, 0.5
        %v2093 = vrot.slane %v1973, 1
        %v2095 = vmul.f32 %v2025, %v2093
        %v2096 = vrot.slane %v1973, 7
        %v2098 = vmul.f32 %v2025, %v2096
        %v2100 = vrot.slane %v2098, 1
        %v2102 = vsub.f32 %v2095, %v2100
        %v2103 = vrot.slane %v1973, 6
        %v2105 = vmul.f32 %v2025, %v2103
        %v2106 = vrot.slane %v1973, 2
        %v2108 = vmul.f32 %v2025, %v2106
        %v2110 = vrot.slane %v2108, 6
        %v2112 = vsub.f32 %v2105, %v2110
        %v2114 = vrot.slane %v2102, 1
        %v2117 = vrot.slane %v2112, 1
        %v2119 = vrot.slane %v2102, 6
        %v2121 = vsel %vm2004, %v2114, %v2117
        %v2122 = vsel %vm2006, %v2121, %v2119
        %v2123 = vmul.f32 %v2122, 0.5
        %v2125 = vrot.slane %v1970, 1
        %v2127 = vmul.f32 %v1900, %v2125
        %v2128 = vrot.slane %v1970, 7
        %v2130 = vmul.f32 %v1900, %v2128
        %v2132 = vrot.slane %v2130, 1
        %v2134 = vsub.f32 %v2127, %v2132
        %v2135 = vrot.slane %v1970, 6
        %v2137 = vmul.f32 %v1900, %v2135
        %v2138 = vrot.slane %v1970, 2
        %v2140 = vmul.f32 %v1900, %v2138
        %v2142 = vrot.slane %v2140, 6
        %v2144 = vsub.f32 %v2137, %v2142
        %v2146 = vrot.slane %v2134, 1
        %v2149 = vrot.slane %v2144, 1
        %v2151 = vrot.slane %v2134, 6
        %v2153 = vsel %vm2004, %v2146, %v2149
        %v2154 = vsel %vm2006, %v2153, %v2151
        %v2156 = vrot.slane %v1830, 1
        %v2158 = vmul.f32 %v1970, %v2156
        %v2159 = vrot.slane %v1830, 7
        %v2161 = vmul.f32 %v1970, %v2159
        %v2163 = vrot.slane %v2161, 1
        %v2165 = vsub.f32 %v2158, %v2163
        %v2166 = vrot.slane %v1830, 6
        %v2168 = vmul.f32 %v1970, %v2166
        %v2169 = vrot.slane %v1830, 2
        %v2171 = vmul.f32 %v1970, %v2169
        %v2173 = vrot.slane %v2171, 6
        %v2175 = vsub.f32 %v2168, %v2173
        %v2177 = vrot.slane %v2165, 1
        %v2180 = vrot.slane %v2175, 1
        %v2182 = vrot.slane %v2165, 6
        %v2184 = vsel %vm2004, %v2177, %v2180
        %v2185 = vsel %vm2006, %v2184, %v2182
        %v2187 = vrot.slane %v1900, 1
        %v2189 = vmul.f32 %v1830, %v2187
        %v2190 = vrot.slane %v1900, 7
        %v2192 = vmul.f32 %v1830, %v2190
        %v2194 = vrot.slane %v2192, 1
        %v2196 = vsub.f32 %v2189, %v2194
        %v2197 = vrot.slane %v1900, 6
        %v2199 = vmul.f32 %v1830, %v2197
        %v2200 = vrot.slane %v1900, 2
        %v2202 = vmul.f32 %v1830, %v2200
        %v2204 = vrot.slane %v2202, 6
        %v2206 = vsub.f32 %v2199, %v2204
        %v2208 = vrot.slane %v2196, 1
        %v2211 = vrot.slane %v2206, 1
        %v2213 = vrot.slane %v2196, 6
        %v2215 = vsel %vm2004, %v2208, %v2211
        %v2216 = vsel %vm2006, %v2215, %v2213
        %v2217 = vmul.f32 %v1830, %v2154
        %v2218 = vsel %vm320, %v2217, 0.0
        %v2219 = vrot.slane %v2218, 4
        %v2220 = vadd.f32 %v2218, %v2219
        %v2221 = vrot.slane %v2220, 2
        %v2222 = vadd.f32 %v2220, %v2221
        %v2223 = vrot.slane %v2222, 1
        %v2224 = vadd.f32 %v2222, %v2223
        %v2225 = vrcp.pop 6.0
        %v2226 = vmul.f32 %v2224, %v2225
        %v2227 = vld [vmem:[%s2] sm:$0x3]
        %2228 = vmatprep.subr.mxu0 0.0
        %2229 = vmatpush1.xpose.msra.mxu0 0.0
        %2230 = vmatprep.subr.mxu0 0.0
        %2231 = vmatpush1.xpose.msra.mxu0 0.0
        %2232 = vmatprep.subr.mxu0 0.0
        %2233 = vmatpush1.xpose.msra.mxu0 0.0
        %2234 = vmatprep.subr.mxu0 0.0
        %2235 = vmatpush1.xpose.msra.mxu0 0.0
        %2236 = vmatprep.subr.mxu0 0.0
        %2237 = vmatpush1.xpose.msra.mxu0 0.0
        %2238 = vmatprep.subr.mxu0 0.0
        %2239 = vmatpush1.xpose.msra.mxu0 0.0
        %2240 = vmatprep.subr.mxu0 0.0
        %2241 = vmatpush1.xpose.msra.mxu0 0.0
        %2242 = vmatprep.subr.mxu0 0.0
        %2243 = vmatpush1.xpose.msra.mxu0 0.0
        %2244 = vmatprep.subr.mxu0 0.0
        %2245 = vmatpush1.xpose.msra.mxu0 0.0
        %2246 = vmatprep.subr.mxu0 0.0
        %2247 = vmatpush1.xpose.msra.mxu0 0.0
        %2248 = vmatprep.subr.mxu0 0.0
        %2249 = vmatpush1.xpose.msra.mxu0 0.0
        %2250 = vmatprep.subr.mxu0 0.0
        %2251 = vmatpush1.xpose.msra.mxu0 0.0
        %2252 = vmatprep.subr.mxu0 0.0
        %2253 = vmatpush1.xpose.msra.mxu0 0.0
        %2254 = vmatprep.subr.mxu0 0.0
        %2255 = vmatpush1.xpose.msra.mxu0 0.0
        %2256 = vmatprep.subr.mxu0 0.0
        %2257 = vmatpush1.xpose.msra.mxu0 0.0
        %2258 = vmatprep.subr.mxu0 0.0
        %2259 = vmatpush1.xpose.msra.mxu0 %v2227
        %2260 = vmatprep.subr.mxu0 0.0
        %2261 = vmatpush2.xpose.msra.mxu0 0.0
        %2262 = vmatprep.subr.mxu0 0.0
        %2263 = vmatpush2.xpose.msra.mxu0 0.0
        %2264 = vmatprep.subr.mxu0 0.0
        %2265 = vmatpush2.xpose.msra.mxu0 0.0
        %2266 = vmatprep.subr.mxu0 0.0
        %2267 = vmatpush2.xpose.msra.mxu0 0.0
        %2268 = vmatprep.subr.mxu0 0.0
        %2269 = vmatpush2.xpose.msra.mxu0 0.0
        %2270 = vmatprep.subr.mxu0 0.0
        %2271 = vmatpush2.xpose.msra.mxu0 0.0
        %2272 = vmatprep.subr.mxu0 0.0
        %2273 = vmatpush2.xpose.msra.mxu0 0.0
        %2274 = vmatprep.subr.mxu0 0.0
        %2275 = vmatpush2.xpose.msra.mxu0 0.0
        %2276 = vmatprep.subr.mxu0 0.0
        %2277 = vmatpush2.xpose.msra.mxu0 0.0
        %2278 = vmatprep.subr.mxu0 0.0
        %2279 = vmatpush2.xpose.msra.mxu0 0.0
        %2280 = vmatprep.subr.mxu0 0.0
        %2281 = vmatpush2.xpose.msra.mxu0 0.0
        %2282 = vmatprep.subr.mxu0 0.0
        %2283 = vmatpush2.xpose.msra.mxu0 0.0
        %2284 = vmatprep.subr.mxu0 0.0
        %2285 = vmatpush2.xpose.msra.mxu0 0.0
        %2286 = vmatprep.subr.mxu0 0.0
        %2287 = vmatpush2.xpose.msra.mxu0 0.0
        %2288 = vmatprep.subr.mxu0 0.0
        %2289 = vmatpush2.xpose.msra.mxu0 0.0
        %2290 = vmatprep.subr.mxu0 0.0
        %2291 = vmatpush2.xpose.msra.mxu0 0.0
        %2292 = vmatprep.mubr.f32.mxu0 0.0
        %2293 = vmatmul.mubr.f32.gmra.mxu0 %v2226
        %v2294 = vpop.f32.mrf.mxu0
        %v2295 = vadd.f32 0.0, %v2294
        %v2296 = vpop.f32.mrf.mxu0
        %2297 = vdwg.mxu0
        %v2298 = vmax.f32 %v2295, 1e-06
        %v2299 = vrcp.pop %v2298
        %v2300 = vmul.f32 1.0428945, %v2299
        %v2301 = vlog2.pop %v2300
        %v2302 = vmul.f32 %v2301, 0.6931472
        %v2303 = vmul.f32 %v2302, 2500.0
        %vm2304 = vcmask 15360
        %v2306 = vsel %vm2304, %v2303, 0
        %v2309 = vsel %vm2006, %v2227, 0
        %2311 = vmatprep.subr.mxu0 0.0
        %2312 = vmatpush1.msra.mxu0 0.0
        %2313 = vmatprep.subr.mxu0 0.0
        %2314 = vmatpush1.msra.mxu0 0.0
        %2315 = vmatprep.subr.mxu0 0.0
        %2316 = vmatpush1.msra.mxu0 0.0
        %2317 = vmatprep.subr.mxu0 0.0
        %2318 = vmatpush1.msra.mxu0 0.0
        %2319 = vmatprep.subr.mxu0 0.0
        %2320 = vmatpush1.msra.mxu0 0.0
        %2321 = vmatprep.subr.mxu0 0.0
        %2322 = vmatpush1.msra.mxu0 0.0
        %2323 = vmatprep.subr.mxu0 0.0
        %2324 = vmatpush1.msra.mxu0 0.0
        %2325 = vmatprep.subr.mxu0 0.0
        %2326 = vmatpush1.msra.mxu0 0.0
        %2327 = vmatprep.subr.mxu0 0.0
        %2328 = vmatpush1.msra.mxu0 0.0
        %2329 = vmatprep.subr.mxu0 0.0
        %2330 = vmatpush1.msra.mxu0 0.0
        %2331 = vmatprep.subr.mxu0 0.0
        %2332 = vmatpush1.msra.mxu0 0.0
        %2333 = vmatprep.subr.mxu0 0.0
        %2334 = vmatpush1.msra.mxu0 0.0
        %2335 = vmatprep.subr.mxu0 0.0
        %2336 = vmatpush1.msra.mxu0 0.0
        %2337 = vmatprep.subr.mxu0 0.0
        %2338 = vmatpush1.msra.mxu0 0.0
        %2339 = vmatprep.subr.mxu0 0.0
        %2340 = vmatpush1.msra.mxu0 0.0
        %2341 = vmatprep.subr.mxu0 0.0
        %2342 = vmatpush1.msra.mxu0 %v2309
        %2343 = vmatprep.subr.mxu0 0.0
        %2344 = vmatpush2.msra.mxu0 0.0
        %2345 = vmatprep.subr.mxu0 0.0
        %2346 = vmatpush2.msra.mxu0 0.0
        %2347 = vmatprep.subr.mxu0 0.0
        %2348 = vmatpush2.msra.mxu0 0.0
        %2349 = vmatprep.subr.mxu0 0.0
        %2350 = vmatpush2.msra.mxu0 0.0
        %2351 = vmatprep.subr.mxu0 0.0
        %2352 = vmatpush2.msra.mxu0 0.0
        %2353 = vmatprep.subr.mxu0 0.0
        %2354 = vmatpush2.msra.mxu0 0.0
        %2355 = vmatprep.subr.mxu0 0.0
        %2356 = vmatpush2.msra.mxu0 0.0
        %2357 = vmatprep.subr.mxu0 0.0
        %2358 = vmatpush2.msra.mxu0 0.0
        %2359 = vmatprep.subr.mxu0 0.0
        %2360 = vmatpush2.msra.mxu0 0.0
        %2361 = vmatprep.subr.mxu0 0.0
        %2362 = vmatpush2.msra.mxu0 0.0
        %2363 = vmatprep.subr.mxu0 0.0
        %2364 = vmatpush2.msra.mxu0 0.0
        %2365 = vmatprep.subr.mxu0 0.0
        %2366 = vmatpush2.msra.mxu0 0.0
        %2367 = vmatprep.subr.mxu0 0.0
        %2368 = vmatpush2.msra.mxu0 0.0
        %2369 = vmatprep.subr.mxu0 0.0
        %2370 = vmatpush2.msra.mxu0 0.0
        %2371 = vmatprep.subr.mxu0 0.0
        %2372 = vmatpush2.msra.mxu0 0.0
        %2373 = vmatprep.subr.mxu0 0.0
        %2374 = vmatpush2.msra.mxu0 0.0
        %2375 = vmatprep.mubr.f32.mxu0 0.0
        %2376 = vmatmul.mubr.f32.gmra.mxu0 %v2306
        %v2377 = vpop.f32.mrf.mxu0
        %v2378 = vadd.f32 0.0, %v2377
        %v2379 = vpop.f32.mrf.mxu0
        %2380 = vdwg.mxu0
        %v2381 = vmul.f32 %v2154, %v2225
        %v2382 = vlaneseq
        %v2383 = vshrl.u32 %v2382, 7
        %v2384 = vsub.s32 0, %v2383
        %v2385 = vrot.slane %v2378, %v2384
        %v2386 = vmul.f32 %v2385, %v2381
        %v2387 = vmul.f32 %v2058, 0.011
        %v2388 = vsub.f32 %v2386, %v2387
        %v2389 = vmul.f32 %v2185, %v2225
        %v2390 = vmul.f32 %v2385, %v2389
        %v2391 = vmul.f32 %v2091, 0.011
        %v2392 = vsub.f32 %v2390, %v2391
        %v2393 = vmul.f32 %v2216, %v2225
        %v2394 = vmul.f32 %v2385, %v2393
        %v2395 = vmul.f32 %v2123, 0.011
        %v2396 = vsub.f32 %v2394, %v2395
        %2397 = vmatprep.subr.mxu0 0.0
        %2398 = vmatpush1.msra.mxu0 %v1746
        %2399 = vmatprep.subr.mxu0 0.0
        %2400 = vmatpush1.msra.mxu0 %v1745
        %2401 = vmatprep.subr.mxu0 0.0
        %2402 = vmatpush1.msra.mxu0 %v1744
        %2403 = vmatprep.subr.mxu0 0.0
        %2404 = vmatpush1.msra.mxu0 %v1743
        %2405 = vmatprep.subr.mxu0 0.0
        %2406 = vmatpush1.msra.mxu0 %v1742
        %2407 = vmatprep.subr.mxu0 0.0
        %2408 = vmatpush1.msra.mxu0 %v1741
        %2409 = vmatprep.subr.mxu0 0.0
        %2410 = vmatpush1.msra.mxu0 %v1740
        %2411 = vmatprep.subr.mxu0 0.0
        %2412 = vmatpush1.msra.mxu0 %v1739
        %2413 = vmatprep.subr.mxu0 0.0
        %2414 = vmatpush1.msra.mxu0 %v1738
        %2415 = vmatprep.subr.mxu0 0.0
        %2416 = vmatpush1.msra.mxu0 %v1737
        %2417 = vmatprep.subr.mxu0 0.0
        %2418 = vmatpush1.msra.mxu0 %v1736
        %2419 = vmatprep.subr.mxu0 0.0
        %2420 = vmatpush1.msra.mxu0 %v1735
        %2421 = vmatprep.subr.mxu0 0.0
        %2422 = vmatpush1.msra.mxu0 %v1734
        %2423 = vmatprep.subr.mxu0 0.0
        %2424 = vmatpush1.msra.mxu0 %v1733
        %2425 = vmatprep.subr.mxu0 0.0
        %2426 = vmatpush1.msra.mxu0 %v1732
        %2427 = vmatprep.subr.mxu0 0.0
        %2428 = vmatpush1.msra.mxu0 %v1731
        %2429 = vmatprep.subr.mxu0 0.0
        %2430 = vmatpush2.msra.mxu0 0.0
        %2431 = vmatprep.subr.mxu0 0.0
        %2432 = vmatpush2.msra.mxu0 0.0
        %2433 = vmatprep.subr.mxu0 0.0
        %2434 = vmatpush2.msra.mxu0 0.0
        %2435 = vmatprep.subr.mxu0 0.0
        %2436 = vmatpush2.msra.mxu0 0.0
        %2437 = vmatprep.subr.mxu0 0.0
        %2438 = vmatpush2.msra.mxu0 0.0
        %2439 = vmatprep.subr.mxu0 0.0
        %2440 = vmatpush2.msra.mxu0 0.0
        %2441 = vmatprep.subr.mxu0 0.0
        %2442 = vmatpush2.msra.mxu0 0.0
        %2443 = vmatprep.subr.mxu0 0.0
        %2444 = vmatpush2.msra.mxu0 0.0
        %2445 = vmatprep.subr.mxu0 0.0
        %2446 = vmatpush2.msra.mxu0 0.0
        %2447 = vmatprep.subr.mxu0 0.0
        %2448 = vmatpush2.msra.mxu0 0.0
        %2449 = vmatprep.subr.mxu0 0.0
        %2450 = vmatpush2.msra.mxu0 0.0
        %2451 = vmatprep.subr.mxu0 0.0
        %2452 = vmatpush2.msra.mxu0 0.0
        %2453 = vmatprep.subr.mxu0 0.0
        %2454 = vmatpush2.msra.mxu0 0.0
        %2455 = vmatprep.subr.mxu0 0.0
        %2456 = vmatpush2.msra.mxu0 0.0
        %2457 = vmatprep.subr.mxu0 0.0
        %2458 = vmatpush2.msra.mxu0 0.0
        %2459 = vmatprep.subr.mxu0 0.0
        %2460 = vmatpush2.msra.mxu0 0.0
        %2461 = vmatprep.mubr.f32.mxu0 0.0
        %2462 = vmatmul.mubr.f32.gmra.mxu0 %v2392
        %v2463 = vpop.f32.mrf.mxu0
        %v2464 = vadd.f32 0.0, %v2463
        %v2465 = vpop.f32.mrf.mxu0
        %2466 = vdwg.mxu0
        %2467 = vmatprep.subr.mxu0 0.0
        %2468 = vmatpush1.msra.mxu0 %v1730
        %2469 = vmatprep.subr.mxu0 0.0
        %2470 = vmatpush1.msra.mxu0 %v1729
        %2471 = vmatprep.subr.mxu0 0.0
        %2472 = vmatpush1.msra.mxu0 %v1728
        %2473 = vmatprep.subr.mxu0 0.0
        %2474 = vmatpush1.msra.mxu0 %v1727
        %2475 = vmatprep.subr.mxu0 0.0
        %2476 = vmatpush1.msra.mxu0 %v1726
        %2477 = vmatprep.subr.mxu0 0.0
        %2478 = vmatpush1.msra.mxu0 %v1725
        %2479 = vmatprep.subr.mxu0 0.0
        %2480 = vmatpush1.msra.mxu0 %v1724
        %2481 = vmatprep.subr.mxu0 0.0
        %2482 = vmatpush1.msra.mxu0 %v1723
        %2483 = vmatprep.subr.mxu0 0.0
        %2484 = vmatpush1.msra.mxu0 %v1722
        %2485 = vmatprep.subr.mxu0 0.0
        %2486 = vmatpush1.msra.mxu0 %v1721
        %2487 = vmatprep.subr.mxu0 0.0
        %2488 = vmatpush1.msra.mxu0 %v1720
        %2489 = vmatprep.subr.mxu0 0.0
        %2490 = vmatpush1.msra.mxu0 %v1719
        %2491 = vmatprep.subr.mxu0 0.0
        %2492 = vmatpush1.msra.mxu0 %v1718
        %2493 = vmatprep.subr.mxu0 0.0
        %2494 = vmatpush1.msra.mxu0 %v1717
        %2495 = vmatprep.subr.mxu0 0.0
        %2496 = vmatpush1.msra.mxu0 %v1716
        %2497 = vmatprep.subr.mxu0 0.0
        %2498 = vmatpush1.msra.mxu0 %v1715
        %2499 = vmatprep.subr.mxu0 0.0
        %2500 = vmatpush2.msra.mxu0 0.0
        %2501 = vmatprep.subr.mxu0 0.0
        %2502 = vmatpush2.msra.mxu0 0.0
        %2503 = vmatprep.subr.mxu0 0.0
        %2504 = vmatpush2.msra.mxu0 0.0
        %2505 = vmatprep.subr.mxu0 0.0
        %2506 = vmatpush2.msra.mxu0 0.0
        %2507 = vmatprep.subr.mxu0 0.0
        %2508 = vmatpush2.msra.mxu0 0.0
        %2509 = vmatprep.subr.mxu0 0.0
        %2510 = vmatpush2.msra.mxu0 0.0
        %2511 = vmatprep.subr.mxu0 0.0
        %2512 = vmatpush2.msra.mxu0 0.0
        %2513 = vmatprep.subr.mxu0 0.0
        %2514 = vmatpush2.msra.mxu0 0.0
        %2515 = vmatprep.subr.mxu0 0.0
        %2516 = vmatpush2.msra.mxu0 0.0
        %2517 = vmatprep.subr.mxu0 0.0
        %2518 = vmatpush2.msra.mxu0 0.0
        %2519 = vmatprep.subr.mxu0 0.0
        %2520 = vmatpush2.msra.mxu0 0.0
        %2521 = vmatprep.subr.mxu0 0.0
        %2522 = vmatpush2.msra.mxu0 0.0
        %2523 = vmatprep.subr.mxu0 0.0
        %2524 = vmatpush2.msra.mxu0 0.0
        %2525 = vmatprep.subr.mxu0 0.0
        %2526 = vmatpush2.msra.mxu0 0.0
        %2527 = vmatprep.subr.mxu0 0.0
        %2528 = vmatpush2.msra.mxu0 0.0
        %2529 = vmatprep.subr.mxu0 0.0
        %2530 = vmatpush2.msra.mxu0 0.0
        %2531 = vmatprep.mubr.f32.mxu0 0.0
        %2532 = vmatmul.mubr.f32.gmra.mxu0 %v2388
        %v2533 = vpop.f32.mrf.mxu0
        %v2534 = vadd.f32 %v2464, %v2533
        %v2535 = vpop.f32.mrf.mxu0
        %2536 = vdwg.mxu0
        %2537 = vmatprep.subr.mxu0 0.0
        %2538 = vmatpush1.msra.mxu0 %v1762
        %2539 = vmatprep.subr.mxu0 0.0
        %2540 = vmatpush1.msra.mxu0 %v1761
        %2541 = vmatprep.subr.mxu0 0.0
        %2542 = vmatpush1.msra.mxu0 %v1760
        %2543 = vmatprep.subr.mxu0 0.0
        %2544 = vmatpush1.msra.mxu0 %v1759
        %2545 = vmatprep.subr.mxu0 0.0
        %2546 = vmatpush1.msra.mxu0 %v1758
        %2547 = vmatprep.subr.mxu0 0.0
        %2548 = vmatpush1.msra.mxu0 %v1757
        %2549 = vmatprep.subr.mxu0 0.0
        %2550 = vmatpush1.msra.mxu0 %v1756
        %2551 = vmatprep.subr.mxu0 0.0
        %2552 = vmatpush1.msra.mxu0 %v1755
        %2553 = vmatprep.subr.mxu0 0.0
        %2554 = vmatpush1.msra.mxu0 %v1754
        %2555 = vmatprep.subr.mxu0 0.0
        %2556 = vmatpush1.msra.mxu0 %v1753
        %2557 = vmatprep.subr.mxu0 0.0
        %2558 = vmatpush1.msra.mxu0 %v1752
        %2559 = vmatprep.subr.mxu0 0.0
        %2560 = vmatpush1.msra.mxu0 %v1751
        %2561 = vmatprep.subr.mxu0 0.0
        %2562 = vmatpush1.msra.mxu0 %v1750
        %2563 = vmatprep.subr.mxu0 0.0
        %2564 = vmatpush1.msra.mxu0 %v1749
        %2565 = vmatprep.subr.mxu0 0.0
        %2566 = vmatpush1.msra.mxu0 %v1748
        %2567 = vmatprep.subr.mxu0 0.0
        %2568 = vmatpush1.msra.mxu0 %v1747
        %2569 = vmatprep.subr.mxu0 0.0
        %2570 = vmatpush2.msra.mxu0 0.0
        %2571 = vmatprep.subr.mxu0 0.0
        %2572 = vmatpush2.msra.mxu0 0.0
        %2573 = vmatprep.subr.mxu0 0.0
        %2574 = vmatpush2.msra.mxu0 0.0
        %2575 = vmatprep.subr.mxu0 0.0
        %2576 = vmatpush2.msra.mxu0 0.0
        %2577 = vmatprep.subr.mxu0 0.0
        %2578 = vmatpush2.msra.mxu0 0.0
        %2579 = vmatprep.subr.mxu0 0.0
        %2580 = vmatpush2.msra.mxu0 0.0
        %2581 = vmatprep.subr.mxu0 0.0
        %2582 = vmatpush2.msra.mxu0 0.0
        %2583 = vmatprep.subr.mxu0 0.0
        %2584 = vmatpush2.msra.mxu0 0.0
        %2585 = vmatprep.subr.mxu0 0.0
        %2586 = vmatpush2.msra.mxu0 0.0
        %2587 = vmatprep.subr.mxu0 0.0
        %2588 = vmatpush2.msra.mxu0 0.0
        %2589 = vmatprep.subr.mxu0 0.0
        %2590 = vmatpush2.msra.mxu0 0.0
        %2591 = vmatprep.subr.mxu0 0.0
        %2592 = vmatpush2.msra.mxu0 0.0
        %2593 = vmatprep.subr.mxu0 0.0
        %2594 = vmatpush2.msra.mxu0 0.0
        %2595 = vmatprep.subr.mxu0 0.0
        %2596 = vmatpush2.msra.mxu0 0.0
        %2597 = vmatprep.subr.mxu0 0.0
        %2598 = vmatpush2.msra.mxu0 0.0
        %2599 = vmatprep.subr.mxu0 0.0
        %2600 = vmatpush2.msra.mxu0 0.0
        %2601 = vmatprep.mubr.f32.mxu0 0.0
        %2602 = vmatmul.mubr.f32.gmra.mxu0 %v2396
        %v2603 = vpop.f32.mrf.mxu0
        %v2604 = vadd.f32 0.0, %v2603
        %v2605 = vpop.f32.mrf.mxu0
        %2606 = vdwg.mxu0
        %v2607 = vadd.f32 %v2534, %v2604
        %2608 = vmatprep.subr.mxu0 0.0
        %2609 = vmatpush1.msra.mxu0 %v1620
        %2610 = vmatprep.subr.mxu0 0.0
        %2611 = vmatpush1.msra.mxu0 %v1619
        %2612 = vmatprep.subr.mxu0 0.0
        %2613 = vmatpush1.msra.mxu0 %v1618
        %2614 = vmatprep.subr.mxu0 0.0
        %2615 = vmatpush1.msra.mxu0 %v1617
        %2616 = vmatprep.subr.mxu0 0.0
        %2617 = vmatpush1.msra.mxu0 %v1616
        %2618 = vmatprep.subr.mxu0 0.0
        %2619 = vmatpush1.msra.mxu0 %v1615
        %2620 = vmatprep.subr.mxu0 0.0
        %2621 = vmatpush1.msra.mxu0 %v1614
        %2622 = vmatprep.subr.mxu0 0.0
        %2623 = vmatpush1.msra.mxu0 %v1613
        %2624 = vmatprep.subr.mxu0 0.0
        %2625 = vmatpush1.msra.mxu0 %v1612
        %2626 = vmatprep.subr.mxu0 0.0
        %2627 = vmatpush1.msra.mxu0 %v1611
        %2628 = vmatprep.subr.mxu0 0.0
        %2629 = vmatpush1.msra.mxu0 %v1610
        %2630 = vmatprep.subr.mxu0 0.0
        %2631 = vmatpush1.msra.mxu0 %v1609
        %2632 = vmatprep.subr.mxu0 0.0
        %2633 = vmatpush1.msra.mxu0 %v1608
        %2634 = vmatprep.subr.mxu0 0.0
        %2635 = vmatpush1.msra.mxu0 %v1607
        %2636 = vmatprep.subr.mxu0 0.0
        %2637 = vmatpush1.msra.mxu0 %v1606
        %2638 = vmatprep.subr.mxu0 0.0
        %2639 = vmatpush1.msra.mxu0 %v1605
        %2640 = vmatprep.subr.mxu0 0.0
        %2641 = vmatpush2.msra.mxu0 0.0
        %2642 = vmatprep.subr.mxu0 0.0
        %2643 = vmatpush2.msra.mxu0 0.0
        %2644 = vmatprep.subr.mxu0 0.0
        %2645 = vmatpush2.msra.mxu0 0.0
        %2646 = vmatprep.subr.mxu0 0.0
        %2647 = vmatpush2.msra.mxu0 0.0
        %2648 = vmatprep.subr.mxu0 0.0
        %2649 = vmatpush2.msra.mxu0 0.0
        %2650 = vmatprep.subr.mxu0 0.0
        %2651 = vmatpush2.msra.mxu0 0.0
        %2652 = vmatprep.subr.mxu0 0.0
        %2653 = vmatpush2.msra.mxu0 0.0
        %2654 = vmatprep.subr.mxu0 0.0
        %2655 = vmatpush2.msra.mxu0 0.0
        %2656 = vmatprep.subr.mxu0 0.0
        %2657 = vmatpush2.msra.mxu0 0.0
        %2658 = vmatprep.subr.mxu0 0.0
        %2659 = vmatpush2.msra.mxu0 0.0
        %2660 = vmatprep.subr.mxu0 0.0
        %2661 = vmatpush2.msra.mxu0 0.0
        %2662 = vmatprep.subr.mxu0 0.0
        %2663 = vmatpush2.msra.mxu0 0.0
        %2664 = vmatprep.subr.mxu0 0.0
        %2665 = vmatpush2.msra.mxu0 0.0
        %2666 = vmatprep.subr.mxu0 0.0
        %2667 = vmatpush2.msra.mxu0 0.0
        %2668 = vmatprep.subr.mxu0 0.0
        %2669 = vmatpush2.msra.mxu0 0.0
        %2670 = vmatprep.subr.mxu0 0.0
        %2671 = vmatpush2.msra.mxu0 0.0
        %2672 = vmatprep.mubr.f32.mxu0 0.0
        %2673 = vmatmul.mubr.f32.gmra.mxu0 %v2607
        %v2674 = vpop.f32.mrf.mxu0
        %v2675 = vadd.f32 0.0, %v2674
        %v2676 = vpop.f32.mrf.mxu0
        %2677 = vdwg.mxu0
        %v2678 = vmul.f32 %v2675, %v1643
        %v2679 = vmul.f32 %v2678, 0.001
        %v2680 = vadd.f32 %v1714, %v2679
        %2681 = vst [vmem:[#allocation2] sm:$0x7] %v2680
        %p2682 = scmp.lt.s32.totalorder %s19, 2
        %s2683 = scalar_select %p2682, %s19, 2
        %s2684 = smul.addr %s2683, 16
        %s2685 = smul.addr %s2684, 8
        %s2686 = scalar_lea.vmem %s5, %s2685
        // Predicated region
        $region45: #{_soap_bubble_run.1} parent=39 // pred_check
          %p2687 = pneg %p142
        $region46: #{_soap_bubble_run.1} parent=39 // pred_check_branch
          %2689 = sbr.rel (%p2687) target = $region48
        $region47: #{_soap_bubble_run.1} parent=39 // pred_region
          _
        $region48: #{_soap_bubble_run.1} parent=39 // pred_fallthru
          _
        // Predicated region
        $region49: #{_soap_bubble_run.1} parent=39 // pred_check
          %p2690 = pneg %p163
        $region50: #{_soap_bubble_run.1} parent=39 // pred_check_branch
          %2692 = sbr.rel (%p2690) target = $region52
        $region51: #{_soap_bubble_run.1} parent=39 // pred_region
          %s2694 = ssub.s32 64, 64
          %2695 = vsyncadd [#allocation3], %s2694
          %s2697 = sshll.u32 [#allocation2], 4
          %s2698 = int_to_ptr.vmem [resolvable:$true] %s2697
          %2700 = dma.vmem_to_hbm [thread:$0]  %s2698, 64, %s6, [#allocation3]
        $region52: #{_soap_bubble_run.1} parent=39 // pred_fallthru
          _
        // Predicated region
        $region53: #{_soap_bubble_run.1} parent=39 // pred_check
          %p2701 = pneg %p163
        $region54: #{_soap_bubble_run.1} parent=39 // pred_check_branch
          %2703 = sbr.rel (%p2701) target = $region56
        $region55: #{_soap_bubble_run.1} parent=39 // pred_region
          %2704 = dma.done [#allocation3], 64
        $region56: #{_soap_bubble_run.1} parent=39 // pred_fallthru
          _
      $region40: #{_soap_bubble_run.1} parent=5 // pred_fallthru
        _
      %p2705 = scmp.le.s32.totalorder 2, %s14
      // Predicated region
      $region57: #{_soap_bubble_run.1} parent=5 // pred_check
        %p2706 = pneg %p2705
      $region58: #{_soap_bubble_run.1} parent=5 // pred_check_branch
        %2708 = sbr.rel (%p2706) target = $region60
      $region59: #{_soap_bubble_run.1} parent=5 // pred_region
        %s2709 = ssub.s32 %s14, 2
        // Predicated region
        $region61: #{_soap_bubble_run.1} parent=59 // pred_check
          %p2710 = pneg %p148
        $region62: #{_soap_bubble_run.1} parent=59 // pred_check_branch
          %2712 = sbr.rel (%p2710) target = $region64
        $region63: #{_soap_bubble_run.1} parent=59 // pred_region
          %p2713 = scmp.lt.s32.totalorder %s20, 2
          %s2714 = scalar_select %p2713, %s20, 2
          %s2715 = smul.addr %s2714, 16
          %s2716 = smul.addr %s2715, 8
          %s2717 = scalar_lea.vmem %s5, %s2716
        $region64: #{_soap_bubble_run.1} parent=59 // pred_fallthru
          _
      $region60: #{_soap_bubble_run.1} parent=5 // pred_fallthru
        _
    $region6: #{_soap_bubble_run.1} parent=1 // loop_footer
      %s18 = sadd.s32 1, %s14
    $region7: #{_soap_bubble_run.1} parent=1 // loop_footer_branch
      %13 = sbr.rel target = $region3
    $region8: #{_soap_bubble_run.1} parent=1 // loop_exit
      _
    %2718 = vsyncpa [#allocation3], 1
    %s2719 = scalar_lea.sflag [#allocation3], 1
    %2720 = vsyncpa %s2719, 1

</llo_original>
